<compile_context>
chip_gen: v7x
topology: tpu7x:2x2x1
jax: 0.10.0
libtpu: 0.0.40
codegen_flags: <defaults>
</compile_context>

<pallas_src>
import functools

import jax
import jax.numpy as jnp
from jax.experimental import pallas as pl
from jax.experimental.pallas import tpu as pltpu


# ----------------------------------------------------------------------------- utils

def _round_up(x, m):
    return (x + m - 1) // m * m


def _pick_time_chunk(T, max_chunk=32):
    """Largest divisor of T that is <= max_chunk (steps processed per grid step).

    max_chunk=32 targets v6e/v7x (TC*Bp = 256 LHS rows fills the 256-wide MXU);
    use max_chunk=16 on v5e (128-wide MXU)."""
    tc = 1
    for d in range(1, min(T, max_chunk) + 1):
        if T % d == 0:
            tc = d
    return tc


def _pad_gate_cols(w, H, Hp):
    """Pad each of the 4 gate blocks along the last axis from H to Hp with zeros."""
    if Hp == H:
        return w
    parts = [w[..., k * H:(k + 1) * H] for k in range(4)]
    pad = [(0, 0)] * (w.ndim - 1) + [(0, Hp - H)]
    return jnp.concatenate([jnp.pad(p, pad) for p in parts], axis=-1)


# ----------------------------------------------------------------------------- kernel

def _encoder_lstm_kernel(x_ref, wih_ref, whh_ref, b_ref,
                         h_out_ref, c_out_ref,
                         h_sc, c_sc, seq_sc, xg_sc,
                         *, n_layers, hidden_pad, steps_per_chunk):
    """One time-chunk of the FULL layer stack.

    x_ref:   (TC, Bp, Dp)        layer-0 input chunk (padded embeddings)
    wih_ref: (L, Dp, 4Hp)        stacked input weights   (VMEM-resident)
    whh_ref: (L, Hp, 4Hp)        stacked recurrent weights
    b_ref:   (L, 1, 4Hp)         stacked biases (b_ih + b_hh), f32
    h_out_ref/c_out_ref: (L, Bp, Hp) final states (constant-index, resident)
    h_sc/c_sc: (L, Bp, Hp)       recurrent state, persists across the grid
    seq_sc:  (TC, Bp, Hp)        inter-layer sequence buffer (never hits HBM)
    xg_sc:   (TC*Bp, 4Hp)        staging for the hoisted input projection
    """
    c_idx = pl.program_id(0)
    Hp = hidden_pad
    TC = steps_per_chunk
    Bp = h_sc.shape[1]
    Dp = x_ref.shape[-1]
    mm_dt = wih_ref.dtype          # f32 (exact) or bf16 (MXU-fast path)

    @pl.when(c_idx == 0)
    def _():
        h_sc[...] = jnp.zeros_like(h_sc)
        c_sc[...] = jnp.zeros_like(c_sc)

    def _sigmoid(v):
        # One EUP op instead of exp + divide; exact on padded (zero) gate lanes:
        # sigmoid(0)=0.5, tanh(0)=0 => padded c,h stay exactly 0.
        return 0.5 * jnp.tanh(0.5 * v) + 0.5

    for layer in range(n_layers):
        if layer == 0:
            x_chunk = x_ref[...].reshape(TC * Bp, Dp)       # (TC*Bp, Dp)
            w_ih = wih_ref[layer]                           # (Dp, 4Hp)
        else:
            # Previous layer fully wrote seq_sc for this chunk before we read it.
            x_chunk = seq_sc[...].reshape(TC * Bp, Hp)      # (TC*Bp, Hp)
            w_ih = wih_ref[layer][:Hp, :]                   # (Hp, 4Hp) lane/sublane aligned
        w_hh = whh_ref[layer]                               # (Hp, 4Hp)
        b = b_ref[layer]                                    # (1, 4Hp) f32

        # Whole-chunk input projection: ONE MXU matmul, off the serial path.
        xg_sc[...] = (jnp.dot(x_chunk.astype(mm_dt), w_ih,
                              preferred_element_type=jnp.float32) + b)

        h = h_sc[layer]
        c = c_sc[layer]
        # Serial recurrence: only h @ W_hh + elementwise per step (static unroll;
        # per-step xg is re-loaded from scratch so the live set stays small).
        for s in range(TC):
            xg_s = xg_sc[s * Bp:(s + 1) * Bp, :]            # (Bp, 4Hp)
            gates = xg_s + jnp.dot(h.astype(mm_dt), w_hh,
                                   preferred_element_type=jnp.float32)
            # Hp is a multiple of 128, so each gate slice is exactly one lane tile.
            i_g = _sigmoid(gates[:, 0 * Hp:1 * Hp])
            f_g = _sigmoid(gates[:, 1 * Hp:2 * Hp])
            g_g = jnp.tanh(gates[:, 2 * Hp:3 * Hp])
            o_g = _sigmoid(gates[:, 3 * Hp:4 * Hp])
            c = f_g * c + i_g * g_g
            h = o_g * jnp.tanh(c)
            if layer < n_layers - 1:
                seq_sc[s] = h                               # feed next layer (VMEM only)
        h_sc[layer] = h
        c_sc[layer] = c
        # Constant-index output blocks are resident across the grid (one HBM
        # writeback at grid end); refreshing them every chunk keeps them always
        # initialized and costs only a tiny VMEM store.
        h_out_ref[layer] = h
        c_out_ref[layer] = c


def encoder_lstm_pallas(x_pad, w_ih_stack, w_hh_stack, bias_stack,
                        n_layers, hidden_pad, time_chunk):
    """Fused multi-layer LSTM on padded data.

    x_pad: (T, Bp, Dp) f32.  Returns (h (L, Bp, Hp), c (L, Bp, Hp))."""
    T, Bp, Dp = x_pad.shape
    Hp = hidden_pad
    TC = time_chunk
    assert T % TC == 0
    n_chunks = T // TC

    kernel = functools.partial(_encoder_lstm_kernel, n_layers=n_layers,
                               hidden_pad=Hp, steps_per_chunk=TC)

    out_shapes = (
        jax.ShapeDtypeStruct((n_layers, Bp, Hp), jnp.float32),   # final hidden
        jax.ShapeDtypeStruct((n_layers, Bp, Hp), jnp.float32),   # final cell
    )

    grid_spec = pltpu.PrefetchScalarGridSpec(
        num_scalar_prefetch=0,
        grid=(n_chunks,),
        in_specs=[
            pl.BlockSpec((TC, Bp, Dp), lambda c: (c, 0, 0)),            # x chunk
            pl.BlockSpec((n_layers, Dp, 4 * Hp), lambda c: (0, 0, 0)),  # W_ih stack (resident)
            pl.BlockSpec((n_layers, Hp, 4 * Hp), lambda c: (0, 0, 0)),  # W_hh stack (resident)
            pl.BlockSpec((n_layers, 1, 4 * Hp), lambda c: (0, 0, 0)),   # bias stack (resident)
        ],
        out_specs=[
            pl.BlockSpec((n_layers, Bp, Hp), lambda c: (0, 0, 0)),      # hidden
            pl.BlockSpec((n_layers, Bp, Hp), lambda c: (0, 0, 0)),      # cell
        ],
        scratch_shapes=[
            pltpu.VMEM((n_layers, Bp, Hp), jnp.float32),   # h state
            pltpu.VMEM((n_layers, Bp, Hp), jnp.float32),   # c state
            pltpu.VMEM((TC, Bp, Hp), jnp.float32),         # inter-layer sequence slab
            pltpu.VMEM((TC * Bp, 4 * Hp), jnp.float32),    # input-projection staging
        ],
    )

    return pl.pallas_call(
        kernel,
        out_shape=out_shapes,
        grid_spec=grid_spec,
        compiler_params=pltpu.CompilerParams(
            dimension_semantics=("arbitrary",),    # time axis is sequential
            vmem_limit_bytes=32 * 1024 * 1024,
        ),
    )(x_pad, w_ih_stack, w_hh_stack, bias_stack)


# ----------------------------------------------------------------------------- params

def init_encoder_params(key, input_dim, emb_dim, hidden_dim, n_layers):
    """Deterministic parameter init (PyTorch-style U(-1/sqrt(H), 1/sqrt(H)) for LSTM)."""
    params = {}
    k_emb, key = jax.random.split(key)
    params["embedding"] = jax.random.normal(k_emb, (input_dim, emb_dim), jnp.float32)

    bound = 1.0 / jnp.sqrt(hidden_dim)
    layers = []
    for layer in range(n_layers):
        d_in = emb_dim if layer == 0 else hidden_dim
        k1, k2, k3, k4, key = jax.random.split(key, 5)
        w_ih = jax.random.uniform(k1, (d_in, 4 * hidden_dim), jnp.float32, -bound, bound)
        w_hh = jax.random.uniform(k2, (hidden_dim, 4 * hidden_dim), jnp.float32, -bound, bound)
        b_ih = jax.random.uniform(k3, (4 * hidden_dim,), jnp.float32, -bound, bound)
        b_hh = jax.random.uniform(k4, (4 * hidden_dim,), jnp.float32, -bound, bound)
        layers.append({"w_ih": w_ih, "w_hh": w_hh,
                       "bias": (b_ih + b_hh).reshape(1, 4 * hidden_dim)})
    params["lstm"] = layers
    return params


def _prepare_stacked_params(layers, H, Hp, Dp, matmul_dtype):
    """Pad each layer's weights to lane/sublane-aligned shapes and stack over layers."""
    w_ih_l, w_hh_l, b_l = [], [], []
    for p in layers:
        w_ih = _pad_gate_cols(p["w_ih"], H, Hp)                       # (d_in, 4Hp)
        w_ih = jnp.pad(w_ih, ((0, Dp - w_ih.shape[0]), (0, 0)))       # (Dp, 4Hp)
        w_hh = _pad_gate_cols(p["w_hh"], H, Hp)                       # (H, 4Hp)
        w_hh = jnp.pad(w_hh, ((0, Hp - H), (0, 0)))                   # (Hp, 4Hp)
        bias = _pad_gate_cols(p["bias"], H, Hp)                       # (1, 4Hp)
        w_ih_l.append(w_ih); w_hh_l.append(w_hh); b_l.append(bias)
    w_ih_s = jnp.stack(w_ih_l).astype(matmul_dtype)                   # (L, Dp, 4Hp)
    w_hh_s = jnp.stack(w_hh_l).astype(matmul_dtype)                   # (L, Hp, 4Hp)
    bias_s = jnp.stack(b_l).astype(jnp.float32)                       # (L, 1, 4Hp)
    return w_ih_s, w_hh_s, bias_s


# ----------------------------------------------------------------------------- forward

def encoder_forward(params, src, emb_dim, hidden_dim, n_layers, *,
                    matmul_dtype=jnp.float32, max_time_chunk=32):
    """src: (B, T) int32 token ids.  Returns (hidden, cell), each (n_layers, B, H)."""
    B, T = src.shape
    H = hidden_dim
    Bp = _round_up(B, 8)            # f32 sublane
    Hp = _round_up(H, 128)          # lane
    Ep = _round_up(emb_dim, 128)    # lane (matmul K dim)
    Dp = max(Ep, Hp)                # shared padded input width of the weight stack
    TC = _pick_time_chunk(T, max_chunk=max_time_chunk)

    # Embedding lookup (glue).  batch_first -> time-major for the kernel.
    embedded = jnp.take(params["embedding"], src, axis=0)          # (B, T, E)
    # Dropout: identity (eval-mode semantics).
    x = jnp.transpose(embedded, (1, 0, 2)).astype(jnp.float32)     # (T, B, E)
    x = jnp.pad(x, ((0, 0), (0, Bp - B), (0, Dp - emb_dim)))       # (T, Bp, Dp)

    w_ih_s, w_hh_s, bias_s = _prepare_stacked_params(
        params["lstm"], H, Hp, Dp, matmul_dtype)

    # Single fused pallas_call over the whole layer stack; padded hidden lanes
    # stay exactly zero (zero gate columns + zero bias), so padding is
    # numerically transparent between layers.
    h_all, c_all = encoder_lstm_pallas(x, w_ih_s, w_hh_s, bias_s,
                                       n_layers, Hp, TC)
    return h_all[:, :B, :H], c_all[:, :B, :H]


def encoder_forward_ref(params, src, hidden_dim, n_layers):
    """Pure-JAX reference (lax.scan, unpadded) for correctness checking."""
    embedded = jnp.take(params["embedding"], src, axis=0)
    x = jnp.transpose(embedded, (1, 0, 2)).astype(jnp.float32)     # (T, B, E)
    B = src.shape[0]
    H = hidden_dim
    hiddens, cells = [], []
    for layer in range(n_layers):
        p = params["lstm"][layer]

        def step(carry, x_t, p=p):
            h, c = carry
            gates = x_t @ p["w_ih"] + h @ p["w_hh"] + p["bias"][0]
            i = jax.nn.sigmoid(gates[:, 0 * H:1 * H])
            f = jax.nn.sigmoid(gates[:, 1 * H:2 * H])
            g = jnp.tanh(gates[:, 2 * H:3 * H])
            o = jax.nn.sigmoid(gates[:, 3 * H:4 * H])
            c_new = f * c + i * g
            h_new = o * jnp.tanh(c_new)
            return (h_new, c_new), h_new

        init = (jnp.zeros((B, H), jnp.float32), jnp.zeros((B, H), jnp.float32))
        (h_n, c_n), out_seq = jax.lax.scan(step, init, x)
        hiddens.append(h_n)
        cells.append(c_n)
        x = out_seq
    return jnp.stack(hiddens, axis=0), jnp.stack(cells, axis=0)


if __name__ == "__main__":
    # Small shapes consistent with the module: vocab=16, emb=32, hidden=32, 2 layers.
    input_dim, emb_dim, hidden_dim, n_layers = 16, 32, 32, 2
    batch, seq_len = 2, 8

    key = jax.random.PRNGKey(0)
    k_params, k_src = jax.random.split(key)
    params = init_encoder_params(k_params, input_dim, emb_dim, hidden_dim, n_layers)
    src = jax.random.randint(k_src, (batch, seq_len), 0, input_dim, dtype=jnp.int32)

    hidden, cell = encoder_forward(params, src, emb_dim, hidden_dim, n_layers)
    hidden, cell = jax.block_until_ready((hidden, cell))

    h_ref, c_ref = encoder_forward_ref(params, src, hidden_dim, n_layers)
    assert hidden.shape == (n_layers, batch, hidden_dim)
    assert cell.shape == (n_layers, batch, hidden_dim)
    assert jnp.allclose(hidden, h_ref, atol=1e-5, rtol=1e-5)
    assert jnp.allclose(cell, c_ref, atol=1e-5, rtol=1e-5)

    print("KERNEL_OK")
</pallas_src>

<mosaic_0001>
module attributes {stable_mosaic.version = 11 : i64} {
  func.func @_encoder_lstm_kernel(%arg0: i32, %arg1: memref<8x8x128xf32, #tpu.memory_space<vmem>>, %arg2: memref<2x128x512xf32, #tpu.memory_space<vmem>>, %arg3: memref<2x128x512xf32, #tpu.memory_space<vmem>>, %arg4: memref<2x1x512xf32, #tpu.memory_space<vmem>>, %arg5: memref<2x8x128xf32, #tpu.memory_space<vmem>>, %arg6: memref<2x8x128xf32, #tpu.memory_space<vmem>>, %arg7: memref<2x8x128xf32, #tpu.memory_space<vmem>>, %arg8: memref<2x8x128xf32, #tpu.memory_space<vmem>>, %arg9: memref<8x8x128xf32, #tpu.memory_space<vmem>>, %arg10: memref<64x512xf32, #tpu.memory_space<vmem>>) attributes {dimension_semantics = [#tpu.dimension_semantics<arbitrary>], iteration_bounds = array<i64: 1>, scalar_prefetch = 0 : i64, scratch_operands = 4 : i64, tpu.core_type = #tpu.core_type<tc>, window_params = [{transform_indices = @transform_0, window_bounds = array<i64: 8, 8, 128>}, {pipeline_mode = #tpu.pipeline_mode<synchronous>, transform_indices = @transform_1, window_bounds = array<i64: 2, 128, 512>}, {pipeline_mode = #tpu.pipeline_mode<synchronous>, transform_indices = @transform_2, window_bounds = array<i64: 2, 128, 512>}, {pipeline_mode = #tpu.pipeline_mode<synchronous>, transform_indices = @transform_3, window_bounds = array<i64: 2, 1, 512>}, {pipeline_mode = #tpu.pipeline_mode<synchronous>, transform_indices = @transform_4, window_bounds = array<i64: 2, 8, 128>}, {pipeline_mode = #tpu.pipeline_mode<synchronous>, transform_indices = @transform_5, window_bounds = array<i64: 2, 8, 128>}]} {
    %c0_i32 = arith.constant 0 : i32
    %0 = arith.cmpi eq, %arg0, %c0_i32 : i32
    %1 = arith.extui %0 : i1 to i32
    %c0_i32_0 = arith.constant 0 : i32
    %2 = arith.cmpi ne, %1, %c0_i32_0 : i32
    scf.if %2 {
      %cst_267 = arith.constant 0.000000e+00 : f32
      %627 = vector.broadcast %cst_267 : f32 to vector<2x8x128xf32>
      %c0_268 = arith.constant 0 : index
      %c0_269 = arith.constant 0 : index
      %c0_270 = arith.constant 0 : index
      %628 = vector.load %arg7[%c0_268, %c0_269, %c0_270] : memref<2x8x128xf32, #tpu.memory_space<vmem>>, vector<2x8x128xf32>
      tpu.vector_store %arg7[%c0_268, %c0_269, %c0_270], %627 {strides = array<i32>} : memref<2x8x128xf32, #tpu.memory_space<vmem>>, vector<2x8x128xf32>,
      %cst_271 = arith.constant 0.000000e+00 : f32
      %629 = vector.broadcast %cst_271 : f32 to vector<2x8x128xf32>
      %c0_272 = arith.constant 0 : index
      %c0_273 = arith.constant 0 : index
      %c0_274 = arith.constant 0 : index
      %630 = vector.load %arg8[%c0_272, %c0_273, %c0_274] : memref<2x8x128xf32, #tpu.memory_space<vmem>>, vector<2x8x128xf32>
      tpu.vector_store %arg8[%c0_272, %c0_273, %c0_274], %629 {strides = array<i32>} : memref<2x8x128xf32, #tpu.memory_space<vmem>>, vector<2x8x128xf32>,
    } else {
    }
    %c0 = arith.constant 0 : index
    %c0_1 = arith.constant 0 : index
    %c0_2 = arith.constant 0 : index
    %3 = vector.load %arg1[%c0, %c0_1, %c0_2] : memref<8x8x128xf32, #tpu.memory_space<vmem>>, vector<8x8x128xf32>
    %4 = vector.shape_cast %3 : vector<8x8x128xf32> to vector<64x128xf32>
    %c0_3 = arith.constant 0 : index
    %c0_4 = arith.constant 0 : index
    %c0_5 = arith.constant 0 : index
    %5 = vector.load %arg2[%c0_3, %c0_4, %c0_5] : memref<2x128x512xf32, #tpu.memory_space<vmem>>, vector<1x128x512xf32>
    %6 = vector.shape_cast %5 : vector<1x128x512xf32> to vector<128x512xf32>
    %c0_6 = arith.constant 0 : index
    %c0_7 = arith.constant 0 : index
    %c0_8 = arith.constant 0 : index
    %7 = vector.load %arg3[%c0_6, %c0_7, %c0_8] : memref<2x128x512xf32, #tpu.memory_space<vmem>>, vector<1x128x512xf32>
    %8 = vector.shape_cast %7 : vector<1x128x512xf32> to vector<128x512xf32>
    %c0_9 = arith.constant 0 : index
    %c0_10 = arith.constant 0 : index
    %c0_11 = arith.constant 0 : index
    %9 = vector.load %arg4[%c0_9, %c0_10, %c0_11] : memref<2x1x512xf32, #tpu.memory_space<vmem>>, vector<1x1x512xf32>
    %10 = vector.shape_cast %9 : vector<1x1x512xf32> to vector<1x512xf32>
    %cst = arith.constant dense<0.000000e+00> : vector<64x512xf32>
    %11 = tpu.matmul %4, %6, %cst {dimension_numbers = #tpu.dot_dimension_numbers<[1], [0], [0], [1], [0, 0, 1, 1], [], []>} : vector<64x128xf32>, vector<128x512xf32>, vector<64x512xf32> -> vector<64x512xf32>
    %12 = vector.broadcast %10 : vector<1x512xf32> to vector<64x512xf32>
    %13 = arith.addf %11, %12 : vector<64x512xf32>
    %c0_12 = arith.constant 0 : index
    %c0_13 = arith.constant 0 : index
    %14 = vector.load %arg10[%c0_12, %c0_13] : memref<64x512xf32, #tpu.memory_space<vmem>>, vector<64x512xf32>
    tpu.vector_store %arg10[%c0_12, %c0_13], %13 {strides = array<i32>} : memref<64x512xf32, #tpu.memory_space<vmem>>, vector<64x512xf32>,
    %c0_14 = arith.constant 0 : index
    %c0_15 = arith.constant 0 : index
    %c0_16 = arith.constant 0 : index
    %15 = vector.load %arg7[%c0_14, %c0_15, %c0_16] : memref<2x8x128xf32, #tpu.memory_space<vmem>>, vector<1x8x128xf32>
    %16 = vector.shape_cast %15 : vector<1x8x128xf32> to vector<8x128xf32>
    %c0_17 = arith.constant 0 : index
    %c0_18 = arith.constant 0 : index
    %c0_19 = arith.constant 0 : index
    %17 = vector.load %arg8[%c0_17, %c0_18, %c0_19] : memref<2x8x128xf32, #tpu.memory_space<vmem>>, vector<1x8x128xf32>
    %18 = vector.shape_cast %17 : vector<1x8x128xf32> to vector<8x128xf32>
    %c0_20 = arith.constant 0 : index
    %c0_21 = arith.constant 0 : index
    %19 = vector.load %arg10[%c0_20, %c0_21] : memref<64x512xf32, #tpu.memory_space<vmem>>, vector<8x512xf32>
    %cst_22 = arith.constant dense<0.000000e+00> : vector<8x512xf32>
    %20 = tpu.matmul %16, %8, %cst_22 {dimension_numbers = #tpu.dot_dimension_numbers<[1], [0], [0], [1], [0, 0, 1, 1], [], []>} : vector<8x128xf32>, vector<128x512xf32>, vector<8x512xf32> -> vector<8x512xf32>
    %21 = arith.addf %19, %20 : vector<8x512xf32>
    %22 = vector.extract_strided_slice %21 {offsets = [0, 0], sizes = [8, 128], strides = [1, 1]} : vector<8x512xf32> to vector<8x128xf32>
    %cst_23 = arith.constant 5.000000e-01 : f32
    %23 = vector.broadcast %cst_23 : f32 to vector<8x128xf32>
    %24 = arith.mulf %23, %22 : vector<8x128xf32>
    %25 = math.tanh %24 : vector<8x128xf32>
    %cst_24 = arith.constant 5.000000e-01 : f32
    %26 = vector.broadcast %cst_24 : f32 to vector<8x128xf32>
    %27 = arith.mulf %26, %25 : vector<8x128xf32>
    %cst_25 = arith.constant 5.000000e-01 : f32
    %28 = vector.broadcast %cst_25 : f32 to vector<8x128xf32>
    %29 = arith.addf %27, %28 : vector<8x128xf32>
    %30 = vector.extract_strided_slice %21 {offsets = [0, 128], sizes = [8, 128], strides = [1, 1]} : vector<8x512xf32> to vector<8x128xf32>
    %cst_26 = arith.constant 5.000000e-01 : f32
    %31 = vector.broadcast %cst_26 : f32 to vector<8x128xf32>
    %32 = arith.mulf %31, %30 : vector<8x128xf32>
    %33 = math.tanh %32 : vector<8x128xf32>
    %cst_27 = arith.constant 5.000000e-01 : f32
    %34 = vector.broadcast %cst_27 : f32 to vector<8x128xf32>
    %35 = arith.mulf %34, %33 : vector<8x128xf32>
    %cst_28 = arith.constant 5.000000e-01 : f32
    %36 = vector.broadcast %cst_28 : f32 to vector<8x128xf32>
    %37 = arith.addf %35, %36 : vector<8x128xf32>
    %38 = vector.extract_strided_slice %21 {offsets = [0, 256], sizes = [8, 128], strides = [1, 1]} : vector<8x512xf32> to vector<8x128xf32>
    %39 = math.tanh %38 : vector<8x128xf32>
    %40 = vector.extract_strided_slice %21 {offsets = [0, 384], sizes = [8, 128], strides = [1, 1]} : vector<8x512xf32> to vector<8x128xf32>
    %cst_29 = arith.constant 5.000000e-01 : f32
    %41 = vector.broadcast %cst_29 : f32 to vector<8x128xf32>
    %42 = arith.mulf %41, %40 : vector<8x128xf32>
    %43 = math.tanh %42 : vector<8x128xf32>
    %cst_30 = arith.constant 5.000000e-01 : f32
    %44 = vector.broadcast %cst_30 : f32 to vector<8x128xf32>
    %45 = arith.mulf %44, %43 : vector<8x128xf32>
    %cst_31 = arith.constant 5.000000e-01 : f32
    %46 = vector.broadcast %cst_31 : f32 to vector<8x128xf32>
    %47 = arith.addf %45, %46 : vector<8x128xf32>
    %48 = arith.mulf %37, %18 : vector<8x128xf32>
    %49 = arith.mulf %29, %39 : vector<8x128xf32>
    %50 = arith.addf %48, %49 : vector<8x128xf32>
    %51 = math.tanh %50 : vector<8x128xf32>
    %52 = arith.mulf %47, %51 : vector<8x128xf32>
    %c0_32 = arith.constant 0 : index
    %c0_33 = arith.constant 0 : index
    %c0_34 = arith.constant 0 : index
    %53 = vector.load %arg9[%c0_32, %c0_33, %c0_34] : memref<8x8x128xf32, #tpu.memory_space<vmem>>, vector<1x8x128xf32>
    %54 = vector.shape_cast %53 : vector<1x8x128xf32> to vector<8x128xf32>
    %55 = vector.shape_cast %52 : vector<8x128xf32> to vector<1x8x128xf32>
    tpu.vector_store %arg9[%c0_32, %c0_33, %c0_34], %55 {strides = array<i32>} : memref<8x8x128xf32, #tpu.memory_space<vmem>>, vector<1x8x128xf32>,
    %c8 = arith.constant 8 : index
    %c0_35 = arith.constant 0 : index
    %56 = vector.load %arg10[%c8, %c0_35] : memref<64x512xf32, #tpu.memory_space<vmem>>, vector<8x512xf32>
    %cst_36 = arith.constant dense<0.000000e+00> : vector<8x512xf32>
    %57 = tpu.matmul %52, %8, %cst_36 {dimension_numbers = #tpu.dot_dimension_numbers<[1], [0], [0], [1], [0, 0, 1, 1], [], []>} : vector<8x128xf32>, vector<128x512xf32>, vector<8x512xf32> -> vector<8x512xf32>
    %58 = arith.addf %56, %57 : vector<8x512xf32>
    %59 = vector.extract_strided_slice %58 {offsets = [0, 0], sizes = [8, 128], strides = [1, 1]} : vector<8x512xf32> to vector<8x128xf32>
    %cst_37 = arith.constant 5.000000e-01 : f32
    %60 = vector.broadcast %cst_37 : f32 to vector<8x128xf32>
    %61 = arith.mulf %60, %59 : vector<8x128xf32>
    %62 = math.tanh %61 : vector<8x128xf32>
    %cst_38 = arith.constant 5.000000e-01 : f32
    %63 = vector.broadcast %cst_38 : f32 to vector<8x128xf32>
    %64 = arith.mulf %63, %62 : vector<8x128xf32>
    %cst_39 = arith.constant 5.000000e-01 : f32
    %65 = vector.broadcast %cst_39 : f32 to vector<8x128xf32>
    %66 = arith.addf %64, %65 : vector<8x128xf32>
    %67 = vector.extract_strided_slice %58 {offsets = [0, 128], sizes = [8, 128], strides = [1, 1]} : vector<8x512xf32> to vector<8x128xf32>
    %cst_40 = arith.constant 5.000000e-01 : f32
    %68 = vector.broadcast %cst_40 : f32 to vector<8x128xf32>
    %69 = arith.mulf %68, %67 : vector<8x128xf32>
    %70 = math.tanh %69 : vector<8x128xf32>
    %cst_41 = arith.constant 5.000000e-01 : f32
    %71 = vector.broadcast %cst_41 : f32 to vector<8x128xf32>
    %72 = arith.mulf %71, %70 : vector<8x128xf32>
    %cst_42 = arith.constant 5.000000e-01 : f32
    %73 = vector.broadcast %cst_42 : f32 to vector<8x128xf32>
    %74 = arith.addf %72, %73 : vector<8x128xf32>
    %75 = vector.extract_strided_slice %58 {offsets = [0, 256], sizes = [8, 128], strides = [1, 1]} : vector<8x512xf32> to vector<8x128xf32>
    %76 = math.tanh %75 : vector<8x128xf32>
    %77 = vector.extract_strided_slice %58 {offsets = [0, 384], sizes = [8, 128], strides = [1, 1]} : vector<8x512xf32> to vector<8x128xf32>
    %cst_43 = arith.constant 5.000000e-01 : f32
    %78 = vector.broadcast %cst_43 : f32 to vector<8x128xf32>
    %79 = arith.mulf %78, %77 : vector<8x128xf32>
    %80 = math.tanh %79 : vector<8x128xf32>
    %cst_44 = arith.constant 5.000000e-01 : f32
    %81 = vector.broadcast %cst_44 : f32 to vector<8x128xf32>
    %82 = arith.mulf %81, %80 : vector<8x128xf32>
    %cst_45 = arith.constant 5.000000e-01 : f32
    %83 = vector.broadcast %cst_45 : f32 to vector<8x128xf32>
    %84 = arith.addf %82, %83 : vector<8x128xf32>
    %85 = arith.mulf %74, %50 : vector<8x128xf32>
    %86 = arith.mulf %66, %76 : vector<8x128xf32>
    %87 = arith.addf %85, %86 : vector<8x128xf32>
    %88 = math.tanh %87 : vector<8x128xf32>
    %89 = arith.mulf %84, %88 : vector<8x128xf32>
    %c1 = arith.constant 1 : index
    %c0_46 = arith.constant 0 : index
    %c0_47 = arith.constant 0 : index
    %90 = vector.load %arg9[%c1, %c0_46, %c0_47] : memref<8x8x128xf32, #tpu.memory_space<vmem>>, vector<1x8x128xf32>
    %91 = vector.shape_cast %90 : vector<1x8x128xf32> to vector<8x128xf32>
    %92 = vector.shape_cast %89 : vector<8x128xf32> to vector<1x8x128xf32>
    tpu.vector_store %arg9[%c1, %c0_46, %c0_47], %92 {strides = array<i32>} : memref<8x8x128xf32, #tpu.memory_space<vmem>>, vector<1x8x128xf32>,
    %c16 = arith.constant 16 : index
    %c0_48 = arith.constant 0 : index
    %93 = vector.load %arg10[%c16, %c0_48] : memref<64x512xf32, #tpu.memory_space<vmem>>, vector<8x512xf32>
    %cst_49 = arith.constant dense<0.000000e+00> : vector<8x512xf32>
    %94 = tpu.matmul %89, %8, %cst_49 {dimension_numbers = #tpu.dot_dimension_numbers<[1], [0], [0], [1], [0, 0, 1, 1], [], []>} : vector<8x128xf32>, vector<128x512xf32>, vector<8x512xf32> -> vector<8x512xf32>
    %95 = arith.addf %93, %94 : vector<8x512xf32>
    %96 = vector.extract_strided_slice %95 {offsets = [0, 0], sizes = [8, 128], strides = [1, 1]} : vector<8x512xf32> to vector<8x128xf32>
    %cst_50 = arith.constant 5.000000e-01 : f32
    %97 = vector.broadcast %cst_50 : f32 to vector<8x128xf32>
    %98 = arith.mulf %97, %96 : vector<8x128xf32>
    %99 = math.tanh %98 : vector<8x128xf32>
    %cst_51 = arith.constant 5.000000e-01 : f32
    %100 = vector.broadcast %cst_51 : f32 to vector<8x128xf32>
    %101 = arith.mulf %100, %99 : vector<8x128xf32>
    %cst_52 = arith.constant 5.000000e-01 : f32
    %102 = vector.broadcast %cst_52 : f32 to vector<8x128xf32>
    %103 = arith.addf %101, %102 : vector<8x128xf32>
    %104 = vector.extract_strided_slice %95 {offsets = [0, 128], sizes = [8, 128], strides = [1, 1]} : vector<8x512xf32> to vector<8x128xf32>
    %cst_53 = arith.constant 5.000000e-01 : f32
    %105 = vector.broadcast %cst_53 : f32 to vector<8x128xf32>
    %106 = arith.mulf %105, %104 : vector<8x128xf32>
    %107 = math.tanh %106 : vector<8x128xf32>
    %cst_54 = arith.constant 5.000000e-01 : f32
    %108 = vector.broadcast %cst_54 : f32 to vector<8x128xf32>
    %109 = arith.mulf %108, %107 : vector<8x128xf32>
    %cst_55 = arith.constant 5.000000e-01 : f32
    %110 = vector.broadcast %cst_55 : f32 to vector<8x128xf32>
    %111 = arith.addf %109, %110 : vector<8x128xf32>
    %112 = vector.extract_strided_slice %95 {offsets = [0, 256], sizes = [8, 128], strides = [1, 1]} : vector<8x512xf32> to vector<8x128xf32>
    %113 = math.tanh %112 : vector<8x128xf32>
    %114 = vector.extract_strided_slice %95 {offsets = [0, 384], sizes = [8, 128], strides = [1, 1]} : vector<8x512xf32> to vector<8x128xf32>
    %cst_56 = arith.constant 5.000000e-01 : f32
    %115 = vector.broadcast %cst_56 : f32 to vector<8x128xf32>
    %116 = arith.mulf %115, %114 : vector<8x128xf32>
    %117 = math.tanh %116 : vector<8x128xf32>
    %cst_57 = arith.constant 5.000000e-01 : f32
    %118 = vector.broadcast %cst_57 : f32 to vector<8x128xf32>
    %119 = arith.mulf %118, %117 : vector<8x128xf32>
    %cst_58 = arith.constant 5.000000e-01 : f32
    %120 = vector.broadcast %cst_58 : f32 to vector<8x128xf32>
    %121 = arith.addf %119, %120 : vector<8x128xf32>
    %122 = arith.mulf %111, %87 : vector<8x128xf32>
    %123 = arith.mulf %103, %113 : vector<8x128xf32>
    %124 = arith.addf %122, %123 : vector<8x128xf32>
    %125 = math.tanh %124 : vector<8x128xf32>
    %126 = arith.mulf %121, %125 : vector<8x128xf32>
    %c2 = arith.constant 2 : index
    %c0_59 = arith.constant 0 : index
    %c0_60 = arith.constant 0 : index
    %127 = vector.load %arg9[%c2, %c0_59, %c0_60] : memref<8x8x128xf32, #tpu.memory_space<vmem>>, vector<1x8x128xf32>
    %128 = vector.shape_cast %127 : vector<1x8x128xf32> to vector<8x128xf32>
    %129 = vector.shape_cast %126 : vector<8x128xf32> to vector<1x8x128xf32>
    tpu.vector_store %arg9[%c2, %c0_59, %c0_60], %129 {strides = array<i32>} : memref<8x8x128xf32, #tpu.memory_space<vmem>>, vector<1x8x128xf32>,
    %c24 = arith.constant 24 : index
    %c0_61 = arith.constant 0 : index
    %130 = vector.load %arg10[%c24, %c0_61] : memref<64x512xf32, #tpu.memory_space<vmem>>, vector<8x512xf32>
    %cst_62 = arith.constant dense<0.000000e+00> : vector<8x512xf32>
    %131 = tpu.matmul %126, %8, %cst_62 {dimension_numbers = #tpu.dot_dimension_numbers<[1], [0], [0], [1], [0, 0, 1, 1], [], []>} : vector<8x128xf32>, vector<128x512xf32>, vector<8x512xf32> -> vector<8x512xf32>
    %132 = arith.addf %130, %131 : vector<8x512xf32>
    %133 = vector.extract_strided_slice %132 {offsets = [0, 0], sizes = [8, 128], strides = [1, 1]} : vector<8x512xf32> to vector<8x128xf32>
    %cst_63 = arith.constant 5.000000e-01 : f32
    %134 = vector.broadcast %cst_63 : f32 to vector<8x128xf32>
    %135 = arith.mulf %134, %133 : vector<8x128xf32>
    %136 = math.tanh %135 : vector<8x128xf32>
    %cst_64 = arith.constant 5.000000e-01 : f32
    %137 = vector.broadcast %cst_64 : f32 to vector<8x128xf32>
    %138 = arith.mulf %137, %136 : vector<8x128xf32>
    %cst_65 = arith.constant 5.000000e-01 : f32
    %139 = vector.broadcast %cst_65 : f32 to vector<8x128xf32>
    %140 = arith.addf %138, %139 : vector<8x128xf32>
    %141 = vector.extract_strided_slice %132 {offsets = [0, 128], sizes = [8, 128], strides = [1, 1]} : vector<8x512xf32> to vector<8x128xf32>
    %cst_66 = arith.constant 5.000000e-01 : f32
    %142 = vector.broadcast %cst_66 : f32 to vector<8x128xf32>
    %143 = arith.mulf %142, %141 : vector<8x128xf32>
    %144 = math.tanh %143 : vector<8x128xf32>
    %cst_67 = arith.constant 5.000000e-01 : f32
    %145 = vector.broadcast %cst_67 : f32 to vector<8x128xf32>
    %146 = arith.mulf %145, %144 : vector<8x128xf32>
    %cst_68 = arith.constant 5.000000e-01 : f32
    %147 = vector.broadcast %cst_68 : f32 to vector<8x128xf32>
    %148 = arith.addf %146, %147 : vector<8x128xf32>
    %149 = vector.extract_strided_slice %132 {offsets = [0, 256], sizes = [8, 128], strides = [1, 1]} : vector<8x512xf32> to vector<8x128xf32>
    %150 = math.tanh %149 : vector<8x128xf32>
    %151 = vector.extract_strided_slice %132 {offsets = [0, 384], sizes = [8, 128], strides = [1, 1]} : vector<8x512xf32> to vector<8x128xf32>
    %cst_69 = arith.constant 5.000000e-01 : f32
    %152 = vector.broadcast %cst_69 : f32 to vector<8x128xf32>
    %153 = arith.mulf %152, %151 : vector<8x128xf32>
    %154 = math.tanh %153 : vector<8x128xf32>
    %cst_70 = arith.constant 5.000000e-01 : f32
    %155 = vector.broadcast %cst_70 : f32 to vector<8x128xf32>
    %156 = arith.mulf %155, %154 : vector<8x128xf32>
    %cst_71 = arith.constant 5.000000e-01 : f32
    %157 = vector.broadcast %cst_71 : f32 to vector<8x128xf32>
    %158 = arith.addf %156, %157 : vector<8x128xf32>
    %159 = arith.mulf %148, %124 : vector<8x128xf32>
    %160 = arith.mulf %140, %150 : vector<8x128xf32>
    %161 = arith.addf %159, %160 : vector<8x128xf32>
    %162 = math.tanh %161 : vector<8x128xf32>
    %163 = arith.mulf %158, %162 : vector<8x128xf32>
    %c3 = arith.constant 3 : index
    %c0_72 = arith.constant 0 : index
    %c0_73 = arith.constant 0 : index
    %164 = vector.load %arg9[%c3, %c0_72, %c0_73] : memref<8x8x128xf32, #tpu.memory_space<vmem>>, vector<1x8x128xf32>
    %165 = vector.shape_cast %164 : vector<1x8x128xf32> to vector<8x128xf32>
    %166 = vector.shape_cast %163 : vector<8x128xf32> to vector<1x8x128xf32>
    tpu.vector_store %arg9[%c3, %c0_72, %c0_73], %166 {strides = array<i32>} : memref<8x8x128xf32, #tpu.memory_space<vmem>>, vector<1x8x128xf32>,
    %c32 = arith.constant 32 : index
    %c0_74 = arith.constant 0 : index
    %167 = vector.load %arg10[%c32, %c0_74] : memref<64x512xf32, #tpu.memory_space<vmem>>, vector<8x512xf32>
    %cst_75 = arith.constant dense<0.000000e+00> : vector<8x512xf32>
    %168 = tpu.matmul %163, %8, %cst_75 {dimension_numbers = #tpu.dot_dimension_numbers<[1], [0], [0], [1], [0, 0, 1, 1], [], []>} : vector<8x128xf32>, vector<128x512xf32>, vector<8x512xf32> -> vector<8x512xf32>
    %169 = arith.addf %167, %168 : vector<8x512xf32>
    %170 = vector.extract_strided_slice %169 {offsets = [0, 0], sizes = [8, 128], strides = [1, 1]} : vector<8x512xf32> to vector<8x128xf32>
    %cst_76 = arith.constant 5.000000e-01 : f32
    %171 = vector.broadcast %cst_76 : f32 to vector<8x128xf32>
    %172 = arith.mulf %171, %170 : vector<8x128xf32>
    %173 = math.tanh %172 : vector<8x128xf32>
    %cst_77 = arith.constant 5.000000e-01 : f32
    %174 = vector.broadcast %cst_77 : f32 to vector<8x128xf32>
    %175 = arith.mulf %174, %173 : vector<8x128xf32>
    %cst_78 = arith.constant 5.000000e-01 : f32
    %176 = vector.broadcast %cst_78 : f32 to vector<8x128xf32>
    %177 = arith.addf %175, %176 : vector<8x128xf32>
    %178 = vector.extract_strided_slice %169 {offsets = [0, 128], sizes = [8, 128], strides = [1, 1]} : vector<8x512xf32> to vector<8x128xf32>
    %cst_79 = arith.constant 5.000000e-01 : f32
    %179 = vector.broadcast %cst_79 : f32 to vector<8x128xf32>
    %180 = arith.mulf %179, %178 : vector<8x128xf32>
    %181 = math.tanh %180 : vector<8x128xf32>
    %cst_80 = arith.constant 5.000000e-01 : f32
    %182 = vector.broadcast %cst_80 : f32 to vector<8x128xf32>
    %183 = arith.mulf %182, %181 : vector<8x128xf32>
    %cst_81 = arith.constant 5.000000e-01 : f32
    %184 = vector.broadcast %cst_81 : f32 to vector<8x128xf32>
    %185 = arith.addf %183, %184 : vector<8x128xf32>
    %186 = vector.extract_strided_slice %169 {offsets = [0, 256], sizes = [8, 128], strides = [1, 1]} : vector<8x512xf32> to vector<8x128xf32>
    %187 = math.tanh %186 : vector<8x128xf32>
    %188 = vector.extract_strided_slice %169 {offsets = [0, 384], sizes = [8, 128], strides = [1, 1]} : vector<8x512xf32> to vector<8x128xf32>
    %cst_82 = arith.constant 5.000000e-01 : f32
    %189 = vector.broadcast %cst_82 : f32 to vector<8x128xf32>
    %190 = arith.mulf %189, %188 : vector<8x128xf32>
    %191 = math.tanh %190 : vector<8x128xf32>
    %cst_83 = arith.constant 5.000000e-01 : f32
    %192 = vector.broadcast %cst_83 : f32 to vector<8x128xf32>
    %193 = arith.mulf %192, %191 : vector<8x128xf32>
    %cst_84 = arith.constant 5.000000e-01 : f32
    %194 = vector.broadcast %cst_84 : f32 to vector<8x128xf32>
    %195 = arith.addf %193, %194 : vector<8x128xf32>
    %196 = arith.mulf %185, %161 : vector<8x128xf32>
    %197 = arith.mulf %177, %187 : vector<8x128xf32>
    %198 = arith.addf %196, %197 : vector<8x128xf32>
    %199 = math.tanh %198 : vector<8x128xf32>
    %200 = arith.mulf %195, %199 : vector<8x128xf32>
    %c4 = arith.constant 4 : index
    %c0_85 = arith.constant 0 : index
    %c0_86 = arith.constant 0 : index
    %201 = vector.load %arg9[%c4, %c0_85, %c0_86] : memref<8x8x128xf32, #tpu.memory_space<vmem>>, vector<1x8x128xf32>
    %202 = vector.shape_cast %201 : vector<1x8x128xf32> to vector<8x128xf32>
    %203 = vector.shape_cast %200 : vector<8x128xf32> to vector<1x8x128xf32>
    tpu.vector_store %arg9[%c4, %c0_85, %c0_86], %203 {strides = array<i32>} : memref<8x8x128xf32, #tpu.memory_space<vmem>>, vector<1x8x128xf32>,
    %c40 = arith.constant 40 : index
    %c0_87 = arith.constant 0 : index
    %204 = vector.load %arg10[%c40, %c0_87] : memref<64x512xf32, #tpu.memory_space<vmem>>, vector<8x512xf32>
    %cst_88 = arith.constant dense<0.000000e+00> : vector<8x512xf32>
    %205 = tpu.matmul %200, %8, %cst_88 {dimension_numbers = #tpu.dot_dimension_numbers<[1], [0], [0], [1], [0, 0, 1, 1], [], []>} : vector<8x128xf32>, vector<128x512xf32>, vector<8x512xf32> -> vector<8x512xf32>
    %206 = arith.addf %204, %205 : vector<8x512xf32>
    %207 = vector.extract_strided_slice %206 {offsets = [0, 0], sizes = [8, 128], strides = [1, 1]} : vector<8x512xf32> to vector<8x128xf32>
    %cst_89 = arith.constant 5.000000e-01 : f32
    %208 = vector.broadcast %cst_89 : f32 to vector<8x128xf32>
    %209 = arith.mulf %208, %207 : vector<8x128xf32>
    %210 = math.tanh %209 : vector<8x128xf32>
    %cst_90 = arith.constant 5.000000e-01 : f32
    %211 = vector.broadcast %cst_90 : f32 to vector<8x128xf32>
    %212 = arith.mulf %211, %210 : vector<8x128xf32>
    %cst_91 = arith.constant 5.000000e-01 : f32
    %213 = vector.broadcast %cst_91 : f32 to vector<8x128xf32>
    %214 = arith.addf %212, %213 : vector<8x128xf32>
    %215 = vector.extract_strided_slice %206 {offsets = [0, 128], sizes = [8, 128], strides = [1, 1]} : vector<8x512xf32> to vector<8x128xf32>
    %cst_92 = arith.constant 5.000000e-01 : f32
    %216 = vector.broadcast %cst_92 : f32 to vector<8x128xf32>
    %217 = arith.mulf %216, %215 : vector<8x128xf32>
    %218 = math.tanh %217 : vector<8x128xf32>
    %cst_93 = arith.constant 5.000000e-01 : f32
    %219 = vector.broadcast %cst_93 : f32 to vector<8x128xf32>
    %220 = arith.mulf %219, %218 : vector<8x128xf32>
    %cst_94 = arith.constant 5.000000e-01 : f32
    %221 = vector.broadcast %cst_94 : f32 to vector<8x128xf32>
    %222 = arith.addf %220, %221 : vector<8x128xf32>
    %223 = vector.extract_strided_slice %206 {offsets = [0, 256], sizes = [8, 128], strides = [1, 1]} : vector<8x512xf32> to vector<8x128xf32>
    %224 = math.tanh %223 : vector<8x128xf32>
    %225 = vector.extract_strided_slice %206 {offsets = [0, 384], sizes = [8, 128], strides = [1, 1]} : vector<8x512xf32> to vector<8x128xf32>
    %cst_95 = arith.constant 5.000000e-01 : f32
    %226 = vector.broadcast %cst_95 : f32 to vector<8x128xf32>
    %227 = arith.mulf %226, %225 : vector<8x128xf32>
    %228 = math.tanh %227 : vector<8x128xf32>
    %cst_96 = arith.constant 5.000000e-01 : f32
    %229 = vector.broadcast %cst_96 : f32 to vector<8x128xf32>
    %230 = arith.mulf %229, %228 : vector<8x128xf32>
    %cst_97 = arith.constant 5.000000e-01 : f32
    %231 = vector.broadcast %cst_97 : f32 to vector<8x128xf32>
    %232 = arith.addf %230, %231 : vector<8x128xf32>
    %233 = arith.mulf %222, %198 : vector<8x128xf32>
    %234 = arith.mulf %214, %224 : vector<8x128xf32>
    %235 = arith.addf %233, %234 : vector<8x128xf32>
    %236 = math.tanh %235 : vector<8x128xf32>
    %237 = arith.mulf %232, %236 : vector<8x128xf32>
    %c5 = arith.constant 5 : index
    %c0_98 = arith.constant 0 : index
    %c0_99 = arith.constant 0 : index
    %238 = vector.load %arg9[%c5, %c0_98, %c0_99] : memref<8x8x128xf32, #tpu.memory_space<vmem>>, vector<1x8x128xf32>
    %239 = vector.shape_cast %238 : vector<1x8x128xf32> to vector<8x128xf32>
    %240 = vector.shape_cast %237 : vector<8x128xf32> to vector<1x8x128xf32>
    tpu.vector_store %arg9[%c5, %c0_98, %c0_99], %240 {strides = array<i32>} : memref<8x8x128xf32, #tpu.memory_space<vmem>>, vector<1x8x128xf32>,
    %c48 = arith.constant 48 : index
    %c0_100 = arith.constant 0 : index
    %241 = vector.load %arg10[%c48, %c0_100] : memref<64x512xf32, #tpu.memory_space<vmem>>, vector<8x512xf32>
    %cst_101 = arith.constant dense<0.000000e+00> : vector<8x512xf32>
    %242 = tpu.matmul %237, %8, %cst_101 {dimension_numbers = #tpu.dot_dimension_numbers<[1], [0], [0], [1], [0, 0, 1, 1], [], []>} : vector<8x128xf32>, vector<128x512xf32>, vector<8x512xf32> -> vector<8x512xf32>
    %243 = arith.addf %241, %242 : vector<8x512xf32>
    %244 = vector.extract_strided_slice %243 {offsets = [0, 0], sizes = [8, 128], strides = [1, 1]} : vector<8x512xf32> to vector<8x128xf32>
    %cst_102 = arith.constant 5.000000e-01 : f32
    %245 = vector.broadcast %cst_102 : f32 to vector<8x128xf32>
    %246 = arith.mulf %245, %244 : vector<8x128xf32>
    %247 = math.tanh %246 : vector<8x128xf32>
    %cst_103 = arith.constant 5.000000e-01 : f32
    %248 = vector.broadcast %cst_103 : f32 to vector<8x128xf32>
    %249 = arith.mulf %248, %247 : vector<8x128xf32>
    %cst_104 = arith.constant 5.000000e-01 : f32
    %250 = vector.broadcast %cst_104 : f32 to vector<8x128xf32>
    %251 = arith.addf %249, %250 : vector<8x128xf32>
    %252 = vector.extract_strided_slice %243 {offsets = [0, 128], sizes = [8, 128], strides = [1, 1]} : vector<8x512xf32> to vector<8x128xf32>
    %cst_105 = arith.constant 5.000000e-01 : f32
    %253 = vector.broadcast %cst_105 : f32 to vector<8x128xf32>
    %254 = arith.mulf %253, %252 : vector<8x128xf32>
    %255 = math.tanh %254 : vector<8x128xf32>
    %cst_106 = arith.constant 5.000000e-01 : f32
    %256 = vector.broadcast %cst_106 : f32 to vector<8x128xf32>
    %257 = arith.mulf %256, %255 : vector<8x128xf32>
    %cst_107 = arith.constant 5.000000e-01 : f32
    %258 = vector.broadcast %cst_107 : f32 to vector<8x128xf32>
    %259 = arith.addf %257, %258 : vector<8x128xf32>
    %260 = vector.extract_strided_slice %243 {offsets = [0, 256], sizes = [8, 128], strides = [1, 1]} : vector<8x512xf32> to vector<8x128xf32>
    %261 = math.tanh %260 : vector<8x128xf32>
    %262 = vector.extract_strided_slice %243 {offsets = [0, 384], sizes = [8, 128], strides = [1, 1]} : vector<8x512xf32> to vector<8x128xf32>
    %cst_108 = arith.constant 5.000000e-01 : f32
    %263 = vector.broadcast %cst_108 : f32 to vector<8x128xf32>
    %264 = arith.mulf %263, %262 : vector<8x128xf32>
    %265 = math.tanh %264 : vector<8x128xf32>
    %cst_109 = arith.constant 5.000000e-01 : f32
    %266 = vector.broadcast %cst_109 : f32 to vector<8x128xf32>
    %267 = arith.mulf %266, %265 : vector<8x128xf32>
    %cst_110 = arith.constant 5.000000e-01 : f32
    %268 = vector.broadcast %cst_110 : f32 to vector<8x128xf32>
    %269 = arith.addf %267, %268 : vector<8x128xf32>
    %270 = arith.mulf %259, %235 : vector<8x128xf32>
    %271 = arith.mulf %251, %261 : vector<8x128xf32>
    %272 = arith.addf %270, %271 : vector<8x128xf32>
    %273 = math.tanh %272 : vector<8x128xf32>
    %274 = arith.mulf %269, %273 : vector<8x128xf32>
    %c6 = arith.constant 6 : index
    %c0_111 = arith.constant 0 : index
    %c0_112 = arith.constant 0 : index
    %275 = vector.load %arg9[%c6, %c0_111, %c0_112] : memref<8x8x128xf32, #tpu.memory_space<vmem>>, vector<1x8x128xf32>
    %276 = vector.shape_cast %275 : vector<1x8x128xf32> to vector<8x128xf32>
    %277 = vector.shape_cast %274 : vector<8x128xf32> to vector<1x8x128xf32>
    tpu.vector_store %arg9[%c6, %c0_111, %c0_112], %277 {strides = array<i32>} : memref<8x8x128xf32, #tpu.memory_space<vmem>>, vector<1x8x128xf32>,
    %c56 = arith.constant 56 : index
    %c0_113 = arith.constant 0 : index
    %278 = vector.load %arg10[%c56, %c0_113] : memref<64x512xf32, #tpu.memory_space<vmem>>, vector<8x512xf32>
    %cst_114 = arith.constant dense<0.000000e+00> : vector<8x512xf32>
    %279 = tpu.matmul %274, %8, %cst_114 {dimension_numbers = #tpu.dot_dimension_numbers<[1], [0], [0], [1], [0, 0, 1, 1], [], []>} : vector<8x128xf32>, vector<128x512xf32>, vector<8x512xf32> -> vector<8x512xf32>
    %280 = arith.addf %278, %279 : vector<8x512xf32>
    %281 = vector.extract_strided_slice %280 {offsets = [0, 0], sizes = [8, 128], strides = [1, 1]} : vector<8x512xf32> to vector<8x128xf32>
    %cst_115 = arith.constant 5.000000e-01 : f32
    %282 = vector.broadcast %cst_115 : f32 to vector<8x128xf32>
    %283 = arith.mulf %282, %281 : vector<8x128xf32>
    %284 = math.tanh %283 : vector<8x128xf32>
    %cst_116 = arith.constant 5.000000e-01 : f32
    %285 = vector.broadcast %cst_116 : f32 to vector<8x128xf32>
    %286 = arith.mulf %285, %284 : vector<8x128xf32>
    %cst_117 = arith.constant 5.000000e-01 : f32
    %287 = vector.broadcast %cst_117 : f32 to vector<8x128xf32>
    %288 = arith.addf %286, %287 : vector<8x128xf32>
    %289 = vector.extract_strided_slice %280 {offsets = [0, 128], sizes = [8, 128], strides = [1, 1]} : vector<8x512xf32> to vector<8x128xf32>
    %cst_118 = arith.constant 5.000000e-01 : f32
    %290 = vector.broadcast %cst_118 : f32 to vector<8x128xf32>
    %291 = arith.mulf %290, %289 : vector<8x128xf32>
    %292 = math.tanh %291 : vector<8x128xf32>
    %cst_119 = arith.constant 5.000000e-01 : f32
    %293 = vector.broadcast %cst_119 : f32 to vector<8x128xf32>
    %294 = arith.mulf %293, %292 : vector<8x128xf32>
    %cst_120 = arith.constant 5.000000e-01 : f32
    %295 = vector.broadcast %cst_120 : f32 to vector<8x128xf32>
    %296 = arith.addf %294, %295 : vector<8x128xf32>
    %297 = vector.extract_strided_slice %280 {offsets = [0, 256], sizes = [8, 128], strides = [1, 1]} : vector<8x512xf32> to vector<8x128xf32>
    %298 = math.tanh %297 : vector<8x128xf32>
    %299 = vector.extract_strided_slice %280 {offsets = [0, 384], sizes = [8, 128], strides = [1, 1]} : vector<8x512xf32> to vector<8x128xf32>
    %cst_121 = arith.constant 5.000000e-01 : f32
    %300 = vector.broadcast %cst_121 : f32 to vector<8x128xf32>
    %301 = arith.mulf %300, %299 : vector<8x128xf32>
    %302 = math.tanh %301 : vector<8x128xf32>
    %cst_122 = arith.constant 5.000000e-01 : f32
    %303 = vector.broadcast %cst_122 : f32 to vector<8x128xf32>
    %304 = arith.mulf %303, %302 : vector<8x128xf32>
    %cst_123 = arith.constant 5.000000e-01 : f32
    %305 = vector.broadcast %cst_123 : f32 to vector<8x128xf32>
    %306 = arith.addf %304, %305 : vector<8x128xf32>
    %307 = arith.mulf %296, %272 : vector<8x128xf32>
    %308 = arith.mulf %288, %298 : vector<8x128xf32>
    %309 = arith.addf %307, %308 : vector<8x128xf32>
    %310 = math.tanh %309 : vector<8x128xf32>
    %311 = arith.mulf %306, %310 : vector<8x128xf32>
    %c7 = arith.constant 7 : index
    %c0_124 = arith.constant 0 : index
    %c0_125 = arith.constant 0 : index
    %312 = vector.load %arg9[%c7, %c0_124, %c0_125] : memref<8x8x128xf32, #tpu.memory_space<vmem>>, vector<1x8x128xf32>
    %313 = vector.shape_cast %312 : vector<1x8x128xf32> to vector<8x128xf32>
    %314 = vector.shape_cast %311 : vector<8x128xf32> to vector<1x8x128xf32>
    tpu.vector_store %arg9[%c7, %c0_124, %c0_125], %314 {strides = array<i32>} : memref<8x8x128xf32, #tpu.memory_space<vmem>>, vector<1x8x128xf32>,
    %c0_126 = arith.constant 0 : index
    %c0_127 = arith.constant 0 : index
    %c0_128 = arith.constant 0 : index
    %315 = vector.load %arg7[%c0_126, %c0_127, %c0_128] : memref<2x8x128xf32, #tpu.memory_space<vmem>>, vector<1x8x128xf32>
    %316 = vector.shape_cast %315 : vector<1x8x128xf32> to vector<8x128xf32>
    %317 = vector.shape_cast %311 : vector<8x128xf32> to vector<1x8x128xf32>
    tpu.vector_store %arg7[%c0_126, %c0_127, %c0_128], %317 {strides = array<i32>} : memref<2x8x128xf32, #tpu.memory_space<vmem>>, vector<1x8x128xf32>,
    %c0_129 = arith.constant 0 : index
    %c0_130 = arith.constant 0 : index
    %c0_131 = arith.constant 0 : index
    %318 = vector.load %arg8[%c0_129, %c0_130, %c0_131] : memref<2x8x128xf32, #tpu.memory_space<vmem>>, vector<1x8x128xf32>
    %319 = vector.shape_cast %318 : vector<1x8x128xf32> to vector<8x128xf32>
    %320 = vector.shape_cast %309 : vector<8x128xf32> to vector<1x8x128xf32>
    tpu.vector_store %arg8[%c0_129, %c0_130, %c0_131], %320 {strides = array<i32>} : memref<2x8x128xf32, #tpu.memory_space<vmem>>, vector<1x8x128xf32>,
    %c0_132 = arith.constant 0 : index
    %c0_133 = arith.constant 0 : index
    %c0_134 = arith.constant 0 : index
    %321 = vector.load %arg5[%c0_132, %c0_133, %c0_134] : memref<2x8x128xf32, #tpu.memory_space<vmem>>, vector<1x8x128xf32>
    %322 = vector.shape_cast %321 : vector<1x8x128xf32> to vector<8x128xf32>
    %323 = vector.shape_cast %311 : vector<8x128xf32> to vector<1x8x128xf32>
    tpu.vector_store %arg5[%c0_132, %c0_133, %c0_134], %323 {strides = array<i32>} : memref<2x8x128xf32, #tpu.memory_space<vmem>>, vector<1x8x128xf32>,
    %c0_135 = arith.constant 0 : index
    %c0_136 = arith.constant 0 : index
    %c0_137 = arith.constant 0 : index
    %324 = vector.load %arg6[%c0_135, %c0_136, %c0_137] : memref<2x8x128xf32, #tpu.memory_space<vmem>>, vector<1x8x128xf32>
    %325 = vector.shape_cast %324 : vector<1x8x128xf32> to vector<8x128xf32>
    %326 = vector.shape_cast %309 : vector<8x128xf32> to vector<1x8x128xf32>
    tpu.vector_store %arg6[%c0_135, %c0_136, %c0_137], %326 {strides = array<i32>} : memref<2x8x128xf32, #tpu.memory_space<vmem>>, vector<1x8x128xf32>,
    %c0_138 = arith.constant 0 : index
    %c0_139 = arith.constant 0 : index
    %c0_140 = arith.constant 0 : index
    %327 = vector.load %arg9[%c0_138, %c0_139, %c0_140] : memref<8x8x128xf32, #tpu.memory_space<vmem>>, vector<8x8x128xf32>
    %328 = vector.shape_cast %327 : vector<8x8x128xf32> to vector<64x128xf32>
    %c1_141 = arith.constant 1 : index
    %c0_142 = arith.constant 0 : index
    %c0_143 = arith.constant 0 : index
    %329 = vector.load %arg2[%c1_141, %c0_142, %c0_143] : memref<2x128x512xf32, #tpu.memory_space<vmem>>, vector<1x128x512xf32>
    %330 = vector.shape_cast %329 : vector<1x128x512xf32> to vector<128x512xf32>
    %c1_144 = arith.constant 1 : index
    %c0_145 = arith.constant 0 : index
    %c0_146 = arith.constant 0 : index
    %331 = vector.load %arg3[%c1_144, %c0_145, %c0_146] : memref<2x128x512xf32, #tpu.memory_space<vmem>>, vector<1x128x512xf32>
    %332 = vector.shape_cast %331 : vector<1x128x512xf32> to vector<128x512xf32>
    %c1_147 = arith.constant 1 : index
    %c0_148 = arith.constant 0 : index
    %c0_149 = arith.constant 0 : index
    %333 = vector.load %arg4[%c1_147, %c0_148, %c0_149] : memref<2x1x512xf32, #tpu.memory_space<vmem>>, vector<1x1x512xf32>
    %334 = vector.shape_cast %333 : vector<1x1x512xf32> to vector<1x512xf32>
    %cst_150 = arith.constant dense<0.000000e+00> : vector<64x512xf32>
    %335 = tpu.matmul %328, %330, %cst_150 {dimension_numbers = #tpu.dot_dimension_numbers<[1], [0], [0], [1], [0, 0, 1, 1], [], []>} : vector<64x128xf32>, vector<128x512xf32>, vector<64x512xf32> -> vector<64x512xf32>
    %336 = vector.broadcast %334 : vector<1x512xf32> to vector<64x512xf32>
    %337 = arith.addf %335, %336 : vector<64x512xf32>
    %c0_151 = arith.constant 0 : index
    %c0_152 = arith.constant 0 : index
    %338 = vector.load %arg10[%c0_151, %c0_152] : memref<64x512xf32, #tpu.memory_space<vmem>>, vector<64x512xf32>
    tpu.vector_store %arg10[%c0_151, %c0_152], %337 {strides = array<i32>} : memref<64x512xf32, #tpu.memory_space<vmem>>, vector<64x512xf32>,
    %c1_153 = arith.constant 1 : index
    %c0_154 = arith.constant 0 : index
    %c0_155 = arith.constant 0 : index
    %339 = vector.load %arg7[%c1_153, %c0_154, %c0_155] : memref<2x8x128xf32, #tpu.memory_space<vmem>>, vector<1x8x128xf32>
    %340 = vector.shape_cast %339 : vector<1x8x128xf32> to vector<8x128xf32>
    %c1_156 = arith.constant 1 : index
    %c0_157 = arith.constant 0 : index
    %c0_158 = arith.constant 0 : index
    %341 = vector.load %arg8[%c1_156, %c0_157, %c0_158] : memref<2x8x128xf32, #tpu.memory_space<vmem>>, vector<1x8x128xf32>
    %342 = vector.shape_cast %341 : vector<1x8x128xf32> to vector<8x128xf32>
    %c0_159 = arith.constant 0 : index
    %c0_160 = arith.constant 0 : index
    %343 = vector.load %arg10[%c0_159, %c0_160] : memref<64x512xf32, #tpu.memory_space<vmem>>, vector<8x512xf32>
    %cst_161 = arith.constant dense<0.000000e+00> : vector<8x512xf32>
    %344 = tpu.matmul %340, %332, %cst_161 {dimension_numbers = #tpu.dot_dimension_numbers<[1], [0], [0], [1], [0, 0, 1, 1], [], []>} : vector<8x128xf32>, vector<128x512xf32>, vector<8x512xf32> -> vector<8x512xf32>
    %345 = arith.addf %343, %344 : vector<8x512xf32>
    %346 = vector.extract_strided_slice %345 {offsets = [0, 0], sizes = [8, 128], strides = [1, 1]} : vector<8x512xf32> to vector<8x128xf32>
    %cst_162 = arith.constant 5.000000e-01 : f32
    %347 = vector.broadcast %cst_162 : f32 to vector<8x128xf32>
    %348 = arith.mulf %347, %346 : vector<8x128xf32>
    %349 = math.tanh %348 : vector<8x128xf32>
    %cst_163 = arith.constant 5.000000e-01 : f32
    %350 = vector.broadcast %cst_163 : f32 to vector<8x128xf32>
    %351 = arith.mulf %350, %349 : vector<8x128xf32>
    %cst_164 = arith.constant 5.000000e-01 : f32
    %352 = vector.broadcast %cst_164 : f32 to vector<8x128xf32>
    %353 = arith.addf %351, %352 : vector<8x128xf32>
    %354 = vector.extract_strided_slice %345 {offsets = [0, 128], sizes = [8, 128], strides = [1, 1]} : vector<8x512xf32> to vector<8x128xf32>
    %cst_165 = arith.constant 5.000000e-01 : f32
    %355 = vector.broadcast %cst_165 : f32 to vector<8x128xf32>
    %356 = arith.mulf %355, %354 : vector<8x128xf32>
    %357 = math.tanh %356 : vector<8x128xf32>
    %cst_166 = arith.constant 5.000000e-01 : f32
    %358 = vector.broadcast %cst_166 : f32 to vector<8x128xf32>
    %359 = arith.mulf %358, %357 : vector<8x128xf32>
    %cst_167 = arith.constant 5.000000e-01 : f32
    %360 = vector.broadcast %cst_167 : f32 to vector<8x128xf32>
    %361 = arith.addf %359, %360 : vector<8x128xf32>
    %362 = vector.extract_strided_slice %345 {offsets = [0, 256], sizes = [8, 128], strides = [1, 1]} : vector<8x512xf32> to vector<8x128xf32>
    %363 = math.tanh %362 : vector<8x128xf32>
    %364 = vector.extract_strided_slice %345 {offsets = [0, 384], sizes = [8, 128], strides = [1, 1]} : vector<8x512xf32> to vector<8x128xf32>
    %cst_168 = arith.constant 5.000000e-01 : f32
    %365 = vector.broadcast %cst_168 : f32 to vector<8x128xf32>
    %366 = arith.mulf %365, %364 : vector<8x128xf32>
    %367 = math.tanh %366 : vector<8x128xf32>
    %cst_169 = arith.constant 5.000000e-01 : f32
    %368 = vector.broadcast %cst_169 : f32 to vector<8x128xf32>
    %369 = arith.mulf %368, %367 : vector<8x128xf32>
    %cst_170 = arith.constant 5.000000e-01 : f32
    %370 = vector.broadcast %cst_170 : f32 to vector<8x128xf32>
    %371 = arith.addf %369, %370 : vector<8x128xf32>
    %372 = arith.mulf %361, %342 : vector<8x128xf32>
    %373 = arith.mulf %353, %363 : vector<8x128xf32>
    %374 = arith.addf %372, %373 : vector<8x128xf32>
    %375 = math.tanh %374 : vector<8x128xf32>
    %376 = arith.mulf %371, %375 : vector<8x128xf32>
    %c8_171 = arith.constant 8 : index
    %c0_172 = arith.constant 0 : index
    %377 = vector.load %arg10[%c8_171, %c0_172] : memref<64x512xf32, #tpu.memory_space<vmem>>, vector<8x512xf32>
    %cst_173 = arith.constant dense<0.000000e+00> : vector<8x512xf32>
    %378 = tpu.matmul %376, %332, %cst_173 {dimension_numbers = #tpu.dot_dimension_numbers<[1], [0], [0], [1], [0, 0, 1, 1], [], []>} : vector<8x128xf32>, vector<128x512xf32>, vector<8x512xf32> -> vector<8x512xf32>
    %379 = arith.addf %377, %378 : vector<8x512xf32>
    %380 = vector.extract_strided_slice %379 {offsets = [0, 0], sizes = [8, 128], strides = [1, 1]} : vector<8x512xf32> to vector<8x128xf32>
    %cst_174 = arith.constant 5.000000e-01 : f32
    %381 = vector.broadcast %cst_174 : f32 to vector<8x128xf32>
    %382 = arith.mulf %381, %380 : vector<8x128xf32>
    %383 = math.tanh %382 : vector<8x128xf32>
    %cst_175 = arith.constant 5.000000e-01 : f32
    %384 = vector.broadcast %cst_175 : f32 to vector<8x128xf32>
    %385 = arith.mulf %384, %383 : vector<8x128xf32>
    %cst_176 = arith.constant 5.000000e-01 : f32
    %386 = vector.broadcast %cst_176 : f32 to vector<8x128xf32>
    %387 = arith.addf %385, %386 : vector<8x128xf32>
    %388 = vector.extract_strided_slice %379 {offsets = [0, 128], sizes = [8, 128], strides = [1, 1]} : vector<8x512xf32> to vector<8x128xf32>
    %cst_177 = arith.constant 5.000000e-01 : f32
    %389 = vector.broadcast %cst_177 : f32 to vector<8x128xf32>
    %390 = arith.mulf %389, %388 : vector<8x128xf32>
    %391 = math.tanh %390 : vector<8x128xf32>
    %cst_178 = arith.constant 5.000000e-01 : f32
    %392 = vector.broadcast %cst_178 : f32 to vector<8x128xf32>
    %393 = arith.mulf %392, %391 : vector<8x128xf32>
    %cst_179 = arith.constant 5.000000e-01 : f32
    %394 = vector.broadcast %cst_179 : f32 to vector<8x128xf32>
    %395 = arith.addf %393, %394 : vector<8x128xf32>
    %396 = vector.extract_strided_slice %379 {offsets = [0, 256], sizes = [8, 128], strides = [1, 1]} : vector<8x512xf32> to vector<8x128xf32>
    %397 = math.tanh %396 : vector<8x128xf32>
    %398 = vector.extract_strided_slice %379 {offsets = [0, 384], sizes = [8, 128], strides = [1, 1]} : vector<8x512xf32> to vector<8x128xf32>
    %cst_180 = arith.constant 5.000000e-01 : f32
    %399 = vector.broadcast %cst_180 : f32 to vector<8x128xf32>
    %400 = arith.mulf %399, %398 : vector<8x128xf32>
    %401 = math.tanh %400 : vector<8x128xf32>
    %cst_181 = arith.constant 5.000000e-01 : f32
    %402 = vector.broadcast %cst_181 : f32 to vector<8x128xf32>
    %403 = arith.mulf %402, %401 : vector<8x128xf32>
    %cst_182 = arith.constant 5.000000e-01 : f32
    %404 = vector.broadcast %cst_182 : f32 to vector<8x128xf32>
    %405 = arith.addf %403, %404 : vector<8x128xf32>
    %406 = arith.mulf %395, %374 : vector<8x128xf32>
    %407 = arith.mulf %387, %397 : vector<8x128xf32>
    %408 = arith.addf %406, %407 : vector<8x128xf32>
    %409 = math.tanh %408 : vector<8x128xf32>
    %410 = arith.mulf %405, %409 : vector<8x128xf32>
    %c16_183 = arith.constant 16 : index
    %c0_184 = arith.constant 0 : index
    %411 = vector.load %arg10[%c16_183, %c0_184] : memref<64x512xf32, #tpu.memory_space<vmem>>, vector<8x512xf32>
    %cst_185 = arith.constant dense<0.000000e+00> : vector<8x512xf32>
    %412 = tpu.matmul %410, %332, %cst_185 {dimension_numbers = #tpu.dot_dimension_numbers<[1], [0], [0], [1], [0, 0, 1, 1], [], []>} : vector<8x128xf32>, vector<128x512xf32>, vector<8x512xf32> -> vector<8x512xf32>
    %413 = arith.addf %411, %412 : vector<8x512xf32>
    %414 = vector.extract_strided_slice %413 {offsets = [0, 0], sizes = [8, 128], strides = [1, 1]} : vector<8x512xf32> to vector<8x128xf32>
    %cst_186 = arith.constant 5.000000e-01 : f32
    %415 = vector.broadcast %cst_186 : f32 to vector<8x128xf32>
    %416 = arith.mulf %415, %414 : vector<8x128xf32>
    %417 = math.tanh %416 : vector<8x128xf32>
    %cst_187 = arith.constant 5.000000e-01 : f32
    %418 = vector.broadcast %cst_187 : f32 to vector<8x128xf32>
    %419 = arith.mulf %418, %417 : vector<8x128xf32>
    %cst_188 = arith.constant 5.000000e-01 : f32
    %420 = vector.broadcast %cst_188 : f32 to vector<8x128xf32>
    %421 = arith.addf %419, %420 : vector<8x128xf32>
    %422 = vector.extract_strided_slice %413 {offsets = [0, 128], sizes = [8, 128], strides = [1, 1]} : vector<8x512xf32> to vector<8x128xf32>
    %cst_189 = arith.constant 5.000000e-01 : f32
    %423 = vector.broadcast %cst_189 : f32 to vector<8x128xf32>
    %424 = arith.mulf %423, %422 : vector<8x128xf32>
    %425 = math.tanh %424 : vector<8x128xf32>
    %cst_190 = arith.constant 5.000000e-01 : f32
    %426 = vector.broadcast %cst_190 : f32 to vector<8x128xf32>
    %427 = arith.mulf %426, %425 : vector<8x128xf32>
    %cst_191 = arith.constant 5.000000e-01 : f32
    %428 = vector.broadcast %cst_191 : f32 to vector<8x128xf32>
    %429 = arith.addf %427, %428 : vector<8x128xf32>
    %430 = vector.extract_strided_slice %413 {offsets = [0, 256], sizes = [8, 128], strides = [1, 1]} : vector<8x512xf32> to vector<8x128xf32>
    %431 = math.tanh %430 : vector<8x128xf32>
    %432 = vector.extract_strided_slice %413 {offsets = [0, 384], sizes = [8, 128], strides = [1, 1]} : vector<8x512xf32> to vector<8x128xf32>
    %cst_192 = arith.constant 5.000000e-01 : f32
    %433 = vector.broadcast %cst_192 : f32 to vector<8x128xf32>
    %434 = arith.mulf %433, %432 : vector<8x128xf32>
    %435 = math.tanh %434 : vector<8x128xf32>
    %cst_193 = arith.constant 5.000000e-01 : f32
    %436 = vector.broadcast %cst_193 : f32 to vector<8x128xf32>
    %437 = arith.mulf %436, %435 : vector<8x128xf32>
    %cst_194 = arith.constant 5.000000e-01 : f32
    %438 = vector.broadcast %cst_194 : f32 to vector<8x128xf32>
    %439 = arith.addf %437, %438 : vector<8x128xf32>
    %440 = arith.mulf %429, %408 : vector<8x128xf32>
    %441 = arith.mulf %421, %431 : vector<8x128xf32>
    %442 = arith.addf %440, %441 : vector<8x128xf32>
    %443 = math.tanh %442 : vector<8x128xf32>
    %444 = arith.mulf %439, %443 : vector<8x128xf32>
    %c24_195 = arith.constant 24 : index
    %c0_196 = arith.constant 0 : index
    %445 = vector.load %arg10[%c24_195, %c0_196] : memref<64x512xf32, #tpu.memory_space<vmem>>, vector<8x512xf32>
    %cst_197 = arith.constant dense<0.000000e+00> : vector<8x512xf32>
    %446 = tpu.matmul %444, %332, %cst_197 {dimension_numbers = #tpu.dot_dimension_numbers<[1], [0], [0], [1], [0, 0, 1, 1], [], []>} : vector<8x128xf32>, vector<128x512xf32>, vector<8x512xf32> -> vector<8x512xf32>
    %447 = arith.addf %445, %446 : vector<8x512xf32>
    %448 = vector.extract_strided_slice %447 {offsets = [0, 0], sizes = [8, 128], strides = [1, 1]} : vector<8x512xf32> to vector<8x128xf32>
    %cst_198 = arith.constant 5.000000e-01 : f32
    %449 = vector.broadcast %cst_198 : f32 to vector<8x128xf32>
    %450 = arith.mulf %449, %448 : vector<8x128xf32>
    %451 = math.tanh %450 : vector<8x128xf32>
    %cst_199 = arith.constant 5.000000e-01 : f32
    %452 = vector.broadcast %cst_199 : f32 to vector<8x128xf32>
    %453 = arith.mulf %452, %451 : vector<8x128xf32>
    %cst_200 = arith.constant 5.000000e-01 : f32
    %454 = vector.broadcast %cst_200 : f32 to vector<8x128xf32>
    %455 = arith.addf %453, %454 : vector<8x128xf32>
    %456 = vector.extract_strided_slice %447 {offsets = [0, 128], sizes = [8, 128], strides = [1, 1]} : vector<8x512xf32> to vector<8x128xf32>
    %cst_201 = arith.constant 5.000000e-01 : f32
    %457 = vector.broadcast %cst_201 : f32 to vector<8x128xf32>
    %458 = arith.mulf %457, %456 : vector<8x128xf32>
    %459 = math.tanh %458 : vector<8x128xf32>
    %cst_202 = arith.constant 5.000000e-01 : f32
    %460 = vector.broadcast %cst_202 : f32 to vector<8x128xf32>
    %461 = arith.mulf %460, %459 : vector<8x128xf32>
    %cst_203 = arith.constant 5.000000e-01 : f32
    %462 = vector.broadcast %cst_203 : f32 to vector<8x128xf32>
    %463 = arith.addf %461, %462 : vector<8x128xf32>
    %464 = vector.extract_strided_slice %447 {offsets = [0, 256], sizes = [8, 128], strides = [1, 1]} : vector<8x512xf32> to vector<8x128xf32>
    %465 = math.tanh %464 : vector<8x128xf32>
    %466 = vector.extract_strided_slice %447 {offsets = [0, 384], sizes = [8, 128], strides = [1, 1]} : vector<8x512xf32> to vector<8x128xf32>
    %cst_204 = arith.constant 5.000000e-01 : f32
    %467 = vector.broadcast %cst_204 : f32 to vector<8x128xf32>
    %468 = arith.mulf %467, %466 : vector<8x128xf32>
    %469 = math.tanh %468 : vector<8x128xf32>
    %cst_205 = arith.constant 5.000000e-01 : f32
    %470 = vector.broadcast %cst_205 : f32 to vector<8x128xf32>
    %471 = arith.mulf %470, %469 : vector<8x128xf32>
    %cst_206 = arith.constant 5.000000e-01 : f32
    %472 = vector.broadcast %cst_206 : f32 to vector<8x128xf32>
    %473 = arith.addf %471, %472 : vector<8x128xf32>
    %474 = arith.mulf %463, %442 : vector<8x128xf32>
    %475 = arith.mulf %455, %465 : vector<8x128xf32>
    %476 = arith.addf %474, %475 : vector<8x128xf32>
    %477 = math.tanh %476 : vector<8x128xf32>
    %478 = arith.mulf %473, %477 : vector<8x128xf32>
    %c32_207 = arith.constant 32 : index
    %c0_208 = arith.constant 0 : index
    %479 = vector.load %arg10[%c32_207, %c0_208] : memref<64x512xf32, #tpu.memory_space<vmem>>, vector<8x512xf32>
    %cst_209 = arith.constant dense<0.000000e+00> : vector<8x512xf32>
    %480 = tpu.matmul %478, %332, %cst_209 {dimension_numbers = #tpu.dot_dimension_numbers<[1], [0], [0], [1], [0, 0, 1, 1], [], []>} : vector<8x128xf32>, vector<128x512xf32>, vector<8x512xf32> -> vector<8x512xf32>
    %481 = arith.addf %479, %480 : vector<8x512xf32>
    %482 = vector.extract_strided_slice %481 {offsets = [0, 0], sizes = [8, 128], strides = [1, 1]} : vector<8x512xf32> to vector<8x128xf32>
    %cst_210 = arith.constant 5.000000e-01 : f32
    %483 = vector.broadcast %cst_210 : f32 to vector<8x128xf32>
    %484 = arith.mulf %483, %482 : vector<8x128xf32>
    %485 = math.tanh %484 : vector<8x128xf32>
    %cst_211 = arith.constant 5.000000e-01 : f32
    %486 = vector.broadcast %cst_211 : f32 to vector<8x128xf32>
    %487 = arith.mulf %486, %485 : vector<8x128xf32>
    %cst_212 = arith.constant 5.000000e-01 : f32
    %488 = vector.broadcast %cst_212 : f32 to vector<8x128xf32>
    %489 = arith.addf %487, %488 : vector<8x128xf32>
    %490 = vector.extract_strided_slice %481 {offsets = [0, 128], sizes = [8, 128], strides = [1, 1]} : vector<8x512xf32> to vector<8x128xf32>
    %cst_213 = arith.constant 5.000000e-01 : f32
    %491 = vector.broadcast %cst_213 : f32 to vector<8x128xf32>
    %492 = arith.mulf %491, %490 : vector<8x128xf32>
    %493 = math.tanh %492 : vector<8x128xf32>
    %cst_214 = arith.constant 5.000000e-01 : f32
    %494 = vector.broadcast %cst_214 : f32 to vector<8x128xf32>
    %495 = arith.mulf %494, %493 : vector<8x128xf32>
    %cst_215 = arith.constant 5.000000e-01 : f32
    %496 = vector.broadcast %cst_215 : f32 to vector<8x128xf32>
    %497 = arith.addf %495, %496 : vector<8x128xf32>
    %498 = vector.extract_strided_slice %481 {offsets = [0, 256], sizes = [8, 128], strides = [1, 1]} : vector<8x512xf32> to vector<8x128xf32>
    %499 = math.tanh %498 : vector<8x128xf32>
    %500 = vector.extract_strided_slice %481 {offsets = [0, 384], sizes = [8, 128], strides = [1, 1]} : vector<8x512xf32> to vector<8x128xf32>
    %cst_216 = arith.constant 5.000000e-01 : f32
    %501 = vector.broadcast %cst_216 : f32 to vector<8x128xf32>
    %502 = arith.mulf %501, %500 : vector<8x128xf32>
    %503 = math.tanh %502 : vector<8x128xf32>
    %cst_217 = arith.constant 5.000000e-01 : f32
    %504 = vector.broadcast %cst_217 : f32 to vector<8x128xf32>
    %505 = arith.mulf %504, %503 : vector<8x128xf32>
    %cst_218 = arith.constant 5.000000e-01 : f32
    %506 = vector.broadcast %cst_218 : f32 to vector<8x128xf32>
    %507 = arith.addf %505, %506 : vector<8x128xf32>
    %508 = arith.mulf %497, %476 : vector<8x128xf32>
    %509 = arith.mulf %489, %499 : vector<8x128xf32>
    %510 = arith.addf %508, %509 : vector<8x128xf32>
    %511 = math.tanh %510 : vector<8x128xf32>
    %512 = arith.mulf %507, %511 : vector<8x128xf32>
    %c40_219 = arith.constant 40 : index
    %c0_220 = arith.constant 0 : index
    %513 = vector.load %arg10[%c40_219, %c0_220] : memref<64x512xf32, #tpu.memory_space<vmem>>, vector<8x512xf32>
    %cst_221 = arith.constant dense<0.000000e+00> : vector<8x512xf32>
    %514 = tpu.matmul %512, %332, %cst_221 {dimension_numbers = #tpu.dot_dimension_numbers<[1], [0], [0], [1], [0, 0, 1, 1], [], []>} : vector<8x128xf32>, vector<128x512xf32>, vector<8x512xf32> -> vector<8x512xf32>
    %515 = arith.addf %513, %514 : vector<8x512xf32>
    %516 = vector.extract_strided_slice %515 {offsets = [0, 0], sizes = [8, 128], strides = [1, 1]} : vector<8x512xf32> to vector<8x128xf32>
    %cst_222 = arith.constant 5.000000e-01 : f32
    %517 = vector.broadcast %cst_222 : f32 to vector<8x128xf32>
    %518 = arith.mulf %517, %516 : vector<8x128xf32>
    %519 = math.tanh %518 : vector<8x128xf32>
    %cst_223 = arith.constant 5.000000e-01 : f32
    %520 = vector.broadcast %cst_223 : f32 to vector<8x128xf32>
    %521 = arith.mulf %520, %519 : vector<8x128xf32>
    %cst_224 = arith.constant 5.000000e-01 : f32
    %522 = vector.broadcast %cst_224 : f32 to vector<8x128xf32>
    %523 = arith.addf %521, %522 : vector<8x128xf32>
    %524 = vector.extract_strided_slice %515 {offsets = [0, 128], sizes = [8, 128], strides = [1, 1]} : vector<8x512xf32> to vector<8x128xf32>
    %cst_225 = arith.constant 5.000000e-01 : f32
    %525 = vector.broadcast %cst_225 : f32 to vector<8x128xf32>
    %526 = arith.mulf %525, %524 : vector<8x128xf32>
    %527 = math.tanh %526 : vector<8x128xf32>
    %cst_226 = arith.constant 5.000000e-01 : f32
    %528 = vector.broadcast %cst_226 : f32 to vector<8x128xf32>
    %529 = arith.mulf %528, %527 : vector<8x128xf32>
    %cst_227 = arith.constant 5.000000e-01 : f32
    %530 = vector.broadcast %cst_227 : f32 to vector<8x128xf32>
    %531 = arith.addf %529, %530 : vector<8x128xf32>
    %532 = vector.extract_strided_slice %515 {offsets = [0, 256], sizes = [8, 128], strides = [1, 1]} : vector<8x512xf32> to vector<8x128xf32>
    %533 = math.tanh %532 : vector<8x128xf32>
    %534 = vector.extract_strided_slice %515 {offsets = [0, 384], sizes = [8, 128], strides = [1, 1]} : vector<8x512xf32> to vector<8x128xf32>
    %cst_228 = arith.constant 5.000000e-01 : f32
    %535 = vector.broadcast %cst_228 : f32 to vector<8x128xf32>
    %536 = arith.mulf %535, %534 : vector<8x128xf32>
    %537 = math.tanh %536 : vector<8x128xf32>
    %cst_229 = arith.constant 5.000000e-01 : f32
    %538 = vector.broadcast %cst_229 : f32 to vector<8x128xf32>
    %539 = arith.mulf %538, %537 : vector<8x128xf32>
    %cst_230 = arith.constant 5.000000e-01 : f32
    %540 = vector.broadcast %cst_230 : f32 to vector<8x128xf32>
    %541 = arith.addf %539, %540 : vector<8x128xf32>
    %542 = arith.mulf %531, %510 : vector<8x128xf32>
    %543 = arith.mulf %523, %533 : vector<8x128xf32>
    %544 = arith.addf %542, %543 : vector<8x128xf32>
    %545 = math.tanh %544 : vector<8x128xf32>
    %546 = arith.mulf %541, %545 : vector<8x128xf32>
    %c48_231 = arith.constant 48 : index
    %c0_232 = arith.constant 0 : index
    %547 = vector.load %arg10[%c48_231, %c0_232] : memref<64x512xf32, #tpu.memory_space<vmem>>, vector<8x512xf32>
    %cst_233 = arith.constant dense<0.000000e+00> : vector<8x512xf32>
    %548 = tpu.matmul %546, %332, %cst_233 {dimension_numbers = #tpu.dot_dimension_numbers<[1], [0], [0], [1], [0, 0, 1, 1], [], []>} : vector<8x128xf32>, vector<128x512xf32>, vector<8x512xf32> -> vector<8x512xf32>
    %549 = arith.addf %547, %548 : vector<8x512xf32>
    %550 = vector.extract_strided_slice %549 {offsets = [0, 0], sizes = [8, 128], strides = [1, 1]} : vector<8x512xf32> to vector<8x128xf32>
    %cst_234 = arith.constant 5.000000e-01 : f32
    %551 = vector.broadcast %cst_234 : f32 to vector<8x128xf32>
    %552 = arith.mulf %551, %550 : vector<8x128xf32>
    %553 = math.tanh %552 : vector<8x128xf32>
    %cst_235 = arith.constant 5.000000e-01 : f32
    %554 = vector.broadcast %cst_235 : f32 to vector<8x128xf32>
    %555 = arith.mulf %554, %553 : vector<8x128xf32>
    %cst_236 = arith.constant 5.000000e-01 : f32
    %556 = vector.broadcast %cst_236 : f32 to vector<8x128xf32>
    %557 = arith.addf %555, %556 : vector<8x128xf32>
    %558 = vector.extract_strided_slice %549 {offsets = [0, 128], sizes = [8, 128], strides = [1, 1]} : vector<8x512xf32> to vector<8x128xf32>
    %cst_237 = arith.constant 5.000000e-01 : f32
    %559 = vector.broadcast %cst_237 : f32 to vector<8x128xf32>
    %560 = arith.mulf %559, %558 : vector<8x128xf32>
    %561 = math.tanh %560 : vector<8x128xf32>
    %cst_238 = arith.constant 5.000000e-01 : f32
    %562 = vector.broadcast %cst_238 : f32 to vector<8x128xf32>
    %563 = arith.mulf %562, %561 : vector<8x128xf32>
    %cst_239 = arith.constant 5.000000e-01 : f32
    %564 = vector.broadcast %cst_239 : f32 to vector<8x128xf32>
    %565 = arith.addf %563, %564 : vector<8x128xf32>
    %566 = vector.extract_strided_slice %549 {offsets = [0, 256], sizes = [8, 128], strides = [1, 1]} : vector<8x512xf32> to vector<8x128xf32>
    %567 = math.tanh %566 : vector<8x128xf32>
    %568 = vector.extract_strided_slice %549 {offsets = [0, 384], sizes = [8, 128], strides = [1, 1]} : vector<8x512xf32> to vector<8x128xf32>
    %cst_240 = arith.constant 5.000000e-01 : f32
    %569 = vector.broadcast %cst_240 : f32 to vector<8x128xf32>
    %570 = arith.mulf %569, %568 : vector<8x128xf32>
    %571 = math.tanh %570 : vector<8x128xf32>
    %cst_241 = arith.constant 5.000000e-01 : f32
    %572 = vector.broadcast %cst_241 : f32 to vector<8x128xf32>
    %573 = arith.mulf %572, %571 : vector<8x128xf32>
    %cst_242 = arith.constant 5.000000e-01 : f32
    %574 = vector.broadcast %cst_242 : f32 to vector<8x128xf32>
    %575 = arith.addf %573, %574 : vector<8x128xf32>
    %576 = arith.mulf %565, %544 : vector<8x128xf32>
    %577 = arith.mulf %557, %567 : vector<8x128xf32>
    %578 = arith.addf %576, %577 : vector<8x128xf32>
    %579 = math.tanh %578 : vector<8x128xf32>
    %580 = arith.mulf %575, %579 : vector<8x128xf32>
    %c56_243 = arith.constant 56 : index
    %c0_244 = arith.constant 0 : index
    %581 = vector.load %arg10[%c56_243, %c0_244] : memref<64x512xf32, #tpu.memory_space<vmem>>, vector<8x512xf32>
    %cst_245 = arith.constant dense<0.000000e+00> : vector<8x512xf32>
    %582 = tpu.matmul %580, %332, %cst_245 {dimension_numbers = #tpu.dot_dimension_numbers<[1], [0], [0], [1], [0, 0, 1, 1], [], []>} : vector<8x128xf32>, vector<128x512xf32>, vector<8x512xf32> -> vector<8x512xf32>
    %583 = arith.addf %581, %582 : vector<8x512xf32>
    %584 = vector.extract_strided_slice %583 {offsets = [0, 0], sizes = [8, 128], strides = [1, 1]} : vector<8x512xf32> to vector<8x128xf32>
    %cst_246 = arith.constant 5.000000e-01 : f32
    %585 = vector.broadcast %cst_246 : f32 to vector<8x128xf32>
    %586 = arith.mulf %585, %584 : vector<8x128xf32>
    %587 = math.tanh %586 : vector<8x128xf32>
    %cst_247 = arith.constant 5.000000e-01 : f32
    %588 = vector.broadcast %cst_247 : f32 to vector<8x128xf32>
    %589 = arith.mulf %588, %587 : vector<8x128xf32>
    %cst_248 = arith.constant 5.000000e-01 : f32
    %590 = vector.broadcast %cst_248 : f32 to vector<8x128xf32>
    %591 = arith.addf %589, %590 : vector<8x128xf32>
    %592 = vector.extract_strided_slice %583 {offsets = [0, 128], sizes = [8, 128], strides = [1, 1]} : vector<8x512xf32> to vector<8x128xf32>
    %cst_249 = arith.constant 5.000000e-01 : f32
    %593 = vector.broadcast %cst_249 : f32 to vector<8x128xf32>
    %594 = arith.mulf %593, %592 : vector<8x128xf32>
    %595 = math.tanh %594 : vector<8x128xf32>
    %cst_250 = arith.constant 5.000000e-01 : f32
    %596 = vector.broadcast %cst_250 : f32 to vector<8x128xf32>
    %597 = arith.mulf %596, %595 : vector<8x128xf32>
    %cst_251 = arith.constant 5.000000e-01 : f32
    %598 = vector.broadcast %cst_251 : f32 to vector<8x128xf32>
    %599 = arith.addf %597, %598 : vector<8x128xf32>
    %600 = vector.extract_strided_slice %583 {offsets = [0, 256], sizes = [8, 128], strides = [1, 1]} : vector<8x512xf32> to vector<8x128xf32>
    %601 = math.tanh %600 : vector<8x128xf32>
    %602 = vector.extract_strided_slice %583 {offsets = [0, 384], sizes = [8, 128], strides = [1, 1]} : vector<8x512xf32> to vector<8x128xf32>
    %cst_252 = arith.constant 5.000000e-01 : f32
    %603 = vector.broadcast %cst_252 : f32 to vector<8x128xf32>
    %604 = arith.mulf %603, %602 : vector<8x128xf32>
    %605 = math.tanh %604 : vector<8x128xf32>
    %cst_253 = arith.constant 5.000000e-01 : f32
    %606 = vector.broadcast %cst_253 : f32 to vector<8x128xf32>
    %607 = arith.mulf %606, %605 : vector<8x128xf32>
    %cst_254 = arith.constant 5.000000e-01 : f32
    %608 = vector.broadcast %cst_254 : f32 to vector<8x128xf32>
    %609 = arith.addf %607, %608 : vector<8x128xf32>
    %610 = arith.mulf %599, %578 : vector<8x128xf32>
    %611 = arith.mulf %591, %601 : vector<8x128xf32>
    %612 = arith.addf %610, %611 : vector<8x128xf32>
    %613 = math.tanh %612 : vector<8x128xf32>
    %614 = arith.mulf %609, %613 : vector<8x128xf32>
    %c1_255 = arith.constant 1 : index
    %c0_256 = arith.constant 0 : index
    %c0_257 = arith.constant 0 : index
    %615 = vector.load %arg7[%c1_255, %c0_256, %c0_257] : memref<2x8x128xf32, #tpu.memory_space<vmem>>, vector<1x8x128xf32>
    %616 = vector.shape_cast %615 : vector<1x8x128xf32> to vector<8x128xf32>
    %617 = vector.shape_cast %614 : vector<8x128xf32> to vector<1x8x128xf32>
    tpu.vector_store %arg7[%c1_255, %c0_256, %c0_257], %617 {strides = array<i32>} : memref<2x8x128xf32, #tpu.memory_space<vmem>>, vector<1x8x128xf32>,
    %c1_258 = arith.constant 1 : index
    %c0_259 = arith.constant 0 : index
    %c0_260 = arith.constant 0 : index
    %618 = vector.load %arg8[%c1_258, %c0_259, %c0_260] : memref<2x8x128xf32, #tpu.memory_space<vmem>>, vector<1x8x128xf32>
    %619 = vector.shape_cast %618 : vector<1x8x128xf32> to vector<8x128xf32>
    %620 = vector.shape_cast %612 : vector<8x128xf32> to vector<1x8x128xf32>
    tpu.vector_store %arg8[%c1_258, %c0_259, %c0_260], %620 {strides = array<i32>} : memref<2x8x128xf32, #tpu.memory_space<vmem>>, vector<1x8x128xf32>,
    %c1_261 = arith.constant 1 : index
    %c0_262 = arith.constant 0 : index
    %c0_263 = arith.constant 0 : index
    %621 = vector.load %arg5[%c1_261, %c0_262, %c0_263] : memref<2x8x128xf32, #tpu.memory_space<vmem>>, vector<1x8x128xf32>
    %622 = vector.shape_cast %621 : vector<1x8x128xf32> to vector<8x128xf32>
    %623 = vector.shape_cast %614 : vector<8x128xf32> to vector<1x8x128xf32>
    tpu.vector_store %arg5[%c1_261, %c0_262, %c0_263], %623 {strides = array<i32>} : memref<2x8x128xf32, #tpu.memory_space<vmem>>, vector<1x8x128xf32>,
    %c1_264 = arith.constant 1 : index
    %c0_265 = arith.constant 0 : index
    %c0_266 = arith.constant 0 : index
    %624 = vector.load %arg6[%c1_264, %c0_265, %c0_266] : memref<2x8x128xf32, #tpu.memory_space<vmem>>, vector<1x8x128xf32>
    %625 = vector.shape_cast %624 : vector<1x8x128xf32> to vector<8x128xf32>
    %626 = vector.shape_cast %612 : vector<8x128xf32> to vector<1x8x128xf32>
    tpu.vector_store %arg6[%c1_264, %c0_265, %c0_266], %626 {strides = array<i32>} : memref<2x8x128xf32, #tpu.memory_space<vmem>>, vector<1x8x128xf32>,
    return
  }
  func.func @transform_0(%arg0: i32) -> (i32, i32, i32) {
    %c0_i32 = arith.constant 0 : i32
    %c0_i32_0 = arith.constant 0 : i32
    %c0_i32_1 = arith.constant 0 : i32
    return %arg0, %c0_i32, %c0_i32_0 : i32, i32, i32
  }
  func.func @transform_1(%arg0: i32) -> (i32, i32, i32) {
    %c0_i32 = arith.constant 0 : i32
    %c0_i32_0 = arith.constant 0 : i32
    %c0_i32_1 = arith.constant 0 : i32
    %c0_i32_2 = arith.constant 0 : i32
    return %c0_i32, %c0_i32_0, %c0_i32_1 : i32, i32, i32
  }
  func.func @transform_2(%arg0: i32) -> (i32, i32, i32) {
    %c0_i32 = arith.constant 0 : i32
    %c0_i32_0 = arith.constant 0 : i32
    %c0_i32_1 = arith.constant 0 : i32
    %c0_i32_2 = arith.constant 0 : i32
    return %c0_i32, %c0_i32_0, %c0_i32_1 : i32, i32, i32
  }
  func.func @transform_3(%arg0: i32) -> (i32, i32, i32) {
    %c0_i32 = arith.constant 0 : i32
    %c0_i32_0 = arith.constant 0 : i32
    %c0_i32_1 = arith.constant 0 : i32
    %c0_i32_2 = arith.constant 0 : i32
    return %c0_i32, %c0_i32_0, %c0_i32_1 : i32, i32, i32
  }
  func.func @transform_4(%arg0: i32) -> (i32, i32, i32) {
    %c0_i32 = arith.constant 0 : i32
    %c0_i32_0 = arith.constant 0 : i32
    %c0_i32_1 = arith.constant 0 : i32
    %c0_i32_2 = arith.constant 0 : i32
    return %c0_i32, %c0_i32_0, %c0_i32_1 : i32, i32, i32
  }
  func.func @transform_5(%arg0: i32) -> (i32, i32, i32) {
    %c0_i32 = arith.constant 0 : i32
    %c0_i32_0 = arith.constant 0 : i32
    %c0_i32_1 = arith.constant 0 : i32
    %c0_i32_2 = arith.constant 0 : i32
    return %c0_i32, %c0_i32_0, %c0_i32_1 : i32, i32, i32
  }
}

</mosaic_0001>

<llo_original>
// kernel: tpu_custom_call.1
$region0: #{tpu_custom_call.1}
  #allocation0 [shape = 'u32[]', space=smem, size = 0x4, offset = 0x4, fixed_abs, tag = 'smem constant byte address 0x4 - core index']
  #allocation1 [shape = 'u32[144,128]{1,0:T(1,128)}', space=vmem, size = 0x12000, scoped, tag = 'internal scratch']
  #allocation2 [shape = 'f32[2,8,128]{2,1,0:T(8,128)}', space=vmem, size = 0x2000, scoped, tag = 'scratch operand']
  #allocation3 [shape = 'f32[2,8,128]{2,1,0:T(8,128)}', space=vmem, size = 0x2000, scoped, tag = 'scratch operand']
  #allocation4 [shape = 'f32[8,8,128]{2,1,0:T(8,128)}', space=vmem, size = 0x8000, scoped, tag = 'scratch operand']
  #allocation5 [shape = 'f32[64,512]{1,0:T(8,128)}', space=vmem, size = 0x20000, scoped, tag = 'scratch operand']
  %s0 = inlined_call_operand.hbm [shape: f32[8,8,128], index: 0, kind: input, shape index: {}]
  %s1 = inlined_call_operand.hbm [shape: f32[2,128,512], index: 1, kind: input, shape index: {}]
  %s2 = inlined_call_operand.hbm [shape: f32[2,128,512], index: 2, kind: input, shape index: {}]
  %s3 = inlined_call_operand.vmem [shape: f32[2,1,512], index: 3, kind: input, shape index: {}]
  %s4 = inlined_call_operand.hbm [shape: f32[2,8,128], index: 4, kind: output, shape index: {0}]
  %s5 = inlined_call_operand.hbm [shape: f32[2,8,128], index: 5, kind: output, shape index: {1}]
  %6 = xla_tuple %s4, %s5
  %s7 = sld [smem:[#allocation0]]
  $region50: #{tpu_custom_call.1} parent=0
    _
  %s9 = ssub.s32 1, %s7
  %s10 = scalar_select 0, %s9, %s7
  $region1: #{tpu_custom_call.1} parent=0
    #allocation6 [shape = 'u8[32768]{0}', space=vmem, size = 0x8000, scoped, tag = 'input window, operand 0, single buffered']
    #allocation7 [shape = 's32[1]{0}', space=sflag, size = 0x4, scoped, tag = 'scoped memory for tpu_custom_call.1']
    #allocation8 [shape = 's32[1]{0}', space=sflag, size = 0x4, scoped, tag = 'scoped memory for tpu_custom_call.1']
    #allocation9 [shape = 'u8[524288]{0}', space=vmem, size = 0x80000, scoped, tag = 'input window, operand 1, single buffered']
    #allocation10 [shape = 's32[1]{0}', space=sflag, size = 0x4, scoped, tag = 'scoped memory for tpu_custom_call.1']
    #allocation11 [shape = 'u8[524288]{0}', space=vmem, size = 0x80000, scoped, tag = 'input window, operand 2, single buffered']
    #allocation12 [shape = 'u8[8192]{0}', space=vmem, size = 0x2000, scoped, tag = 'output window, operand 0, single buffered']
    #allocation13 [shape = 'u8[8192]{0}', space=vmem, size = 0x2000, scoped, tag = 'output window, operand 1, single buffered']
    #allocation14 [shape = 's32[1]{0}', space=sflag, size = 0x4, scoped, tag = 'scoped memory for tpu_custom_call.1']
    %11 = vsyncpa [#allocation7], 0
    %12 = vsyncpa [#allocation10], 0
    %13 = vsyncpa [#allocation8], 0
    %14 = vsyncpa [#allocation14], 0
    // Predicated region
    $region2: #{tpu_custom_call.1} parent=1 // pred_check
      _
    $region3: #{tpu_custom_call.1} parent=1 // pred_check_branch
      %16 = sbr.rel (0) target = $region5
    $region4: #{tpu_custom_call.1} parent=1 // pred_region
      %s18 = ssub.s32 1024, 1024
      %19 = vsyncadd [#allocation7], %s18
      %s20 = sshll.u32 [#allocation6], 4
      %s21 = int_to_ptr.vmem [resolvable:$true] %s20
      %26 = dma.hbm_to_vmem [thread:$0]  %s0, 1024, %s21, [#allocation7], 128, 128, 8
    $region5: #{tpu_custom_call.1} parent=1 // pred_fallthru
      _
    // Predicated region
    $region6: #{tpu_custom_call.1} parent=1 // pred_check
      _
    $region7: #{tpu_custom_call.1} parent=1 // pred_check_branch
      %28 = sbr.rel (0) target = $region9
    $region8: #{tpu_custom_call.1} parent=1 // pred_region
      %s30 = ssub.s32 16384, 16384
      %31 = vsyncadd [#allocation10], %s30
      %s32 = sshll.u32 [#allocation9], 4
      %s33 = int_to_ptr.vmem [resolvable:$true] %s32
      %38 = dma.hbm_to_vmem [thread:$0]  %s1, 16384, %s33, [#allocation10], 512, 512, 32
    $region9: #{tpu_custom_call.1} parent=1 // pred_fallthru
      _
    // Predicated region
    $region10: #{tpu_custom_call.1} parent=1 // pred_check
      _
    $region11: #{tpu_custom_call.1} parent=1 // pred_check_branch
      %40 = sbr.rel (0) target = $region13
    $region12: #{tpu_custom_call.1} parent=1 // pred_region
      %s42 = ssub.s32 16384, 16384
      %43 = vsyncadd [#allocation10], %s42
      %s44 = sshll.u32 [#allocation11], 4
      %s45 = int_to_ptr.vmem [resolvable:$true] %s44
      %50 = dma.hbm_to_vmem [thread:$0]  %s2, 16384, %s45, [#allocation10], 512, 512, 32
    $region13: #{tpu_custom_call.1} parent=1 // pred_fallthru
      _
    // Predicated region
    $region14: #{tpu_custom_call.1} parent=1 // pred_check
      _
    $region15: #{tpu_custom_call.1} parent=1 // pred_check_branch
      %52 = sbr.rel (0) target = $region17
    $region16: #{tpu_custom_call.1} parent=1 // pred_region
      _
    $region17: #{tpu_custom_call.1} parent=1 // pred_fallthru
      _
    // Predicated region
    $region18: #{tpu_custom_call.1} parent=1 // pred_check
      _
    $region19: #{tpu_custom_call.1} parent=1 // pred_check_branch
      %54 = sbr.rel (0) target = $region21
    $region20: #{tpu_custom_call.1} parent=1 // pred_region
      %55 = dma.done [#allocation7], 1024
    $region21: #{tpu_custom_call.1} parent=1 // pred_fallthru
      _
    // Predicated region
    $region22: #{tpu_custom_call.1} parent=1 // pred_check
      _
    $region23: #{tpu_custom_call.1} parent=1 // pred_check_branch
      %57 = sbr.rel (0) target = $region25
    $region24: #{tpu_custom_call.1} parent=1 // pred_region
      %58 = dma.done [#allocation10], 16384
    $region25: #{tpu_custom_call.1} parent=1 // pred_fallthru
      _
    // Predicated region
    $region26: #{tpu_custom_call.1} parent=1 // pred_check
      _
    $region27: #{tpu_custom_call.1} parent=1 // pred_check_branch
      %60 = sbr.rel (0) target = $region29
    $region28: #{tpu_custom_call.1} parent=1 // pred_region
      %61 = dma.done [#allocation10], 16384
    $region29: #{tpu_custom_call.1} parent=1 // pred_fallthru
      _
    %p62 = scmp.eq.s32.totalorder 0, 0
    // Predicated region
    $region30: #{tpu_custom_call.1} parent=1 // pred_check
      %p63 = pneg %p62
    $region31: #{tpu_custom_call.1} parent=1 // pred_check_branch
      %65 = sbr.rel (%p63) target = $region33
    $region32: #{tpu_custom_call.1} parent=1 // pred_region
      %66 = vst [vmem:[#allocation2] sm:$0xff] 0.0
      %67 = vst [vmem:[#allocation2 + $0x8] sm:$0xff] 0.0
      %68 = vst [vmem:[#allocation3] sm:$0xff] 0.0
      %69 = vst [vmem:[#allocation3 + $0x8] sm:$0xff] 0.0
    $region33: #{tpu_custom_call.1} parent=1 // pred_fallthru
      _
    %v70 = vld [vmem:[#allocation6] sm:$0xff]
    %v71 = vld [vmem:[#allocation6 + $0x8] sm:$0xff]
    %v72 = vld [vmem:[#allocation6 + $0x10] sm:$0xff]
    %v73 = vld [vmem:[#allocation6 + $0x18] sm:$0xff]
    %v74 = vld [vmem:[#allocation6 + $0x20] sm:$0xff]
    %v75 = vld [vmem:[#allocation6 + $0x28] sm:$0xff]
    %v76 = vld [vmem:[#allocation6 + $0x30] sm:$0xff]
    %v77 = vld [vmem:[#allocation6 + $0x38] sm:$0xff]
    %v78 = vld [vmem:[#allocation9] sm:$0xff]
    %v79 = vld [vmem:[#allocation9 + $0x8] sm:$0xff]
    %v80 = vld [vmem:[#allocation9 + $0x10] sm:$0xff]
    %v81 = vld [vmem:[#allocation9 + $0x18] sm:$0xff]
    %v82 = vld [vmem:[#allocation9 + $0x20] sm:$0xff]
    %v83 = vld [vmem:[#allocation9 + $0x28] sm:$0xff]
    %v84 = vld [vmem:[#allocation9 + $0x30] sm:$0xff]
    %v85 = vld [vmem:[#allocation9 + $0x38] sm:$0xff]
    %v86 = vld [vmem:[#allocation9 + $0x40] sm:$0xff]
    %v87 = vld [vmem:[#allocation9 + $0x48] sm:$0xff]
    %v88 = vld [vmem:[#allocation9 + $0x50] sm:$0xff]
    %v89 = vld [vmem:[#allocation9 + $0x58] sm:$0xff]
    %v90 = vld [vmem:[#allocation9 + $0x60] sm:$0xff]
    %v91 = vld [vmem:[#allocation9 + $0x68] sm:$0xff]
    %v92 = vld [vmem:[#allocation9 + $0x70] sm:$0xff]
    %v93 = vld [vmem:[#allocation9 + $0x78] sm:$0xff]
    %v94 = vld [vmem:[#allocation9 + $0x80] sm:$0xff]
    %v95 = vld [vmem:[#allocation9 + $0x88] sm:$0xff]
    %v96 = vld [vmem:[#allocation9 + $0x90] sm:$0xff]
    %v97 = vld [vmem:[#allocation9 + $0x98] sm:$0xff]
    %v98 = vld [vmem:[#allocation9 + $0xa0] sm:$0xff]
    %v99 = vld [vmem:[#allocation9 + $0xa8] sm:$0xff]
    %v100 = vld [vmem:[#allocation9 + $0xb0] sm:$0xff]
    %v101 = vld [vmem:[#allocation9 + $0xb8] sm:$0xff]
    %v102 = vld [vmem:[#allocation9 + $0xc0] sm:$0xff]
    %v103 = vld [vmem:[#allocation9 + $0xc8] sm:$0xff]
    %v104 = vld [vmem:[#allocation9 + $0xd0] sm:$0xff]
    %v105 = vld [vmem:[#allocation9 + $0xd8] sm:$0xff]
    %v106 = vld [vmem:[#allocation9 + $0xe0] sm:$0xff]
    %v107 = vld [vmem:[#allocation9 + $0xe8] sm:$0xff]
    %v108 = vld [vmem:[#allocation9 + $0xf0] sm:$0xff]
    %v109 = vld [vmem:[#allocation9 + $0xf8] sm:$0xff]
    %v110 = vld [vmem:[#allocation9 + $0x100] sm:$0xff]
    %v111 = vld [vmem:[#allocation9 + $0x108] sm:$0xff]
    %v112 = vld [vmem:[#allocation9 + $0x110] sm:$0xff]
    %v113 = vld [vmem:[#allocation9 + $0x118] sm:$0xff]
    %v114 = vld [vmem:[#allocation9 + $0x120] sm:$0xff]
    %v115 = vld [vmem:[#allocation9 + $0x128] sm:$0xff]
    %v116 = vld [vmem:[#allocation9 + $0x130] sm:$0xff]
    %v117 = vld [vmem:[#allocation9 + $0x138] sm:$0xff]
    %v118 = vld [vmem:[#allocation9 + $0x140] sm:$0xff]
    %v119 = vld [vmem:[#allocation9 + $0x148] sm:$0xff]
    %v120 = vld [vmem:[#allocation9 + $0x150] sm:$0xff]
    %v121 = vld [vmem:[#allocation9 + $0x158] sm:$0xff]
    %v122 = vld [vmem:[#allocation9 + $0x160] sm:$0xff]
    %v123 = vld [vmem:[#allocation9 + $0x168] sm:$0xff]
    %v124 = vld [vmem:[#allocation9 + $0x170] sm:$0xff]
    %v125 = vld [vmem:[#allocation9 + $0x178] sm:$0xff]
    %v126 = vld [vmem:[#allocation9 + $0x180] sm:$0xff]
    %v127 = vld [vmem:[#allocation9 + $0x188] sm:$0xff]
    %v128 = vld [vmem:[#allocation9 + $0x190] sm:$0xff]
    %v129 = vld [vmem:[#allocation9 + $0x198] sm:$0xff]
    %v130 = vld [vmem:[#allocation9 + $0x1a0] sm:$0xff]
    %v131 = vld [vmem:[#allocation9 + $0x1a8] sm:$0xff]
    %v132 = vld [vmem:[#allocation9 + $0x1b0] sm:$0xff]
    %v133 = vld [vmem:[#allocation9 + $0x1b8] sm:$0xff]
    %v134 = vld [vmem:[#allocation9 + $0x1c0] sm:$0xff]
    %v135 = vld [vmem:[#allocation9 + $0x1c8] sm:$0xff]
    %v136 = vld [vmem:[#allocation9 + $0x1d0] sm:$0xff]
    %v137 = vld [vmem:[#allocation9 + $0x1d8] sm:$0xff]
    %v138 = vld [vmem:[#allocation9 + $0x1e0] sm:$0xff]
    %v139 = vld [vmem:[#allocation9 + $0x1e8] sm:$0xff]
    %v140 = vld [vmem:[#allocation9 + $0x1f0] sm:$0xff]
    %v141 = vld [vmem:[#allocation9 + $0x1f8] sm:$0xff]
    %v142 = vld [vmem:[#allocation11] sm:$0xff]
    %v143 = vld [vmem:[#allocation11 + $0x8] sm:$0xff]
    %v144 = vld [vmem:[#allocation11 + $0x10] sm:$0xff]
    %v145 = vld [vmem:[#allocation11 + $0x18] sm:$0xff]
    %v146 = vld [vmem:[#allocation11 + $0x20] sm:$0xff]
    %v147 = vld [vmem:[#allocation11 + $0x28] sm:$0xff]
    %v148 = vld [vmem:[#allocation11 + $0x30] sm:$0xff]
    %v149 = vld [vmem:[#allocation11 + $0x38] sm:$0xff]
    %v150 = vld [vmem:[#allocation11 + $0x40] sm:$0xff]
    %v151 = vld [vmem:[#allocation11 + $0x48] sm:$0xff]
    %v152 = vld [vmem:[#allocation11 + $0x50] sm:$0xff]
    %v153 = vld [vmem:[#allocation11 + $0x58] sm:$0xff]
    %v154 = vld [vmem:[#allocation11 + $0x60] sm:$0xff]
    %v155 = vld [vmem:[#allocation11 + $0x68] sm:$0xff]
    %v156 = vld [vmem:[#allocation11 + $0x70] sm:$0xff]
    %v157 = vld [vmem:[#allocation11 + $0x78] sm:$0xff]
    %v158 = vld [vmem:[#allocation11 + $0x80] sm:$0xff]
    %v159 = vld [vmem:[#allocation11 + $0x88] sm:$0xff]
    %v160 = vld [vmem:[#allocation11 + $0x90] sm:$0xff]
    %v161 = vld [vmem:[#allocation11 + $0x98] sm:$0xff]
    %v162 = vld [vmem:[#allocation11 + $0xa0] sm:$0xff]
    %v163 = vld [vmem:[#allocation11 + $0xa8] sm:$0xff]
    %v164 = vld [vmem:[#allocation11 + $0xb0] sm:$0xff]
    %v165 = vld [vmem:[#allocation11 + $0xb8] sm:$0xff]
    %v166 = vld [vmem:[#allocation11 + $0xc0] sm:$0xff]
    %v167 = vld [vmem:[#allocation11 + $0xc8] sm:$0xff]
    %v168 = vld [vmem:[#allocation11 + $0xd0] sm:$0xff]
    %v169 = vld [vmem:[#allocation11 + $0xd8] sm:$0xff]
    %v170 = vld [vmem:[#allocation11 + $0xe0] sm:$0xff]
    %v171 = vld [vmem:[#allocation11 + $0xe8] sm:$0xff]
    %v172 = vld [vmem:[#allocation11 + $0xf0] sm:$0xff]
    %v173 = vld [vmem:[#allocation11 + $0xf8] sm:$0xff]
    %v174 = vld [vmem:[#allocation11 + $0x100] sm:$0xff]
    %v175 = vld [vmem:[#allocation11 + $0x108] sm:$0xff]
    %v176 = vld [vmem:[#allocation11 + $0x110] sm:$0xff]
    %v177 = vld [vmem:[#allocation11 + $0x118] sm:$0xff]
    %v178 = vld [vmem:[#allocation11 + $0x120] sm:$0xff]
    %v179 = vld [vmem:[#allocation11 + $0x128] sm:$0xff]
    %v180 = vld [vmem:[#allocation11 + $0x130] sm:$0xff]
    %v181 = vld [vmem:[#allocation11 + $0x138] sm:$0xff]
    %v182 = vld [vmem:[#allocation11 + $0x140] sm:$0xff]
    %v183 = vld [vmem:[#allocation11 + $0x148] sm:$0xff]
    %v184 = vld [vmem:[#allocation11 + $0x150] sm:$0xff]
    %v185 = vld [vmem:[#allocation11 + $0x158] sm:$0xff]
    %v186 = vld [vmem:[#allocation11 + $0x160] sm:$0xff]
    %v187 = vld [vmem:[#allocation11 + $0x168] sm:$0xff]
    %v188 = vld [vmem:[#allocation11 + $0x170] sm:$0xff]
    %v189 = vld [vmem:[#allocation11 + $0x178] sm:$0xff]
    %v190 = vld [vmem:[#allocation11 + $0x180] sm:$0xff]
    %v191 = vld [vmem:[#allocation11 + $0x188] sm:$0xff]
    %v192 = vld [vmem:[#allocation11 + $0x190] sm:$0xff]
    %v193 = vld [vmem:[#allocation11 + $0x198] sm:$0xff]
    %v194 = vld [vmem:[#allocation11 + $0x1a0] sm:$0xff]
    %v195 = vld [vmem:[#allocation11 + $0x1a8] sm:$0xff]
    %v196 = vld [vmem:[#allocation11 + $0x1b0] sm:$0xff]
    %v197 = vld [vmem:[#allocation11 + $0x1b8] sm:$0xff]
    %v198 = vld [vmem:[#allocation11 + $0x1c0] sm:$0xff]
    %v199 = vld [vmem:[#allocation11 + $0x1c8] sm:$0xff]
    %v200 = vld [vmem:[#allocation11 + $0x1d0] sm:$0xff]
    %v201 = vld [vmem:[#allocation11 + $0x1d8] sm:$0xff]
    %v202 = vld [vmem:[#allocation11 + $0x1e0] sm:$0xff]
    %v203 = vld [vmem:[#allocation11 + $0x1e8] sm:$0xff]
    %v204 = vld [vmem:[#allocation11 + $0x1f0] sm:$0xff]
    %v205 = vld [vmem:[#allocation11 + $0x1f8] sm:$0xff]
    %v206 = vld [vmem:[%s3] sm:$0xf]
    %v208 = vlaneseq
    %v209 = vshrl.u32 %v208, 7
    %v210 = vsub.s32 0, %v209
    %v211 = vrot.slane %v206, %v210
    %v212 = vlaneseq
    %v213 = vshrl.u32 %v212, 7
    %v214 = vsub.s32 1, %v213
    %v215 = vrot.slane %v206, %v214
    %v216 = vlaneseq
    %v217 = vshrl.u32 %v216, 7
    %v218 = vsub.s32 2, %v217
    %v219 = vrot.slane %v206, %v218
    %v220 = vlaneseq
    %v221 = vshrl.u32 %v220, 7
    %v222 = vsub.s32 3, %v221
    %v223 = vrot.slane %v206, %v222
    %228 = vmatprep.subr.mxu0 %v79
    %229 = vmatpush1.msra.mxu0 %v78
    %230 = vmatprep.subr.mxu0 %v83
    %231 = vmatpush1.msra.mxu0 %v82
    %232 = vmatprep.subr.mxu0 %v87
    %233 = vmatpush1.msra.mxu0 %v86
    %234 = vmatprep.subr.mxu0 %v91
    %235 = vmatpush1.msra.mxu0 %v90
    %236 = vmatprep.subr.mxu0 %v95
    %237 = vmatpush1.msra.mxu0 %v94
    %238 = vmatprep.subr.mxu0 %v99
    %239 = vmatpush1.msra.mxu0 %v98
    %240 = vmatprep.subr.mxu0 %v103
    %241 = vmatpush1.msra.mxu0 %v102
    %242 = vmatprep.subr.mxu0 %v107
    %243 = vmatpush1.msra.mxu0 %v106
    %244 = vmatprep.subr.mxu0 %v111
    %245 = vmatpush1.msra.mxu0 %v110
    %246 = vmatprep.subr.mxu0 %v115
    %247 = vmatpush1.msra.mxu0 %v114
    %248 = vmatprep.subr.mxu0 %v119
    %249 = vmatpush1.msra.mxu0 %v118
    %250 = vmatprep.subr.mxu0 %v123
    %251 = vmatpush1.msra.mxu0 %v122
    %252 = vmatprep.subr.mxu0 %v127
    %253 = vmatpush1.msra.mxu0 %v126
    %254 = vmatprep.subr.mxu0 %v131
    %255 = vmatpush1.msra.mxu0 %v130
    %256 = vmatprep.subr.mxu0 %v135
    %257 = vmatpush1.msra.mxu0 %v134
    %258 = vmatprep.subr.mxu0 %v139
    %259 = vmatpush1.msra.mxu0 %v138
    %260 = vmatprep.subr.mxu0 0.0
    %261 = vmatpush1.msra.mxu0 0.0
    %262 = vmatprep.subr.mxu0 0.0
    %263 = vmatpush1.msra.mxu0 0.0
    %264 = vmatprep.subr.mxu0 0.0
    %265 = vmatpush1.msra.mxu0 0.0
    %266 = vmatprep.subr.mxu0 0.0
    %267 = vmatpush1.msra.mxu0 0.0
    %268 = vmatprep.subr.mxu0 0.0
    %269 = vmatpush1.msra.mxu0 0.0
    %270 = vmatprep.subr.mxu0 0.0
    %271 = vmatpush1.msra.mxu0 0.0
    %272 = vmatprep.subr.mxu0 0.0
    %273 = vmatpush1.msra.mxu0 0.0
    %274 = vmatprep.subr.mxu0 0.0
    %275 = vmatpush1.msra.mxu0 0.0
    %276 = vmatprep.subr.mxu0 0.0
    %277 = vmatpush1.msra.mxu0 0.0
    %278 = vmatprep.subr.mxu0 0.0
    %279 = vmatpush1.msra.mxu0 0.0
    %280 = vmatprep.subr.mxu0 0.0
    %281 = vmatpush1.msra.mxu0 0.0
    %282 = vmatprep.subr.mxu0 0.0
    %283 = vmatpush1.msra.mxu0 0.0
    %284 = vmatprep.subr.mxu0 0.0
    %285 = vmatpush1.msra.mxu0 0.0
    %286 = vmatprep.subr.mxu0 0.0
    %287 = vmatpush1.msra.mxu0 0.0
    %288 = vmatprep.subr.mxu0 0.0
    %289 = vmatpush1.msra.mxu0 0.0
    %290 = vmatprep.subr.mxu0 0.0
    %291 = vmatpush1.msra.mxu0 0.0
    %292 = vmatprep.mubr.f32.mxu0 0.0
    %293 = vmatmul.mubr.f32.gmra.mrb[0].mxu0 %v70
    %v294 = vpop.f32.mrb[0].mxu0
    %v295 = vadd.f32 %v211, %v294
    %v296 = vpop.f32.mrb[0].mxu0
    %v297 = vadd.f32 %v215, %v296
    %298 = vmatprep.mubr.f32.mxu0 0.0
    %299 = vmatmul.mubr.f32.gmra.mrb[0].mxu0 %v71
    %v300 = vpop.f32.mrb[0].mxu0
    %v301 = vadd.f32 %v211, %v300
    %v302 = vpop.f32.mrb[0].mxu0
    %v303 = vadd.f32 %v215, %v302
    %304 = vmatprep.mubr.f32.mxu0 0.0
    %305 = vmatmul.mubr.f32.gmra.mrb[0].mxu0 %v72
    %v306 = vpop.f32.mrb[0].mxu0
    %v307 = vadd.f32 %v211, %v306
    %v308 = vpop.f32.mrb[0].mxu0
    %v309 = vadd.f32 %v215, %v308
    %310 = vmatprep.mubr.f32.mxu0 0.0
    %311 = vmatmul.mubr.f32.gmra.mrb[0].mxu0 %v73
    %v312 = vpop.f32.mrb[0].mxu0
    %v313 = vadd.f32 %v211, %v312
    %v314 = vpop.f32.mrb[0].mxu0
    %v315 = vadd.f32 %v215, %v314
    %316 = vmatprep.mubr.f32.mxu0 0.0
    %317 = vmatmul.mubr.f32.gmra.mrb[0].mxu0 %v74
    %v318 = vpop.f32.mrb[0].mxu0
    %v319 = vadd.f32 %v211, %v318
    %v320 = vpop.f32.mrb[0].mxu0
    %v321 = vadd.f32 %v215, %v320
    %322 = vmatprep.mubr.f32.mxu0 0.0
    %323 = vmatmul.mubr.f32.gmra.mrb[0].mxu0 %v75
    %v324 = vpop.f32.mrb[0].mxu0
    %v325 = vadd.f32 %v211, %v324
    %v326 = vpop.f32.mrb[0].mxu0
    %v327 = vadd.f32 %v215, %v326
    %328 = vmatprep.mubr.f32.mxu0 0.0
    %329 = vmatmul.mubr.f32.gmra.mrb[0].mxu0 %v76
    %v330 = vpop.f32.mrb[0].mxu0
    %v331 = vadd.f32 %v211, %v330
    %v332 = vpop.f32.mrb[0].mxu0
    %v333 = vadd.f32 %v215, %v332
    %334 = vmatprep.mubr.f32.mxu0 0.0
    %335 = vmatmul.mubr.f32.gmra.mrb[0].mxu0 %v77
    %v336 = vpop.f32.mrb[0].mxu0
    %v337 = vadd.f32 %v211, %v336
    %v338 = vpop.f32.mrb[0].mxu0
    %v339 = vadd.f32 %v215, %v338
    %340 = vdwg.mxu0
    %341 = vmatprep.subr.mxu0 %v81
    %342 = vmatpush1.msra.mxu0 %v80
    %343 = vmatprep.subr.mxu0 %v85
    %344 = vmatpush1.msra.mxu0 %v84
    %345 = vmatprep.subr.mxu0 %v89
    %346 = vmatpush1.msra.mxu0 %v88
    %347 = vmatprep.subr.mxu0 %v93
    %348 = vmatpush1.msra.mxu0 %v92
    %349 = vmatprep.subr.mxu0 %v97
    %350 = vmatpush1.msra.mxu0 %v96
    %351 = vmatprep.subr.mxu0 %v101
    %352 = vmatpush1.msra.mxu0 %v100
    %353 = vmatprep.subr.mxu0 %v105
    %354 = vmatpush1.msra.mxu0 %v104
    %355 = vmatprep.subr.mxu0 %v109
    %356 = vmatpush1.msra.mxu0 %v108
    %357 = vmatprep.subr.mxu0 %v113
    %358 = vmatpush1.msra.mxu0 %v112
    %359 = vmatprep.subr.mxu0 %v117
    %360 = vmatpush1.msra.mxu0 %v116
    %361 = vmatprep.subr.mxu0 %v121
    %362 = vmatpush1.msra.mxu0 %v120
    %363 = vmatprep.subr.mxu0 %v125
    %364 = vmatpush1.msra.mxu0 %v124
    %365 = vmatprep.subr.mxu0 %v129
    %366 = vmatpush1.msra.mxu0 %v128
    %367 = vmatprep.subr.mxu0 %v133
    %368 = vmatpush1.msra.mxu0 %v132
    %369 = vmatprep.subr.mxu0 %v137
    %370 = vmatpush1.msra.mxu0 %v136
    %371 = vmatprep.subr.mxu0 %v141
    %372 = vmatpush1.msra.mxu0 %v140
    %373 = vmatprep.subr.mxu0 0.0
    %374 = vmatpush1.msra.mxu0 0.0
    %375 = vmatprep.subr.mxu0 0.0
    %376 = vmatpush1.msra.mxu0 0.0
    %377 = vmatprep.subr.mxu0 0.0
    %378 = vmatpush1.msra.mxu0 0.0
    %379 = vmatprep.subr.mxu0 0.0
    %380 = vmatpush1.msra.mxu0 0.0
    %381 = vmatprep.subr.mxu0 0.0
    %382 = vmatpush1.msra.mxu0 0.0
    %383 = vmatprep.subr.mxu0 0.0
    %384 = vmatpush1.msra.mxu0 0.0
    %385 = vmatprep.subr.mxu0 0.0
    %386 = vmatpush1.msra.mxu0 0.0
    %387 = vmatprep.subr.mxu0 0.0
    %388 = vmatpush1.msra.mxu0 0.0
    %389 = vmatprep.subr.mxu0 0.0
    %390 = vmatpush1.msra.mxu0 0.0
    %391 = vmatprep.subr.mxu0 0.0
    %392 = vmatpush1.msra.mxu0 0.0
    %393 = vmatprep.subr.mxu0 0.0
    %394 = vmatpush1.msra.mxu0 0.0
    %395 = vmatprep.subr.mxu0 0.0
    %396 = vmatpush1.msra.mxu0 0.0
    %397 = vmatprep.subr.mxu0 0.0
    %398 = vmatpush1.msra.mxu0 0.0
    %399 = vmatprep.subr.mxu0 0.0
    %400 = vmatpush1.msra.mxu0 0.0
    %401 = vmatprep.subr.mxu0 0.0
    %402 = vmatpush1.msra.mxu0 0.0
    %403 = vmatprep.subr.mxu0 0.0
    %404 = vmatpush1.msra.mxu0 0.0
    %405 = vmatprep.mubr.f32.mxu0 0.0
    %406 = vmatmul.mubr.f32.gmra.mrb[0].mxu0 %v70
    %v407 = vpop.f32.mrb[0].mxu0
    %v408 = vadd.f32 %v219, %v407
    %v409 = vpop.f32.mrb[0].mxu0
    %v410 = vadd.f32 %v223, %v409
    %411 = vmatprep.mubr.f32.mxu0 0.0
    %412 = vmatmul.mubr.f32.gmra.mrb[0].mxu0 %v71
    %v413 = vpop.f32.mrb[0].mxu0
    %v414 = vadd.f32 %v219, %v413
    %v415 = vpop.f32.mrb[0].mxu0
    %v416 = vadd.f32 %v223, %v415
    %417 = vmatprep.mubr.f32.mxu0 0.0
    %418 = vmatmul.mubr.f32.gmra.mrb[0].mxu0 %v72
    %v419 = vpop.f32.mrb[0].mxu0
    %v420 = vadd.f32 %v219, %v419
    %v421 = vpop.f32.mrb[0].mxu0
    %v422 = vadd.f32 %v223, %v421
    %423 = vmatprep.mubr.f32.mxu0 0.0
    %424 = vmatmul.mubr.f32.gmra.mrb[0].mxu0 %v73
    %v425 = vpop.f32.mrb[0].mxu0
    %v426 = vadd.f32 %v219, %v425
    %v427 = vpop.f32.mrb[0].mxu0
    %v428 = vadd.f32 %v223, %v427
    %429 = vmatprep.mubr.f32.mxu0 0.0
    %430 = vmatmul.mubr.f32.gmra.mrb[0].mxu0 %v74
    %v431 = vpop.f32.mrb[0].mxu0
    %v432 = vadd.f32 %v219, %v431
    %v433 = vpop.f32.mrb[0].mxu0
    %v434 = vadd.f32 %v223, %v433
    %435 = vmatprep.mubr.f32.mxu0 0.0
    %436 = vmatmul.mubr.f32.gmra.mrb[0].mxu0 %v75
    %v437 = vpop.f32.mrb[0].mxu0
    %v438 = vadd.f32 %v219, %v437
    %v439 = vpop.f32.mrb[0].mxu0
    %v440 = vadd.f32 %v223, %v439
    %441 = vmatprep.mubr.f32.mxu0 0.0
    %442 = vmatmul.mubr.f32.gmra.mrb[0].mxu0 %v76
    %v443 = vpop.f32.mrb[0].mxu0
    %v444 = vadd.f32 %v219, %v443
    %v445 = vpop.f32.mrb[0].mxu0
    %v446 = vadd.f32 %v223, %v445
    %447 = vmatprep.mubr.f32.mxu0 0.0
    %448 = vmatmul.mubr.f32.gmra.mrb[0].mxu0 %v77
    %v449 = vpop.f32.mrb[0].mxu0
    %v450 = vadd.f32 %v219, %v449
    %v451 = vpop.f32.mrb[0].mxu0
    %v452 = vadd.f32 %v223, %v451
    %453 = vdwg.mxu0
    %454 = vst [vmem:[#allocation5] sm:$0xff] %v295
    %455 = vst [vmem:[#allocation5 + $0x8] sm:$0xff] %v297
    %456 = vst [vmem:[#allocation5 + $0x10] sm:$0xff] %v408
    %457 = vst [vmem:[#allocation5 + $0x18] sm:$0xff] %v410
    %458 = vst [vmem:[#allocation5 + $0x20] sm:$0xff] %v301
    %459 = vst [vmem:[#allocation5 + $0x28] sm:$0xff] %v303
    %460 = vst [vmem:[#allocation5 + $0x30] sm:$0xff] %v414
    %461 = vst [vmem:[#allocation5 + $0x38] sm:$0xff] %v416
    %462 = vst [vmem:[#allocation5 + $0x40] sm:$0xff] %v307
    %463 = vst [vmem:[#allocation5 + $0x48] sm:$0xff] %v309
    %464 = vst [vmem:[#allocation5 + $0x50] sm:$0xff] %v420
    %465 = vst [vmem:[#allocation5 + $0x58] sm:$0xff] %v422
    %466 = vst [vmem:[#allocation5 + $0x60] sm:$0xff] %v313
    %467 = vst [vmem:[#allocation5 + $0x68] sm:$0xff] %v315
    %468 = vst [vmem:[#allocation5 + $0x70] sm:$0xff] %v426
    %469 = vst [vmem:[#allocation5 + $0x78] sm:$0xff] %v428
    %470 = vst [vmem:[#allocation5 + $0x80] sm:$0xff] %v319
    %471 = vst [vmem:[#allocation5 + $0x88] sm:$0xff] %v321
    %472 = vst [vmem:[#allocation5 + $0x90] sm:$0xff] %v432
    %473 = vst [vmem:[#allocation5 + $0x98] sm:$0xff] %v434
    %474 = vst [vmem:[#allocation5 + $0xa0] sm:$0xff] %v325
    %475 = vst [vmem:[#allocation5 + $0xa8] sm:$0xff] %v327
    %476 = vst [vmem:[#allocation5 + $0xb0] sm:$0xff] %v438
    %477 = vst [vmem:[#allocation5 + $0xb8] sm:$0xff] %v440
    %478 = vst [vmem:[#allocation5 + $0xc0] sm:$0xff] %v331
    %479 = vst [vmem:[#allocation5 + $0xc8] sm:$0xff] %v333
    %480 = vst [vmem:[#allocation5 + $0xd0] sm:$0xff] %v444
    %481 = vst [vmem:[#allocation5 + $0xd8] sm:$0xff] %v446
    %482 = vst [vmem:[#allocation5 + $0xe0] sm:$0xff] %v337
    %483 = vst [vmem:[#allocation5 + $0xe8] sm:$0xff] %v339
    %484 = vst [vmem:[#allocation5 + $0xf0] sm:$0xff] %v450
    %485 = vst [vmem:[#allocation5 + $0xf8] sm:$0xff] %v452
    %v486 = vld [vmem:[#allocation2] sm:$0xff]
    %v487 = vld [vmem:[#allocation3] sm:$0xff]
    %v488 = vld [vmem:[#allocation5] sm:$0xff]
    %v489 = vld [vmem:[#allocation5 + $0x8] sm:$0xff]
    %v490 = vld [vmem:[#allocation5 + $0x10] sm:$0xff]
    %v491 = vld [vmem:[#allocation5 + $0x18] sm:$0xff]
    %492 = vmatprep.subr.mxu0 %v143
    %493 = vmatpush1.msra.mxu0 %v142
    %494 = vmatprep.subr.mxu0 %v147
    %495 = vmatpush1.msra.mxu0 %v146
    %496 = vmatprep.subr.mxu0 %v151
    %497 = vmatpush1.msra.mxu0 %v150
    %498 = vmatprep.subr.mxu0 %v155
    %499 = vmatpush1.msra.mxu0 %v154
    %500 = vmatprep.subr.mxu0 %v159
    %501 = vmatpush1.msra.mxu0 %v158
    %502 = vmatprep.subr.mxu0 %v163
    %503 = vmatpush1.msra.mxu0 %v162
    %504 = vmatprep.subr.mxu0 %v167
    %505 = vmatpush1.msra.mxu0 %v166
    %506 = vmatprep.subr.mxu0 %v171
    %507 = vmatpush1.msra.mxu0 %v170
    %508 = vmatprep.subr.mxu0 %v175
    %509 = vmatpush1.msra.mxu0 %v174
    %510 = vmatprep.subr.mxu0 %v179
    %511 = vmatpush1.msra.mxu0 %v178
    %512 = vmatprep.subr.mxu0 %v183
    %513 = vmatpush1.msra.mxu0 %v182
    %514 = vmatprep.subr.mxu0 %v187
    %515 = vmatpush1.msra.mxu0 %v186
    %516 = vmatprep.subr.mxu0 %v191
    %517 = vmatpush1.msra.mxu0 %v190
    %518 = vmatprep.subr.mxu0 %v195
    %519 = vmatpush1.msra.mxu0 %v194
    %520 = vmatprep.subr.mxu0 %v199
    %521 = vmatpush1.msra.mxu0 %v198
    %522 = vmatprep.subr.mxu0 %v203
    %523 = vmatpush1.msra.mxu0 %v202
    %524 = vmatprep.subr.mxu0 0.0
    %525 = vmatpush1.msra.mxu0 0.0
    %526 = vmatprep.subr.mxu0 0.0
    %527 = vmatpush1.msra.mxu0 0.0
    %528 = vmatprep.subr.mxu0 0.0
    %529 = vmatpush1.msra.mxu0 0.0
    %530 = vmatprep.subr.mxu0 0.0
    %531 = vmatpush1.msra.mxu0 0.0
    %532 = vmatprep.subr.mxu0 0.0
    %533 = vmatpush1.msra.mxu0 0.0
    %534 = vmatprep.subr.mxu0 0.0
    %535 = vmatpush1.msra.mxu0 0.0
    %536 = vmatprep.subr.mxu0 0.0
    %537 = vmatpush1.msra.mxu0 0.0
    %538 = vmatprep.subr.mxu0 0.0
    %539 = vmatpush1.msra.mxu0 0.0
    %540 = vmatprep.subr.mxu0 0.0
    %541 = vmatpush1.msra.mxu0 0.0
    %542 = vmatprep.subr.mxu0 0.0
    %543 = vmatpush1.msra.mxu0 0.0
    %544 = vmatprep.subr.mxu0 0.0
    %545 = vmatpush1.msra.mxu0 0.0
    %546 = vmatprep.subr.mxu0 0.0
    %547 = vmatpush1.msra.mxu0 0.0
    %548 = vmatprep.subr.mxu0 0.0
    %549 = vmatpush1.msra.mxu0 0.0
    %550 = vmatprep.subr.mxu0 0.0
    %551 = vmatpush1.msra.mxu0 0.0
    %552 = vmatprep.subr.mxu0 0.0
    %553 = vmatpush1.msra.mxu0 0.0
    %554 = vmatprep.subr.mxu0 0.0
    %555 = vmatpush1.msra.mxu0 0.0
    %556 = vmatprep.mubr.f32.mxu0 0.0
    %557 = vmatmul.mubr.f32.gmra.mrb[0].mxu0 %v486
    %v558 = vpop.f32.mrb[0].mxu0
    %v559 = vadd.f32 0.0, %v558
    %v560 = vpop.f32.mrb[0].mxu0
    %v561 = vadd.f32 0.0, %v560
    %562 = vdwg.mxu0
    %563 = vmatprep.subr.mxu0 %v145
    %564 = vmatpush1.msra.mxu0 %v144
    %565 = vmatprep.subr.mxu0 %v149
    %566 = vmatpush1.msra.mxu0 %v148
    %567 = vmatprep.subr.mxu0 %v153
    %568 = vmatpush1.msra.mxu0 %v152
    %569 = vmatprep.subr.mxu0 %v157
    %570 = vmatpush1.msra.mxu0 %v156
    %571 = vmatprep.subr.mxu0 %v161
    %572 = vmatpush1.msra.mxu0 %v160
    %573 = vmatprep.subr.mxu0 %v165
    %574 = vmatpush1.msra.mxu0 %v164
    %575 = vmatprep.subr.mxu0 %v169
    %576 = vmatpush1.msra.mxu0 %v168
    %577 = vmatprep.subr.mxu0 %v173
    %578 = vmatpush1.msra.mxu0 %v172
    %579 = vmatprep.subr.mxu0 %v177
    %580 = vmatpush1.msra.mxu0 %v176
    %581 = vmatprep.subr.mxu0 %v181
    %582 = vmatpush1.msra.mxu0 %v180
    %583 = vmatprep.subr.mxu0 %v185
    %584 = vmatpush1.msra.mxu0 %v184
    %585 = vmatprep.subr.mxu0 %v189
    %586 = vmatpush1.msra.mxu0 %v188
    %587 = vmatprep.subr.mxu0 %v193
    %588 = vmatpush1.msra.mxu0 %v192
    %589 = vmatprep.subr.mxu0 %v197
    %590 = vmatpush1.msra.mxu0 %v196
    %591 = vmatprep.subr.mxu0 %v201
    %592 = vmatpush1.msra.mxu0 %v200
    %593 = vmatprep.subr.mxu0 %v205
    %594 = vmatpush1.msra.mxu0 %v204
    %595 = vmatprep.subr.mxu0 0.0
    %596 = vmatpush1.msra.mxu0 0.0
    %597 = vmatprep.subr.mxu0 0.0
    %598 = vmatpush1.msra.mxu0 0.0
    %599 = vmatprep.subr.mxu0 0.0
    %600 = vmatpush1.msra.mxu0 0.0
    %601 = vmatprep.subr.mxu0 0.0
    %602 = vmatpush1.msra.mxu0 0.0
    %603 = vmatprep.subr.mxu0 0.0
    %604 = vmatpush1.msra.mxu0 0.0
    %605 = vmatprep.subr.mxu0 0.0
    %606 = vmatpush1.msra.mxu0 0.0
    %607 = vmatprep.subr.mxu0 0.0
    %608 = vmatpush1.msra.mxu0 0.0
    %609 = vmatprep.subr.mxu0 0.0
    %610 = vmatpush1.msra.mxu0 0.0
    %611 = vmatprep.subr.mxu0 0.0
    %612 = vmatpush1.msra.mxu0 0.0
    %613 = vmatprep.subr.mxu0 0.0
    %614 = vmatpush1.msra.mxu0 0.0
    %615 = vmatprep.subr.mxu0 0.0
    %616 = vmatpush1.msra.mxu0 0.0
    %617 = vmatprep.subr.mxu0 0.0
    %618 = vmatpush1.msra.mxu0 0.0
    %619 = vmatprep.subr.mxu0 0.0
    %620 = vmatpush1.msra.mxu0 0.0
    %621 = vmatprep.subr.mxu0 0.0
    %622 = vmatpush1.msra.mxu0 0.0
    %623 = vmatprep.subr.mxu0 0.0
    %624 = vmatpush1.msra.mxu0 0.0
    %625 = vmatprep.subr.mxu0 0.0
    %626 = vmatpush1.msra.mxu0 0.0
    %627 = vmatprep.mubr.f32.mxu0 0.0
    %628 = vmatmul.mubr.f32.gmra.mrb[0].mxu0 %v486
    %v629 = vpop.f32.mrb[0].mxu0
    %v630 = vadd.f32 0.0, %v629
    %v631 = vpop.f32.mrb[0].mxu0
    %v632 = vadd.f32 0.0, %v631
    %633 = vdwg.mxu0
    %v634 = vadd.f32 %v488, %v559
    %v635 = vadd.f32 %v489, %v561
    %v636 = vadd.f32 %v490, %v630
    %v637 = vadd.f32 %v491, %v632
    %v638 = vmul.f32 %v634, 0.5
    %v639 = vtanh.pop %v638
    %v640 = vmul.f32 %v639, 0.5
    %v641 = vadd.f32 %v640, 0.5
    %v642 = vmul.f32 %v635, 0.5
    %v643 = vtanh.pop %v642
    %v644 = vmul.f32 %v643, 0.5
    %v645 = vadd.f32 %v644, 0.5
    %v646 = vtanh.pop %v636
    %v647 = vmul.f32 %v637, 0.5
    %v648 = vtanh.pop %v647
    %v649 = vmul.f32 %v648, 0.5
    %v650 = vadd.f32 %v649, 0.5
    %v651 = vmul.f32 %v645, %v487
    %v652 = vmul.f32 %v641, %v646
    %v653 = vadd.f32 %v651, %v652
    %v654 = vtanh.pop %v653
    %v655 = vmul.f32 %v650, %v654
    %656 = vst [vmem:[#allocation4] sm:$0xff] %v655
    %v657 = vld [vmem:[#allocation5 + $0x20] sm:$0xff]
    %v658 = vld [vmem:[#allocation5 + $0x28] sm:$0xff]
    %v659 = vld [vmem:[#allocation5 + $0x30] sm:$0xff]
    %v660 = vld [vmem:[#allocation5 + $0x38] sm:$0xff]
    %661 = vmatprep.subr.mxu0 %v143
    %662 = vmatpush1.msra.mxu0 %v142
    %663 = vmatprep.subr.mxu0 %v147
    %664 = vmatpush1.msra.mxu0 %v146
    %665 = vmatprep.subr.mxu0 %v151
    %666 = vmatpush1.msra.mxu0 %v150
    %667 = vmatprep.subr.mxu0 %v155
    %668 = vmatpush1.msra.mxu0 %v154
    %669 = vmatprep.subr.mxu0 %v159
    %670 = vmatpush1.msra.mxu0 %v158
    %671 = vmatprep.subr.mxu0 %v163
    %672 = vmatpush1.msra.mxu0 %v162
    %673 = vmatprep.subr.mxu0 %v167
    %674 = vmatpush1.msra.mxu0 %v166
    %675 = vmatprep.subr.mxu0 %v171
    %676 = vmatpush1.msra.mxu0 %v170
    %677 = vmatprep.subr.mxu0 %v175
    %678 = vmatpush1.msra.mxu0 %v174
    %679 = vmatprep.subr.mxu0 %v179
    %680 = vmatpush1.msra.mxu0 %v178
    %681 = vmatprep.subr.mxu0 %v183
    %682 = vmatpush1.msra.mxu0 %v182
    %683 = vmatprep.subr.mxu0 %v187
    %684 = vmatpush1.msra.mxu0 %v186
    %685 = vmatprep.subr.mxu0 %v191
    %686 = vmatpush1.msra.mxu0 %v190
    %687 = vmatprep.subr.mxu0 %v195
    %688 = vmatpush1.msra.mxu0 %v194
    %689 = vmatprep.subr.mxu0 %v199
    %690 = vmatpush1.msra.mxu0 %v198
    %691 = vmatprep.subr.mxu0 %v203
    %692 = vmatpush1.msra.mxu0 %v202
    %693 = vmatprep.subr.mxu0 0.0
    %694 = vmatpush1.msra.mxu0 0.0
    %695 = vmatprep.subr.mxu0 0.0
    %696 = vmatpush1.msra.mxu0 0.0
    %697 = vmatprep.subr.mxu0 0.0
    %698 = vmatpush1.msra.mxu0 0.0
    %699 = vmatprep.subr.mxu0 0.0
    %700 = vmatpush1.msra.mxu0 0.0
    %701 = vmatprep.subr.mxu0 0.0
    %702 = vmatpush1.msra.mxu0 0.0
    %703 = vmatprep.subr.mxu0 0.0
    %704 = vmatpush1.msra.mxu0 0.0
    %705 = vmatprep.subr.mxu0 0.0
    %706 = vmatpush1.msra.mxu0 0.0
    %707 = vmatprep.subr.mxu0 0.0
    %708 = vmatpush1.msra.mxu0 0.0
    %709 = vmatprep.subr.mxu0 0.0
    %710 = vmatpush1.msra.mxu0 0.0
    %711 = vmatprep.subr.mxu0 0.0
    %712 = vmatpush1.msra.mxu0 0.0
    %713 = vmatprep.subr.mxu0 0.0
    %714 = vmatpush1.msra.mxu0 0.0
    %715 = vmatprep.subr.mxu0 0.0
    %716 = vmatpush1.msra.mxu0 0.0
    %717 = vmatprep.subr.mxu0 0.0
    %718 = vmatpush1.msra.mxu0 0.0
    %719 = vmatprep.subr.mxu0 0.0
    %720 = vmatpush1.msra.mxu0 0.0
    %721 = vmatprep.subr.mxu0 0.0
    %722 = vmatpush1.msra.mxu0 0.0
    %723 = vmatprep.subr.mxu0 0.0
    %724 = vmatpush1.msra.mxu0 0.0
    %725 = vmatprep.mubr.f32.mxu0 0.0
    %726 = vmatmul.mubr.f32.gmra.mrb[0].mxu0 %v655
    %v727 = vpop.f32.mrb[0].mxu0
    %v728 = vadd.f32 0.0, %v727
    %v729 = vpop.f32.mrb[0].mxu0
    %v730 = vadd.f32 0.0, %v729
    %731 = vdwg.mxu0
    %732 = vmatprep.subr.mxu0 %v145
    %733 = vmatpush1.msra.mxu0 %v144
    %734 = vmatprep.subr.mxu0 %v149
    %735 = vmatpush1.msra.mxu0 %v148
    %736 = vmatprep.subr.mxu0 %v153
    %737 = vmatpush1.msra.mxu0 %v152
    %738 = vmatprep.subr.mxu0 %v157
    %739 = vmatpush1.msra.mxu0 %v156
    %740 = vmatprep.subr.mxu0 %v161
    %741 = vmatpush1.msra.mxu0 %v160
    %742 = vmatprep.subr.mxu0 %v165
    %743 = vmatpush1.msra.mxu0 %v164
    %744 = vmatprep.subr.mxu0 %v169
    %745 = vmatpush1.msra.mxu0 %v168
    %746 = vmatprep.subr.mxu0 %v173
    %747 = vmatpush1.msra.mxu0 %v172
    %748 = vmatprep.subr.mxu0 %v177
    %749 = vmatpush1.msra.mxu0 %v176
    %750 = vmatprep.subr.mxu0 %v181
    %751 = vmatpush1.msra.mxu0 %v180
    %752 = vmatprep.subr.mxu0 %v185
    %753 = vmatpush1.msra.mxu0 %v184
    %754 = vmatprep.subr.mxu0 %v189
    %755 = vmatpush1.msra.mxu0 %v188
    %756 = vmatprep.subr.mxu0 %v193
    %757 = vmatpush1.msra.mxu0 %v192
    %758 = vmatprep.subr.mxu0 %v197
    %759 = vmatpush1.msra.mxu0 %v196
    %760 = vmatprep.subr.mxu0 %v201
    %761 = vmatpush1.msra.mxu0 %v200
    %762 = vmatprep.subr.mxu0 %v205
    %763 = vmatpush1.msra.mxu0 %v204
    %764 = vmatprep.subr.mxu0 0.0
    %765 = vmatpush1.msra.mxu0 0.0
    %766 = vmatprep.subr.mxu0 0.0
    %767 = vmatpush1.msra.mxu0 0.0
    %768 = vmatprep.subr.mxu0 0.0
    %769 = vmatpush1.msra.mxu0 0.0
    %770 = vmatprep.subr.mxu0 0.0
    %771 = vmatpush1.msra.mxu0 0.0
    %772 = vmatprep.subr.mxu0 0.0
    %773 = vmatpush1.msra.mxu0 0.0
    %774 = vmatprep.subr.mxu0 0.0
    %775 = vmatpush1.msra.mxu0 0.0
    %776 = vmatprep.subr.mxu0 0.0
    %777 = vmatpush1.msra.mxu0 0.0
    %778 = vmatprep.subr.mxu0 0.0
    %779 = vmatpush1.msra.mxu0 0.0
    %780 = vmatprep.subr.mxu0 0.0
    %781 = vmatpush1.msra.mxu0 0.0
    %782 = vmatprep.subr.mxu0 0.0
    %783 = vmatpush1.msra.mxu0 0.0
    %784 = vmatprep.subr.mxu0 0.0
    %785 = vmatpush1.msra.mxu0 0.0
    %786 = vmatprep.subr.mxu0 0.0
    %787 = vmatpush1.msra.mxu0 0.0
    %788 = vmatprep.subr.mxu0 0.0
    %789 = vmatpush1.msra.mxu0 0.0
    %790 = vmatprep.subr.mxu0 0.0
    %791 = vmatpush1.msra.mxu0 0.0
    %792 = vmatprep.subr.mxu0 0.0
    %793 = vmatpush1.msra.mxu0 0.0
    %794 = vmatprep.subr.mxu0 0.0
    %795 = vmatpush1.msra.mxu0 0.0
    %796 = vmatprep.mubr.f32.mxu0 0.0
    %797 = vmatmul.mubr.f32.gmra.mrb[0].mxu0 %v655
    %v798 = vpop.f32.mrb[0].mxu0
    %v799 = vadd.f32 0.0, %v798
    %v800 = vpop.f32.mrb[0].mxu0
    %v801 = vadd.f32 0.0, %v800
    %802 = vdwg.mxu0
    %v803 = vadd.f32 %v657, %v728
    %v804 = vadd.f32 %v658, %v730
    %v805 = vadd.f32 %v659, %v799
    %v806 = vadd.f32 %v660, %v801
    %v807 = vmul.f32 %v803, 0.5
    %v808 = vtanh.pop %v807
    %v809 = vmul.f32 %v808, 0.5
    %v810 = vadd.f32 %v809, 0.5
    %v811 = vmul.f32 %v804, 0.5
    %v812 = vtanh.pop %v811
    %v813 = vmul.f32 %v812, 0.5
    %v814 = vadd.f32 %v813, 0.5
    %v815 = vtanh.pop %v805
    %v816 = vmul.f32 %v806, 0.5
    %v817 = vtanh.pop %v816
    %v818 = vmul.f32 %v817, 0.5
    %v819 = vadd.f32 %v818, 0.5
    %v820 = vmul.f32 %v814, %v653
    %v821 = vmul.f32 %v810, %v815
    %v822 = vadd.f32 %v820, %v821
    %v823 = vtanh.pop %v822
    %v824 = vmul.f32 %v819, %v823
    %s825 = scalar_lea.vmem [#allocation4], 8
    %826 = vst [vmem:[%s825] sm:$0xff] %v824
    %v827 = vld [vmem:[#allocation5 + $0x40] sm:$0xff]
    %v828 = vld [vmem:[#allocation5 + $0x48] sm:$0xff]
    %v829 = vld [vmem:[#allocation5 + $0x50] sm:$0xff]
    %v830 = vld [vmem:[#allocation5 + $0x58] sm:$0xff]
    %831 = vmatprep.subr.mxu0 %v143
    %832 = vmatpush1.msra.mxu0 %v142
    %833 = vmatprep.subr.mxu0 %v147
    %834 = vmatpush1.msra.mxu0 %v146
    %835 = vmatprep.subr.mxu0 %v151
    %836 = vmatpush1.msra.mxu0 %v150
    %837 = vmatprep.subr.mxu0 %v155
    %838 = vmatpush1.msra.mxu0 %v154
    %839 = vmatprep.subr.mxu0 %v159
    %840 = vmatpush1.msra.mxu0 %v158
    %841 = vmatprep.subr.mxu0 %v163
    %842 = vmatpush1.msra.mxu0 %v162
    %843 = vmatprep.subr.mxu0 %v167
    %844 = vmatpush1.msra.mxu0 %v166
    %845 = vmatprep.subr.mxu0 %v171
    %846 = vmatpush1.msra.mxu0 %v170
    %847 = vmatprep.subr.mxu0 %v175
    %848 = vmatpush1.msra.mxu0 %v174
    %849 = vmatprep.subr.mxu0 %v179
    %850 = vmatpush1.msra.mxu0 %v178
    %851 = vmatprep.subr.mxu0 %v183
    %852 = vmatpush1.msra.mxu0 %v182
    %853 = vmatprep.subr.mxu0 %v187
    %854 = vmatpush1.msra.mxu0 %v186
    %855 = vmatprep.subr.mxu0 %v191
    %856 = vmatpush1.msra.mxu0 %v190
    %857 = vmatprep.subr.mxu0 %v195
    %858 = vmatpush1.msra.mxu0 %v194
    %859 = vmatprep.subr.mxu0 %v199
    %860 = vmatpush1.msra.mxu0 %v198
    %861 = vmatprep.subr.mxu0 %v203
    %862 = vmatpush1.msra.mxu0 %v202
    %863 = vmatprep.subr.mxu0 0.0
    %864 = vmatpush1.msra.mxu0 0.0
    %865 = vmatprep.subr.mxu0 0.0
    %866 = vmatpush1.msra.mxu0 0.0
    %867 = vmatprep.subr.mxu0 0.0
    %868 = vmatpush1.msra.mxu0 0.0
    %869 = vmatprep.subr.mxu0 0.0
    %870 = vmatpush1.msra.mxu0 0.0
    %871 = vmatprep.subr.mxu0 0.0
    %872 = vmatpush1.msra.mxu0 0.0
    %873 = vmatprep.subr.mxu0 0.0
    %874 = vmatpush1.msra.mxu0 0.0
    %875 = vmatprep.subr.mxu0 0.0
    %876 = vmatpush1.msra.mxu0 0.0
    %877 = vmatprep.subr.mxu0 0.0
    %878 = vmatpush1.msra.mxu0 0.0
    %879 = vmatprep.subr.mxu0 0.0
    %880 = vmatpush1.msra.mxu0 0.0
    %881 = vmatprep.subr.mxu0 0.0
    %882 = vmatpush1.msra.mxu0 0.0
    %883 = vmatprep.subr.mxu0 0.0
    %884 = vmatpush1.msra.mxu0 0.0
    %885 = vmatprep.subr.mxu0 0.0
    %886 = vmatpush1.msra.mxu0 0.0
    %887 = vmatprep.subr.mxu0 0.0
    %888 = vmatpush1.msra.mxu0 0.0
    %889 = vmatprep.subr.mxu0 0.0
    %890 = vmatpush1.msra.mxu0 0.0
    %891 = vmatprep.subr.mxu0 0.0
    %892 = vmatpush1.msra.mxu0 0.0
    %893 = vmatprep.subr.mxu0 0.0
    %894 = vmatpush1.msra.mxu0 0.0
    %895 = vmatprep.mubr.f32.mxu0 0.0
    %896 = vmatmul.mubr.f32.gmra.mrb[0].mxu0 %v824
    %v897 = vpop.f32.mrb[0].mxu0
    %v898 = vadd.f32 0.0, %v897
    %v899 = vpop.f32.mrb[0].mxu0
    %v900 = vadd.f32 0.0, %v899
    %901 = vdwg.mxu0
    %902 = vmatprep.subr.mxu0 %v145
    %903 = vmatpush1.msra.mxu0 %v144
    %904 = vmatprep.subr.mxu0 %v149
    %905 = vmatpush1.msra.mxu0 %v148
    %906 = vmatprep.subr.mxu0 %v153
    %907 = vmatpush1.msra.mxu0 %v152
    %908 = vmatprep.subr.mxu0 %v157
    %909 = vmatpush1.msra.mxu0 %v156
    %910 = vmatprep.subr.mxu0 %v161
    %911 = vmatpush1.msra.mxu0 %v160
    %912 = vmatprep.subr.mxu0 %v165
    %913 = vmatpush1.msra.mxu0 %v164
    %914 = vmatprep.subr.mxu0 %v169
    %915 = vmatpush1.msra.mxu0 %v168
    %916 = vmatprep.subr.mxu0 %v173
    %917 = vmatpush1.msra.mxu0 %v172
    %918 = vmatprep.subr.mxu0 %v177
    %919 = vmatpush1.msra.mxu0 %v176
    %920 = vmatprep.subr.mxu0 %v181
    %921 = vmatpush1.msra.mxu0 %v180
    %922 = vmatprep.subr.mxu0 %v185
    %923 = vmatpush1.msra.mxu0 %v184
    %924 = vmatprep.subr.mxu0 %v189
    %925 = vmatpush1.msra.mxu0 %v188
    %926 = vmatprep.subr.mxu0 %v193
    %927 = vmatpush1.msra.mxu0 %v192
    %928 = vmatprep.subr.mxu0 %v197
    %929 = vmatpush1.msra.mxu0 %v196
    %930 = vmatprep.subr.mxu0 %v201
    %931 = vmatpush1.msra.mxu0 %v200
    %932 = vmatprep.subr.mxu0 %v205
    %933 = vmatpush1.msra.mxu0 %v204
    %934 = vmatprep.subr.mxu0 0.0
    %935 = vmatpush1.msra.mxu0 0.0
    %936 = vmatprep.subr.mxu0 0.0
    %937 = vmatpush1.msra.mxu0 0.0
    %938 = vmatprep.subr.mxu0 0.0
    %939 = vmatpush1.msra.mxu0 0.0
    %940 = vmatprep.subr.mxu0 0.0
    %941 = vmatpush1.msra.mxu0 0.0
    %942 = vmatprep.subr.mxu0 0.0
    %943 = vmatpush1.msra.mxu0 0.0
    %944 = vmatprep.subr.mxu0 0.0
    %945 = vmatpush1.msra.mxu0 0.0
    %946 = vmatprep.subr.mxu0 0.0
    %947 = vmatpush1.msra.mxu0 0.0
    %948 = vmatprep.subr.mxu0 0.0
    %949 = vmatpush1.msra.mxu0 0.0
    %950 = vmatprep.subr.mxu0 0.0
    %951 = vmatpush1.msra.mxu0 0.0
    %952 = vmatprep.subr.mxu0 0.0
    %953 = vmatpush1.msra.mxu0 0.0
    %954 = vmatprep.subr.mxu0 0.0
    %955 = vmatpush1.msra.mxu0 0.0
    %956 = vmatprep.subr.mxu0 0.0
    %957 = vmatpush1.msra.mxu0 0.0
    %958 = vmatprep.subr.mxu0 0.0
    %959 = vmatpush1.msra.mxu0 0.0
    %960 = vmatprep.subr.mxu0 0.0
    %961 = vmatpush1.msra.mxu0 0.0
    %962 = vmatprep.subr.mxu0 0.0
    %963 = vmatpush1.msra.mxu0 0.0
    %964 = vmatprep.subr.mxu0 0.0
    %965 = vmatpush1.msra.mxu0 0.0
    %966 = vmatprep.mubr.f32.mxu0 0.0
    %967 = vmatmul.mubr.f32.gmra.mrb[0].mxu0 %v824
    %v968 = vpop.f32.mrb[0].mxu0
    %v969 = vadd.f32 0.0, %v968
    %v970 = vpop.f32.mrb[0].mxu0
    %v971 = vadd.f32 0.0, %v970
    %972 = vdwg.mxu0
    %v973 = vadd.f32 %v827, %v898
    %v974 = vadd.f32 %v828, %v900
    %v975 = vadd.f32 %v829, %v969
    %v976 = vadd.f32 %v830, %v971
    %v977 = vmul.f32 %v973, 0.5
    %v978 = vtanh.pop %v977
    %v979 = vmul.f32 %v978, 0.5
    %v980 = vadd.f32 %v979, 0.5
    %v981 = vmul.f32 %v974, 0.5
    %v982 = vtanh.pop %v981
    %v983 = vmul.f32 %v982, 0.5
    %v984 = vadd.f32 %v983, 0.5
    %v985 = vtanh.pop %v975
    %v986 = vmul.f32 %v976, 0.5
    %v987 = vtanh.pop %v986
    %v988 = vmul.f32 %v987, 0.5
    %v989 = vadd.f32 %v988, 0.5
    %v990 = vmul.f32 %v984, %v822
    %v991 = vmul.f32 %v980, %v985
    %v992 = vadd.f32 %v990, %v991
    %v993 = vtanh.pop %v992
    %v994 = vmul.f32 %v989, %v993
    %s995 = scalar_lea.vmem [#allocation4], 16
    %996 = vst [vmem:[%s995] sm:$0xff] %v994
    %v997 = vld [vmem:[#allocation5 + $0x60] sm:$0xff]
    %v998 = vld [vmem:[#allocation5 + $0x68] sm:$0xff]
    %v999 = vld [vmem:[#allocation5 + $0x70] sm:$0xff]
    %v1000 = vld [vmem:[#allocation5 + $0x78] sm:$0xff]
    %1001 = vmatprep.subr.mxu0 %v143
    %1002 = vmatpush1.msra.mxu0 %v142
    %1003 = vmatprep.subr.mxu0 %v147
    %1004 = vmatpush1.msra.mxu0 %v146
    %1005 = vmatprep.subr.mxu0 %v151
    %1006 = vmatpush1.msra.mxu0 %v150
    %1007 = vmatprep.subr.mxu0 %v155
    %1008 = vmatpush1.msra.mxu0 %v154
    %1009 = vmatprep.subr.mxu0 %v159
    %1010 = vmatpush1.msra.mxu0 %v158
    %1011 = vmatprep.subr.mxu0 %v163
    %1012 = vmatpush1.msra.mxu0 %v162
    %1013 = vmatprep.subr.mxu0 %v167
    %1014 = vmatpush1.msra.mxu0 %v166
    %1015 = vmatprep.subr.mxu0 %v171
    %1016 = vmatpush1.msra.mxu0 %v170
    %1017 = vmatprep.subr.mxu0 %v175
    %1018 = vmatpush1.msra.mxu0 %v174
    %1019 = vmatprep.subr.mxu0 %v179
    %1020 = vmatpush1.msra.mxu0 %v178
    %1021 = vmatprep.subr.mxu0 %v183
    %1022 = vmatpush1.msra.mxu0 %v182
    %1023 = vmatprep.subr.mxu0 %v187
    %1024 = vmatpush1.msra.mxu0 %v186
    %1025 = vmatprep.subr.mxu0 %v191
    %1026 = vmatpush1.msra.mxu0 %v190
    %1027 = vmatprep.subr.mxu0 %v195
    %1028 = vmatpush1.msra.mxu0 %v194
    %1029 = vmatprep.subr.mxu0 %v199
    %1030 = vmatpush1.msra.mxu0 %v198
    %1031 = vmatprep.subr.mxu0 %v203
    %1032 = vmatpush1.msra.mxu0 %v202
    %1033 = vmatprep.subr.mxu0 0.0
    %1034 = vmatpush1.msra.mxu0 0.0
    %1035 = vmatprep.subr.mxu0 0.0
    %1036 = vmatpush1.msra.mxu0 0.0
    %1037 = vmatprep.subr.mxu0 0.0
    %1038 = vmatpush1.msra.mxu0 0.0
    %1039 = vmatprep.subr.mxu0 0.0
    %1040 = vmatpush1.msra.mxu0 0.0
    %1041 = vmatprep.subr.mxu0 0.0
    %1042 = vmatpush1.msra.mxu0 0.0
    %1043 = vmatprep.subr.mxu0 0.0
    %1044 = vmatpush1.msra.mxu0 0.0
    %1045 = vmatprep.subr.mxu0 0.0
    %1046 = vmatpush1.msra.mxu0 0.0
    %1047 = vmatprep.subr.mxu0 0.0
    %1048 = vmatpush1.msra.mxu0 0.0
    %1049 = vmatprep.subr.mxu0 0.0
    %1050 = vmatpush1.msra.mxu0 0.0
    %1051 = vmatprep.subr.mxu0 0.0
    %1052 = vmatpush1.msra.mxu0 0.0
    %1053 = vmatprep.subr.mxu0 0.0
    %1054 = vmatpush1.msra.mxu0 0.0
    %1055 = vmatprep.subr.mxu0 0.0
    %1056 = vmatpush1.msra.mxu0 0.0
    %1057 = vmatprep.subr.mxu0 0.0
    %1058 = vmatpush1.msra.mxu0 0.0
    %1059 = vmatprep.subr.mxu0 0.0
    %1060 = vmatpush1.msra.mxu0 0.0
    %1061 = vmatprep.subr.mxu0 0.0
    %1062 = vmatpush1.msra.mxu0 0.0
    %1063 = vmatprep.subr.mxu0 0.0
    %1064 = vmatpush1.msra.mxu0 0.0
    %1065 = vmatprep.mubr.f32.mxu0 0.0
    %1066 = vmatmul.mubr.f32.gmra.mrb[0].mxu0 %v994
    %v1067 = vpop.f32.mrb[0].mxu0
    %v1068 = vadd.f32 0.0, %v1067
    %v1069 = vpop.f32.mrb[0].mxu0
    %v1070 = vadd.f32 0.0, %v1069
    %1071 = vdwg.mxu0
    %1072 = vmatprep.subr.mxu0 %v145
    %1073 = vmatpush1.msra.mxu0 %v144
    %1074 = vmatprep.subr.mxu0 %v149
    %1075 = vmatpush1.msra.mxu0 %v148
    %1076 = vmatprep.subr.mxu0 %v153
    %1077 = vmatpush1.msra.mxu0 %v152
    %1078 = vmatprep.subr.mxu0 %v157
    %1079 = vmatpush1.msra.mxu0 %v156
    %1080 = vmatprep.subr.mxu0 %v161
    %1081 = vmatpush1.msra.mxu0 %v160
    %1082 = vmatprep.subr.mxu0 %v165
    %1083 = vmatpush1.msra.mxu0 %v164
    %1084 = vmatprep.subr.mxu0 %v169
    %1085 = vmatpush1.msra.mxu0 %v168
    %1086 = vmatprep.subr.mxu0 %v173
    %1087 = vmatpush1.msra.mxu0 %v172
    %1088 = vmatprep.subr.mxu0 %v177
    %1089 = vmatpush1.msra.mxu0 %v176
    %1090 = vmatprep.subr.mxu0 %v181
    %1091 = vmatpush1.msra.mxu0 %v180
    %1092 = vmatprep.subr.mxu0 %v185
    %1093 = vmatpush1.msra.mxu0 %v184
    %1094 = vmatprep.subr.mxu0 %v189
    %1095 = vmatpush1.msra.mxu0 %v188
    %1096 = vmatprep.subr.mxu0 %v193
    %1097 = vmatpush1.msra.mxu0 %v192
    %1098 = vmatprep.subr.mxu0 %v197
    %1099 = vmatpush1.msra.mxu0 %v196
    %1100 = vmatprep.subr.mxu0 %v201
    %1101 = vmatpush1.msra.mxu0 %v200
    %1102 = vmatprep.subr.mxu0 %v205
    %1103 = vmatpush1.msra.mxu0 %v204
    %1104 = vmatprep.subr.mxu0 0.0
    %1105 = vmatpush1.msra.mxu0 0.0
    %1106 = vmatprep.subr.mxu0 0.0
    %1107 = vmatpush1.msra.mxu0 0.0
    %1108 = vmatprep.subr.mxu0 0.0
    %1109 = vmatpush1.msra.mxu0 0.0
    %1110 = vmatprep.subr.mxu0 0.0
    %1111 = vmatpush1.msra.mxu0 0.0
    %1112 = vmatprep.subr.mxu0 0.0
    %1113 = vmatpush1.msra.mxu0 0.0
    %1114 = vmatprep.subr.mxu0 0.0
    %1115 = vmatpush1.msra.mxu0 0.0
    %1116 = vmatprep.subr.mxu0 0.0
    %1117 = vmatpush1.msra.mxu0 0.0
    %1118 = vmatprep.subr.mxu0 0.0
    %1119 = vmatpush1.msra.mxu0 0.0
    %1120 = vmatprep.subr.mxu0 0.0
    %1121 = vmatpush1.msra.mxu0 0.0
    %1122 = vmatprep.subr.mxu0 0.0
    %1123 = vmatpush1.msra.mxu0 0.0
    %1124 = vmatprep.subr.mxu0 0.0
    %1125 = vmatpush1.msra.mxu0 0.0
    %1126 = vmatprep.subr.mxu0 0.0
    %1127 = vmatpush1.msra.mxu0 0.0
    %1128 = vmatprep.subr.mxu0 0.0
    %1129 = vmatpush1.msra.mxu0 0.0
    %1130 = vmatprep.subr.mxu0 0.0
    %1131 = vmatpush1.msra.mxu0 0.0
    %1132 = vmatprep.subr.mxu0 0.0
    %1133 = vmatpush1.msra.mxu0 0.0
    %1134 = vmatprep.subr.mxu0 0.0
    %1135 = vmatpush1.msra.mxu0 0.0
    %1136 = vmatprep.mubr.f32.mxu0 0.0
    %1137 = vmatmul.mubr.f32.gmra.mrb[0].mxu0 %v994
    %v1138 = vpop.f32.mrb[0].mxu0
    %v1139 = vadd.f32 0.0, %v1138
    %v1140 = vpop.f32.mrb[0].mxu0
    %v1141 = vadd.f32 0.0, %v1140
    %1142 = vdwg.mxu0
    %v1143 = vadd.f32 %v997, %v1068
    %v1144 = vadd.f32 %v998, %v1070
    %v1145 = vadd.f32 %v999, %v1139
    %v1146 = vadd.f32 %v1000, %v1141
    %v1147 = vmul.f32 %v1143, 0.5
    %v1148 = vtanh.pop %v1147
    %v1149 = vmul.f32 %v1148, 0.5
    %v1150 = vadd.f32 %v1149, 0.5
    %v1151 = vmul.f32 %v1144, 0.5
    %v1152 = vtanh.pop %v1151
    %v1153 = vmul.f32 %v1152, 0.5
    %v1154 = vadd.f32 %v1153, 0.5
    %v1155 = vtanh.pop %v1145
    %v1156 = vmul.f32 %v1146, 0.5
    %v1157 = vtanh.pop %v1156
    %v1158 = vmul.f32 %v1157, 0.5
    %v1159 = vadd.f32 %v1158, 0.5
    %v1160 = vmul.f32 %v1154, %v992
    %v1161 = vmul.f32 %v1150, %v1155
    %v1162 = vadd.f32 %v1160, %v1161
    %v1163 = vtanh.pop %v1162
    %v1164 = vmul.f32 %v1159, %v1163
    %s1165 = scalar_lea.vmem [#allocation4], 24
    %1166 = vst [vmem:[%s1165] sm:$0xff] %v1164
    %v1167 = vld [vmem:[#allocation5 + $0x80] sm:$0xff]
    %v1168 = vld [vmem:[#allocation5 + $0x88] sm:$0xff]
    %v1169 = vld [vmem:[#allocation5 + $0x90] sm:$0xff]
    %v1170 = vld [vmem:[#allocation5 + $0x98] sm:$0xff]
    %1171 = vmatprep.subr.mxu0 %v143
    %1172 = vmatpush1.msra.mxu0 %v142
    %1173 = vmatprep.subr.mxu0 %v147
    %1174 = vmatpush1.msra.mxu0 %v146
    %1175 = vmatprep.subr.mxu0 %v151
    %1176 = vmatpush1.msra.mxu0 %v150
    %1177 = vmatprep.subr.mxu0 %v155
    %1178 = vmatpush1.msra.mxu0 %v154
    %1179 = vmatprep.subr.mxu0 %v159
    %1180 = vmatpush1.msra.mxu0 %v158
    %1181 = vmatprep.subr.mxu0 %v163
    %1182 = vmatpush1.msra.mxu0 %v162
    %1183 = vmatprep.subr.mxu0 %v167
    %1184 = vmatpush1.msra.mxu0 %v166
    %1185 = vmatprep.subr.mxu0 %v171
    %1186 = vmatpush1.msra.mxu0 %v170
    %1187 = vmatprep.subr.mxu0 %v175
    %1188 = vmatpush1.msra.mxu0 %v174
    %1189 = vmatprep.subr.mxu0 %v179
    %1190 = vmatpush1.msra.mxu0 %v178
    %1191 = vmatprep.subr.mxu0 %v183
    %1192 = vmatpush1.msra.mxu0 %v182
    %1193 = vmatprep.subr.mxu0 %v187
    %1194 = vmatpush1.msra.mxu0 %v186
    %1195 = vmatprep.subr.mxu0 %v191
    %1196 = vmatpush1.msra.mxu0 %v190
    %1197 = vmatprep.subr.mxu0 %v195
    %1198 = vmatpush1.msra.mxu0 %v194
    %1199 = vmatprep.subr.mxu0 %v199
    %1200 = vmatpush1.msra.mxu0 %v198
    %1201 = vmatprep.subr.mxu0 %v203
    %1202 = vmatpush1.msra.mxu0 %v202
    %1203 = vmatprep.subr.mxu0 0.0
    %1204 = vmatpush1.msra.mxu0 0.0
    %1205 = vmatprep.subr.mxu0 0.0
    %1206 = vmatpush1.msra.mxu0 0.0
    %1207 = vmatprep.subr.mxu0 0.0
    %1208 = vmatpush1.msra.mxu0 0.0
    %1209 = vmatprep.subr.mxu0 0.0
    %1210 = vmatpush1.msra.mxu0 0.0
    %1211 = vmatprep.subr.mxu0 0.0
    %1212 = vmatpush1.msra.mxu0 0.0
    %1213 = vmatprep.subr.mxu0 0.0
    %1214 = vmatpush1.msra.mxu0 0.0
    %1215 = vmatprep.subr.mxu0 0.0
    %1216 = vmatpush1.msra.mxu0 0.0
    %1217 = vmatprep.subr.mxu0 0.0
    %1218 = vmatpush1.msra.mxu0 0.0
    %1219 = vmatprep.subr.mxu0 0.0
    %1220 = vmatpush1.msra.mxu0 0.0
    %1221 = vmatprep.subr.mxu0 0.0
    %1222 = vmatpush1.msra.mxu0 0.0
    %1223 = vmatprep.subr.mxu0 0.0
    %1224 = vmatpush1.msra.mxu0 0.0
    %1225 = vmatprep.subr.mxu0 0.0
    %1226 = vmatpush1.msra.mxu0 0.0
    %1227 = vmatprep.subr.mxu0 0.0
    %1228 = vmatpush1.msra.mxu0 0.0
    %1229 = vmatprep.subr.mxu0 0.0
    %1230 = vmatpush1.msra.mxu0 0.0
    %1231 = vmatprep.subr.mxu0 0.0
    %1232 = vmatpush1.msra.mxu0 0.0
    %1233 = vmatprep.subr.mxu0 0.0
    %1234 = vmatpush1.msra.mxu0 0.0
    %1235 = vmatprep.mubr.f32.mxu0 0.0
    %1236 = vmatmul.mubr.f32.gmra.mrb[0].mxu0 %v1164
    %v1237 = vpop.f32.mrb[0].mxu0
    %v1238 = vadd.f32 0.0, %v1237
    %v1239 = vpop.f32.mrb[0].mxu0
    %v1240 = vadd.f32 0.0, %v1239
    %1241 = vdwg.mxu0
    %1242 = vmatprep.subr.mxu0 %v145
    %1243 = vmatpush1.msra.mxu0 %v144
    %1244 = vmatprep.subr.mxu0 %v149
    %1245 = vmatpush1.msra.mxu0 %v148
    %1246 = vmatprep.subr.mxu0 %v153
    %1247 = vmatpush1.msra.mxu0 %v152
    %1248 = vmatprep.subr.mxu0 %v157
    %1249 = vmatpush1.msra.mxu0 %v156
    %1250 = vmatprep.subr.mxu0 %v161
    %1251 = vmatpush1.msra.mxu0 %v160
    %1252 = vmatprep.subr.mxu0 %v165
    %1253 = vmatpush1.msra.mxu0 %v164
    %1254 = vmatprep.subr.mxu0 %v169
    %1255 = vmatpush1.msra.mxu0 %v168
    %1256 = vmatprep.subr.mxu0 %v173
    %1257 = vmatpush1.msra.mxu0 %v172
    %1258 = vmatprep.subr.mxu0 %v177
    %1259 = vmatpush1.msra.mxu0 %v176
    %1260 = vmatprep.subr.mxu0 %v181
    %1261 = vmatpush1.msra.mxu0 %v180
    %1262 = vmatprep.subr.mxu0 %v185
    %1263 = vmatpush1.msra.mxu0 %v184
    %1264 = vmatprep.subr.mxu0 %v189
    %1265 = vmatpush1.msra.mxu0 %v188
    %1266 = vmatprep.subr.mxu0 %v193
    %1267 = vmatpush1.msra.mxu0 %v192
    %1268 = vmatprep.subr.mxu0 %v197
    %1269 = vmatpush1.msra.mxu0 %v196
    %1270 = vmatprep.subr.mxu0 %v201
    %1271 = vmatpush1.msra.mxu0 %v200
    %1272 = vmatprep.subr.mxu0 %v205
    %1273 = vmatpush1.msra.mxu0 %v204
    %1274 = vmatprep.subr.mxu0 0.0
    %1275 = vmatpush1.msra.mxu0 0.0
    %1276 = vmatprep.subr.mxu0 0.0
    %1277 = vmatpush1.msra.mxu0 0.0
    %1278 = vmatprep.subr.mxu0 0.0
    %1279 = vmatpush1.msra.mxu0 0.0
    %1280 = vmatprep.subr.mxu0 0.0
    %1281 = vmatpush1.msra.mxu0 0.0
    %1282 = vmatprep.subr.mxu0 0.0
    %1283 = vmatpush1.msra.mxu0 0.0
    %1284 = vmatprep.subr.mxu0 0.0
    %1285 = vmatpush1.msra.mxu0 0.0
    %1286 = vmatprep.subr.mxu0 0.0
    %1287 = vmatpush1.msra.mxu0 0.0
    %1288 = vmatprep.subr.mxu0 0.0
    %1289 = vmatpush1.msra.mxu0 0.0
    %1290 = vmatprep.subr.mxu0 0.0
    %1291 = vmatpush1.msra.mxu0 0.0
    %1292 = vmatprep.subr.mxu0 0.0
    %1293 = vmatpush1.msra.mxu0 0.0
    %1294 = vmatprep.subr.mxu0 0.0
    %1295 = vmatpush1.msra.mxu0 0.0
    %1296 = vmatprep.subr.mxu0 0.0
    %1297 = vmatpush1.msra.mxu0 0.0
    %1298 = vmatprep.subr.mxu0 0.0
    %1299 = vmatpush1.msra.mxu0 0.0
    %1300 = vmatprep.subr.mxu0 0.0
    %1301 = vmatpush1.msra.mxu0 0.0
    %1302 = vmatprep.subr.mxu0 0.0
    %1303 = vmatpush1.msra.mxu0 0.0
    %1304 = vmatprep.subr.mxu0 0.0
    %1305 = vmatpush1.msra.mxu0 0.0
    %1306 = vmatprep.mubr.f32.mxu0 0.0
    %1307 = vmatmul.mubr.f32.gmra.mrb[0].mxu0 %v1164
    %v1308 = vpop.f32.mrb[0].mxu0
    %v1309 = vadd.f32 0.0, %v1308
    %v1310 = vpop.f32.mrb[0].mxu0
    %v1311 = vadd.f32 0.0, %v1310
    %1312 = vdwg.mxu0
    %v1313 = vadd.f32 %v1167, %v1238
    %v1314 = vadd.f32 %v1168, %v1240
    %v1315 = vadd.f32 %v1169, %v1309
    %v1316 = vadd.f32 %v1170, %v1311
    %v1317 = vmul.f32 %v1313, 0.5
    %v1318 = vtanh.pop %v1317
    %v1319 = vmul.f32 %v1318, 0.5
    %v1320 = vadd.f32 %v1319, 0.5
    %v1321 = vmul.f32 %v1314, 0.5
    %v1322 = vtanh.pop %v1321
    %v1323 = vmul.f32 %v1322, 0.5
    %v1324 = vadd.f32 %v1323, 0.5
    %v1325 = vtanh.pop %v1315
    %v1326 = vmul.f32 %v1316, 0.5
    %v1327 = vtanh.pop %v1326
    %v1328 = vmul.f32 %v1327, 0.5
    %v1329 = vadd.f32 %v1328, 0.5
    %v1330 = vmul.f32 %v1324, %v1162
    %v1331 = vmul.f32 %v1320, %v1325
    %v1332 = vadd.f32 %v1330, %v1331
    %v1333 = vtanh.pop %v1332
    %v1334 = vmul.f32 %v1329, %v1333
    %s1335 = scalar_lea.vmem [#allocation4], 32
    %1336 = vst [vmem:[%s1335] sm:$0xff] %v1334
    %v1337 = vld [vmem:[#allocation5 + $0xa0] sm:$0xff]
    %v1338 = vld [vmem:[#allocation5 + $0xa8] sm:$0xff]
    %v1339 = vld [vmem:[#allocation5 + $0xb0] sm:$0xff]
    %v1340 = vld [vmem:[#allocation5 + $0xb8] sm:$0xff]
    %1341 = vmatprep.subr.mxu0 %v143
    %1342 = vmatpush1.msra.mxu0 %v142
    %1343 = vmatprep.subr.mxu0 %v147
    %1344 = vmatpush1.msra.mxu0 %v146
    %1345 = vmatprep.subr.mxu0 %v151
    %1346 = vmatpush1.msra.mxu0 %v150
    %1347 = vmatprep.subr.mxu0 %v155
    %1348 = vmatpush1.msra.mxu0 %v154
    %1349 = vmatprep.subr.mxu0 %v159
    %1350 = vmatpush1.msra.mxu0 %v158
    %1351 = vmatprep.subr.mxu0 %v163
    %1352 = vmatpush1.msra.mxu0 %v162
    %1353 = vmatprep.subr.mxu0 %v167
    %1354 = vmatpush1.msra.mxu0 %v166
    %1355 = vmatprep.subr.mxu0 %v171
    %1356 = vmatpush1.msra.mxu0 %v170
    %1357 = vmatprep.subr.mxu0 %v175
    %1358 = vmatpush1.msra.mxu0 %v174
    %1359 = vmatprep.subr.mxu0 %v179
    %1360 = vmatpush1.msra.mxu0 %v178
    %1361 = vmatprep.subr.mxu0 %v183
    %1362 = vmatpush1.msra.mxu0 %v182
    %1363 = vmatprep.subr.mxu0 %v187
    %1364 = vmatpush1.msra.mxu0 %v186
    %1365 = vmatprep.subr.mxu0 %v191
    %1366 = vmatpush1.msra.mxu0 %v190
    %1367 = vmatprep.subr.mxu0 %v195
    %1368 = vmatpush1.msra.mxu0 %v194
    %1369 = vmatprep.subr.mxu0 %v199
    %1370 = vmatpush1.msra.mxu0 %v198
    %1371 = vmatprep.subr.mxu0 %v203
    %1372 = vmatpush1.msra.mxu0 %v202
    %1373 = vmatprep.subr.mxu0 0.0
    %1374 = vmatpush1.msra.mxu0 0.0
    %1375 = vmatprep.subr.mxu0 0.0
    %1376 = vmatpush1.msra.mxu0 0.0
    %1377 = vmatprep.subr.mxu0 0.0
    %1378 = vmatpush1.msra.mxu0 0.0
    %1379 = vmatprep.subr.mxu0 0.0
    %1380 = vmatpush1.msra.mxu0 0.0
    %1381 = vmatprep.subr.mxu0 0.0
    %1382 = vmatpush1.msra.mxu0 0.0
    %1383 = vmatprep.subr.mxu0 0.0
    %1384 = vmatpush1.msra.mxu0 0.0
    %1385 = vmatprep.subr.mxu0 0.0
    %1386 = vmatpush1.msra.mxu0 0.0
    %1387 = vmatprep.subr.mxu0 0.0
    %1388 = vmatpush1.msra.mxu0 0.0
    %1389 = vmatprep.subr.mxu0 0.0
    %1390 = vmatpush1.msra.mxu0 0.0
    %1391 = vmatprep.subr.mxu0 0.0
    %1392 = vmatpush1.msra.mxu0 0.0
    %1393 = vmatprep.subr.mxu0 0.0
    %1394 = vmatpush1.msra.mxu0 0.0
    %1395 = vmatprep.subr.mxu0 0.0
    %1396 = vmatpush1.msra.mxu0 0.0
    %1397 = vmatprep.subr.mxu0 0.0
    %1398 = vmatpush1.msra.mxu0 0.0
    %1399 = vmatprep.subr.mxu0 0.0
    %1400 = vmatpush1.msra.mxu0 0.0
    %1401 = vmatprep.subr.mxu0 0.0
    %1402 = vmatpush1.msra.mxu0 0.0
    %1403 = vmatprep.subr.mxu0 0.0
    %1404 = vmatpush1.msra.mxu0 0.0
    %1405 = vmatprep.mubr.f32.mxu0 0.0
    %1406 = vmatmul.mubr.f32.gmra.mrb[0].mxu0 %v1334
    %v1407 = vpop.f32.mrb[0].mxu0
    %v1408 = vadd.f32 0.0, %v1407
    %v1409 = vpop.f32.mrb[0].mxu0
    %v1410 = vadd.f32 0.0, %v1409
    %1411 = vdwg.mxu0
    %1412 = vmatprep.subr.mxu0 %v145
    %1413 = vmatpush1.msra.mxu0 %v144
    %1414 = vmatprep.subr.mxu0 %v149
    %1415 = vmatpush1.msra.mxu0 %v148
    %1416 = vmatprep.subr.mxu0 %v153
    %1417 = vmatpush1.msra.mxu0 %v152
    %1418 = vmatprep.subr.mxu0 %v157
    %1419 = vmatpush1.msra.mxu0 %v156
    %1420 = vmatprep.subr.mxu0 %v161
    %1421 = vmatpush1.msra.mxu0 %v160
    %1422 = vmatprep.subr.mxu0 %v165
    %1423 = vmatpush1.msra.mxu0 %v164
    %1424 = vmatprep.subr.mxu0 %v169
    %1425 = vmatpush1.msra.mxu0 %v168
    %1426 = vmatprep.subr.mxu0 %v173
    %1427 = vmatpush1.msra.mxu0 %v172
    %1428 = vmatprep.subr.mxu0 %v177
    %1429 = vmatpush1.msra.mxu0 %v176
    %1430 = vmatprep.subr.mxu0 %v181
    %1431 = vmatpush1.msra.mxu0 %v180
    %1432 = vmatprep.subr.mxu0 %v185
    %1433 = vmatpush1.msra.mxu0 %v184
    %1434 = vmatprep.subr.mxu0 %v189
    %1435 = vmatpush1.msra.mxu0 %v188
    %1436 = vmatprep.subr.mxu0 %v193
    %1437 = vmatpush1.msra.mxu0 %v192
    %1438 = vmatprep.subr.mxu0 %v197
    %1439 = vmatpush1.msra.mxu0 %v196
    %1440 = vmatprep.subr.mxu0 %v201
    %1441 = vmatpush1.msra.mxu0 %v200
    %1442 = vmatprep.subr.mxu0 %v205
    %1443 = vmatpush1.msra.mxu0 %v204
    %1444 = vmatprep.subr.mxu0 0.0
    %1445 = vmatpush1.msra.mxu0 0.0
    %1446 = vmatprep.subr.mxu0 0.0
    %1447 = vmatpush1.msra.mxu0 0.0
    %1448 = vmatprep.subr.mxu0 0.0
    %1449 = vmatpush1.msra.mxu0 0.0
    %1450 = vmatprep.subr.mxu0 0.0
    %1451 = vmatpush1.msra.mxu0 0.0
    %1452 = vmatprep.subr.mxu0 0.0
    %1453 = vmatpush1.msra.mxu0 0.0
    %1454 = vmatprep.subr.mxu0 0.0
    %1455 = vmatpush1.msra.mxu0 0.0
    %1456 = vmatprep.subr.mxu0 0.0
    %1457 = vmatpush1.msra.mxu0 0.0
    %1458 = vmatprep.subr.mxu0 0.0
    %1459 = vmatpush1.msra.mxu0 0.0
    %1460 = vmatprep.subr.mxu0 0.0
    %1461 = vmatpush1.msra.mxu0 0.0
    %1462 = vmatprep.subr.mxu0 0.0
    %1463 = vmatpush1.msra.mxu0 0.0
    %1464 = vmatprep.subr.mxu0 0.0
    %1465 = vmatpush1.msra.mxu0 0.0
    %1466 = vmatprep.subr.mxu0 0.0
    %1467 = vmatpush1.msra.mxu0 0.0
    %1468 = vmatprep.subr.mxu0 0.0
    %1469 = vmatpush1.msra.mxu0 0.0
    %1470 = vmatprep.subr.mxu0 0.0
    %1471 = vmatpush1.msra.mxu0 0.0
    %1472 = vmatprep.subr.mxu0 0.0
    %1473 = vmatpush1.msra.mxu0 0.0
    %1474 = vmatprep.subr.mxu0 0.0
    %1475 = vmatpush1.msra.mxu0 0.0
    %1476 = vmatprep.mubr.f32.mxu0 0.0
    %1477 = vmatmul.mubr.f32.gmra.mrb[0].mxu0 %v1334
    %v1478 = vpop.f32.mrb[0].mxu0
    %v1479 = vadd.f32 0.0, %v1478
    %v1480 = vpop.f32.mrb[0].mxu0
    %v1481 = vadd.f32 0.0, %v1480
    %1482 = vdwg.mxu0
    %v1483 = vadd.f32 %v1337, %v1408
    %v1484 = vadd.f32 %v1338, %v1410
    %v1485 = vadd.f32 %v1339, %v1479
    %v1486 = vadd.f32 %v1340, %v1481
    %v1487 = vmul.f32 %v1483, 0.5
    %v1488 = vtanh.pop %v1487
    %v1489 = vmul.f32 %v1488, 0.5
    %v1490 = vadd.f32 %v1489, 0.5
    %v1491 = vmul.f32 %v1484, 0.5
    %v1492 = vtanh.pop %v1491
    %v1493 = vmul.f32 %v1492, 0.5
    %v1494 = vadd.f32 %v1493, 0.5
    %v1495 = vtanh.pop %v1485
    %v1496 = vmul.f32 %v1486, 0.5
    %v1497 = vtanh.pop %v1496
    %v1498 = vmul.f32 %v1497, 0.5
    %v1499 = vadd.f32 %v1498, 0.5
    %v1500 = vmul.f32 %v1494, %v1332
    %v1501 = vmul.f32 %v1490, %v1495
    %v1502 = vadd.f32 %v1500, %v1501
    %v1503 = vtanh.pop %v1502
    %v1504 = vmul.f32 %v1499, %v1503
    %s1505 = scalar_lea.vmem [#allocation4], 40
    %1506 = vst [vmem:[%s1505] sm:$0xff] %v1504
    %v1507 = vld [vmem:[#allocation5 + $0xc0] sm:$0xff]
    %v1508 = vld [vmem:[#allocation5 + $0xc8] sm:$0xff]
    %v1509 = vld [vmem:[#allocation5 + $0xd0] sm:$0xff]
    %v1510 = vld [vmem:[#allocation5 + $0xd8] sm:$0xff]
    %1511 = vmatprep.subr.mxu0 %v143
    %1512 = vmatpush1.msra.mxu0 %v142
    %1513 = vmatprep.subr.mxu0 %v147
    %1514 = vmatpush1.msra.mxu0 %v146
    %1515 = vmatprep.subr.mxu0 %v151
    %1516 = vmatpush1.msra.mxu0 %v150
    %1517 = vmatprep.subr.mxu0 %v155
    %1518 = vmatpush1.msra.mxu0 %v154
    %1519 = vmatprep.subr.mxu0 %v159
    %1520 = vmatpush1.msra.mxu0 %v158
    %1521 = vmatprep.subr.mxu0 %v163
    %1522 = vmatpush1.msra.mxu0 %v162
    %1523 = vmatprep.subr.mxu0 %v167
    %1524 = vmatpush1.msra.mxu0 %v166
    %1525 = vmatprep.subr.mxu0 %v171
    %1526 = vmatpush1.msra.mxu0 %v170
    %1527 = vmatprep.subr.mxu0 %v175
    %1528 = vmatpush1.msra.mxu0 %v174
    %1529 = vmatprep.subr.mxu0 %v179
    %1530 = vmatpush1.msra.mxu0 %v178
    %1531 = vmatprep.subr.mxu0 %v183
    %1532 = vmatpush1.msra.mxu0 %v182
    %1533 = vmatprep.subr.mxu0 %v187
    %1534 = vmatpush1.msra.mxu0 %v186
    %1535 = vmatprep.subr.mxu0 %v191
    %1536 = vmatpush1.msra.mxu0 %v190
    %1537 = vmatprep.subr.mxu0 %v195
    %1538 = vmatpush1.msra.mxu0 %v194
    %1539 = vmatprep.subr.mxu0 %v199
    %1540 = vmatpush1.msra.mxu0 %v198
    %1541 = vmatprep.subr.mxu0 %v203
    %1542 = vmatpush1.msra.mxu0 %v202
    %1543 = vmatprep.subr.mxu0 0.0
    %1544 = vmatpush1.msra.mxu0 0.0
    %1545 = vmatprep.subr.mxu0 0.0
    %1546 = vmatpush1.msra.mxu0 0.0
    %1547 = vmatprep.subr.mxu0 0.0
    %1548 = vmatpush1.msra.mxu0 0.0
    %1549 = vmatprep.subr.mxu0 0.0
    %1550 = vmatpush1.msra.mxu0 0.0
    %1551 = vmatprep.subr.mxu0 0.0
    %1552 = vmatpush1.msra.mxu0 0.0
    %1553 = vmatprep.subr.mxu0 0.0
    %1554 = vmatpush1.msra.mxu0 0.0
    %1555 = vmatprep.subr.mxu0 0.0
    %1556 = vmatpush1.msra.mxu0 0.0
    %1557 = vmatprep.subr.mxu0 0.0
    %1558 = vmatpush1.msra.mxu0 0.0
    %1559 = vmatprep.subr.mxu0 0.0
    %1560 = vmatpush1.msra.mxu0 0.0
    %1561 = vmatprep.subr.mxu0 0.0
    %1562 = vmatpush1.msra.mxu0 0.0
    %1563 = vmatprep.subr.mxu0 0.0
    %1564 = vmatpush1.msra.mxu0 0.0
    %1565 = vmatprep.subr.mxu0 0.0
    %1566 = vmatpush1.msra.mxu0 0.0
    %1567 = vmatprep.subr.mxu0 0.0
    %1568 = vmatpush1.msra.mxu0 0.0
    %1569 = vmatprep.subr.mxu0 0.0
    %1570 = vmatpush1.msra.mxu0 0.0
    %1571 = vmatprep.subr.mxu0 0.0
    %1572 = vmatpush1.msra.mxu0 0.0
    %1573 = vmatprep.subr.mxu0 0.0
    %1574 = vmatpush1.msra.mxu0 0.0
    %1575 = vmatprep.mubr.f32.mxu0 0.0
    %1576 = vmatmul.mubr.f32.gmra.mrb[0].mxu0 %v1504
    %v1577 = vpop.f32.mrb[0].mxu0
    %v1578 = vadd.f32 0.0, %v1577
    %v1579 = vpop.f32.mrb[0].mxu0
    %v1580 = vadd.f32 0.0, %v1579
    %1581 = vdwg.mxu0
    %1582 = vmatprep.subr.mxu0 %v145
    %1583 = vmatpush1.msra.mxu0 %v144
    %1584 = vmatprep.subr.mxu0 %v149
    %1585 = vmatpush1.msra.mxu0 %v148
    %1586 = vmatprep.subr.mxu0 %v153
    %1587 = vmatpush1.msra.mxu0 %v152
    %1588 = vmatprep.subr.mxu0 %v157
    %1589 = vmatpush1.msra.mxu0 %v156
    %1590 = vmatprep.subr.mxu0 %v161
    %1591 = vmatpush1.msra.mxu0 %v160
    %1592 = vmatprep.subr.mxu0 %v165
    %1593 = vmatpush1.msra.mxu0 %v164
    %1594 = vmatprep.subr.mxu0 %v169
    %1595 = vmatpush1.msra.mxu0 %v168
    %1596 = vmatprep.subr.mxu0 %v173
    %1597 = vmatpush1.msra.mxu0 %v172
    %1598 = vmatprep.subr.mxu0 %v177
    %1599 = vmatpush1.msra.mxu0 %v176
    %1600 = vmatprep.subr.mxu0 %v181
    %1601 = vmatpush1.msra.mxu0 %v180
    %1602 = vmatprep.subr.mxu0 %v185
    %1603 = vmatpush1.msra.mxu0 %v184
    %1604 = vmatprep.subr.mxu0 %v189
    %1605 = vmatpush1.msra.mxu0 %v188
    %1606 = vmatprep.subr.mxu0 %v193
    %1607 = vmatpush1.msra.mxu0 %v192
    %1608 = vmatprep.subr.mxu0 %v197
    %1609 = vmatpush1.msra.mxu0 %v196
    %1610 = vmatprep.subr.mxu0 %v201
    %1611 = vmatpush1.msra.mxu0 %v200
    %1612 = vmatprep.subr.mxu0 %v205
    %1613 = vmatpush1.msra.mxu0 %v204
    %1614 = vmatprep.subr.mxu0 0.0
    %1615 = vmatpush1.msra.mxu0 0.0
    %1616 = vmatprep.subr.mxu0 0.0
    %1617 = vmatpush1.msra.mxu0 0.0
    %1618 = vmatprep.subr.mxu0 0.0
    %1619 = vmatpush1.msra.mxu0 0.0
    %1620 = vmatprep.subr.mxu0 0.0
    %1621 = vmatpush1.msra.mxu0 0.0
    %1622 = vmatprep.subr.mxu0 0.0
    %1623 = vmatpush1.msra.mxu0 0.0
    %1624 = vmatprep.subr.mxu0 0.0
    %1625 = vmatpush1.msra.mxu0 0.0
    %1626 = vmatprep.subr.mxu0 0.0
    %1627 = vmatpush1.msra.mxu0 0.0
    %1628 = vmatprep.subr.mxu0 0.0
    %1629 = vmatpush1.msra.mxu0 0.0
    %1630 = vmatprep.subr.mxu0 0.0
    %1631 = vmatpush1.msra.mxu0 0.0
    %1632 = vmatprep.subr.mxu0 0.0
    %1633 = vmatpush1.msra.mxu0 0.0
    %1634 = vmatprep.subr.mxu0 0.0
    %1635 = vmatpush1.msra.mxu0 0.0
    %1636 = vmatprep.subr.mxu0 0.0
    %1637 = vmatpush1.msra.mxu0 0.0
    %1638 = vmatprep.subr.mxu0 0.0
    %1639 = vmatpush1.msra.mxu0 0.0
    %1640 = vmatprep.subr.mxu0 0.0
    %1641 = vmatpush1.msra.mxu0 0.0
    %1642 = vmatprep.subr.mxu0 0.0
    %1643 = vmatpush1.msra.mxu0 0.0
    %1644 = vmatprep.subr.mxu0 0.0
    %1645 = vmatpush1.msra.mxu0 0.0
    %1646 = vmatprep.mubr.f32.mxu0 0.0
    %1647 = vmatmul.mubr.f32.gmra.mrb[0].mxu0 %v1504
    %v1648 = vpop.f32.mrb[0].mxu0
    %v1649 = vadd.f32 0.0, %v1648
    %v1650 = vpop.f32.mrb[0].mxu0
    %v1651 = vadd.f32 0.0, %v1650
    %1652 = vdwg.mxu0
    %v1653 = vadd.f32 %v1507, %v1578
    %v1654 = vadd.f32 %v1508, %v1580
    %v1655 = vadd.f32 %v1509, %v1649
    %v1656 = vadd.f32 %v1510, %v1651
    %v1657 = vmul.f32 %v1653, 0.5
    %v1658 = vtanh.pop %v1657
    %v1659 = vmul.f32 %v1658, 0.5
    %v1660 = vadd.f32 %v1659, 0.5
    %v1661 = vmul.f32 %v1654, 0.5
    %v1662 = vtanh.pop %v1661
    %v1663 = vmul.f32 %v1662, 0.5
    %v1664 = vadd.f32 %v1663, 0.5
    %v1665 = vtanh.pop %v1655
    %v1666 = vmul.f32 %v1656, 0.5
    %v1667 = vtanh.pop %v1666
    %v1668 = vmul.f32 %v1667, 0.5
    %v1669 = vadd.f32 %v1668, 0.5
    %v1670 = vmul.f32 %v1664, %v1502
    %v1671 = vmul.f32 %v1660, %v1665
    %v1672 = vadd.f32 %v1670, %v1671
    %v1673 = vtanh.pop %v1672
    %v1674 = vmul.f32 %v1669, %v1673
    %s1675 = scalar_lea.vmem [#allocation4], 48
    %1676 = vst [vmem:[%s1675] sm:$0xff] %v1674
    %v1677 = vld [vmem:[#allocation5 + $0xe0] sm:$0xff]
    %v1678 = vld [vmem:[#allocation5 + $0xe8] sm:$0xff]
    %v1679 = vld [vmem:[#allocation5 + $0xf0] sm:$0xff]
    %v1680 = vld [vmem:[#allocation5 + $0xf8] sm:$0xff]
    %1681 = vmatprep.subr.mxu0 %v143
    %1682 = vmatpush1.msra.mxu0 %v142
    %1683 = vmatprep.subr.mxu0 %v147
    %1684 = vmatpush1.msra.mxu0 %v146
    %1685 = vmatprep.subr.mxu0 %v151
    %1686 = vmatpush1.msra.mxu0 %v150
    %1687 = vmatprep.subr.mxu0 %v155
    %1688 = vmatpush1.msra.mxu0 %v154
    %1689 = vmatprep.subr.mxu0 %v159
    %1690 = vmatpush1.msra.mxu0 %v158
    %1691 = vmatprep.subr.mxu0 %v163
    %1692 = vmatpush1.msra.mxu0 %v162
    %1693 = vmatprep.subr.mxu0 %v167
    %1694 = vmatpush1.msra.mxu0 %v166
    %1695 = vmatprep.subr.mxu0 %v171
    %1696 = vmatpush1.msra.mxu0 %v170
    %1697 = vmatprep.subr.mxu0 %v175
    %1698 = vmatpush1.msra.mxu0 %v174
    %1699 = vmatprep.subr.mxu0 %v179
    %1700 = vmatpush1.msra.mxu0 %v178
    %1701 = vmatprep.subr.mxu0 %v183
    %1702 = vmatpush1.msra.mxu0 %v182
    %1703 = vmatprep.subr.mxu0 %v187
    %1704 = vmatpush1.msra.mxu0 %v186
    %1705 = vmatprep.subr.mxu0 %v191
    %1706 = vmatpush1.msra.mxu0 %v190
    %1707 = vmatprep.subr.mxu0 %v195
    %1708 = vmatpush1.msra.mxu0 %v194
    %1709 = vmatprep.subr.mxu0 %v199
    %1710 = vmatpush1.msra.mxu0 %v198
    %1711 = vmatprep.subr.mxu0 %v203
    %1712 = vmatpush1.msra.mxu0 %v202
    %1713 = vmatprep.subr.mxu0 0.0
    %1714 = vmatpush1.msra.mxu0 0.0
    %1715 = vmatprep.subr.mxu0 0.0
    %1716 = vmatpush1.msra.mxu0 0.0
    %1717 = vmatprep.subr.mxu0 0.0
    %1718 = vmatpush1.msra.mxu0 0.0
    %1719 = vmatprep.subr.mxu0 0.0
    %1720 = vmatpush1.msra.mxu0 0.0
    %1721 = vmatprep.subr.mxu0 0.0
    %1722 = vmatpush1.msra.mxu0 0.0
    %1723 = vmatprep.subr.mxu0 0.0
    %1724 = vmatpush1.msra.mxu0 0.0
    %1725 = vmatprep.subr.mxu0 0.0
    %1726 = vmatpush1.msra.mxu0 0.0
    %1727 = vmatprep.subr.mxu0 0.0
    %1728 = vmatpush1.msra.mxu0 0.0
    %1729 = vmatprep.subr.mxu0 0.0
    %1730 = vmatpush1.msra.mxu0 0.0
    %1731 = vmatprep.subr.mxu0 0.0
    %1732 = vmatpush1.msra.mxu0 0.0
    %1733 = vmatprep.subr.mxu0 0.0
    %1734 = vmatpush1.msra.mxu0 0.0
    %1735 = vmatprep.subr.mxu0 0.0
    %1736 = vmatpush1.msra.mxu0 0.0
    %1737 = vmatprep.subr.mxu0 0.0
    %1738 = vmatpush1.msra.mxu0 0.0
    %1739 = vmatprep.subr.mxu0 0.0
    %1740 = vmatpush1.msra.mxu0 0.0
    %1741 = vmatprep.subr.mxu0 0.0
    %1742 = vmatpush1.msra.mxu0 0.0
    %1743 = vmatprep.subr.mxu0 0.0
    %1744 = vmatpush1.msra.mxu0 0.0
    %1745 = vmatprep.mubr.f32.mxu0 0.0
    %1746 = vmatmul.mubr.f32.gmra.mrb[0].mxu0 %v1674
    %v1747 = vpop.f32.mrb[0].mxu0
    %v1748 = vadd.f32 0.0, %v1747
    %v1749 = vpop.f32.mrb[0].mxu0
    %v1750 = vadd.f32 0.0, %v1749
    %1751 = vdwg.mxu0
    %1752 = vmatprep.subr.mxu0 %v145
    %1753 = vmatpush1.msra.mxu0 %v144
    %1754 = vmatprep.subr.mxu0 %v149
    %1755 = vmatpush1.msra.mxu0 %v148
    %1756 = vmatprep.subr.mxu0 %v153
    %1757 = vmatpush1.msra.mxu0 %v152
    %1758 = vmatprep.subr.mxu0 %v157
    %1759 = vmatpush1.msra.mxu0 %v156
    %1760 = vmatprep.subr.mxu0 %v161
    %1761 = vmatpush1.msra.mxu0 %v160
    %1762 = vmatprep.subr.mxu0 %v165
    %1763 = vmatpush1.msra.mxu0 %v164
    %1764 = vmatprep.subr.mxu0 %v169
    %1765 = vmatpush1.msra.mxu0 %v168
    %1766 = vmatprep.subr.mxu0 %v173
    %1767 = vmatpush1.msra.mxu0 %v172
    %1768 = vmatprep.subr.mxu0 %v177
    %1769 = vmatpush1.msra.mxu0 %v176
    %1770 = vmatprep.subr.mxu0 %v181
    %1771 = vmatpush1.msra.mxu0 %v180
    %1772 = vmatprep.subr.mxu0 %v185
    %1773 = vmatpush1.msra.mxu0 %v184
    %1774 = vmatprep.subr.mxu0 %v189
    %1775 = vmatpush1.msra.mxu0 %v188
    %1776 = vmatprep.subr.mxu0 %v193
    %1777 = vmatpush1.msra.mxu0 %v192
    %1778 = vmatprep.subr.mxu0 %v197
    %1779 = vmatpush1.msra.mxu0 %v196
    %1780 = vmatprep.subr.mxu0 %v201
    %1781 = vmatpush1.msra.mxu0 %v200
    %1782 = vmatprep.subr.mxu0 %v205
    %1783 = vmatpush1.msra.mxu0 %v204
    %1784 = vmatprep.subr.mxu0 0.0
    %1785 = vmatpush1.msra.mxu0 0.0
    %1786 = vmatprep.subr.mxu0 0.0
    %1787 = vmatpush1.msra.mxu0 0.0
    %1788 = vmatprep.subr.mxu0 0.0
    %1789 = vmatpush1.msra.mxu0 0.0
    %1790 = vmatprep.subr.mxu0 0.0
    %1791 = vmatpush1.msra.mxu0 0.0
    %1792 = vmatprep.subr.mxu0 0.0
    %1793 = vmatpush1.msra.mxu0 0.0
    %1794 = vmatprep.subr.mxu0 0.0
    %1795 = vmatpush1.msra.mxu0 0.0
    %1796 = vmatprep.subr.mxu0 0.0
    %1797 = vmatpush1.msra.mxu0 0.0
    %1798 = vmatprep.subr.mxu0 0.0
    %1799 = vmatpush1.msra.mxu0 0.0
    %1800 = vmatprep.subr.mxu0 0.0
    %1801 = vmatpush1.msra.mxu0 0.0
    %1802 = vmatprep.subr.mxu0 0.0
    %1803 = vmatpush1.msra.mxu0 0.0
    %1804 = vmatprep.subr.mxu0 0.0
    %1805 = vmatpush1.msra.mxu0 0.0
    %1806 = vmatprep.subr.mxu0 0.0
    %1807 = vmatpush1.msra.mxu0 0.0
    %1808 = vmatprep.subr.mxu0 0.0
    %1809 = vmatpush1.msra.mxu0 0.0
    %1810 = vmatprep.subr.mxu0 0.0
    %1811 = vmatpush1.msra.mxu0 0.0
    %1812 = vmatprep.subr.mxu0 0.0
    %1813 = vmatpush1.msra.mxu0 0.0
    %1814 = vmatprep.subr.mxu0 0.0
    %1815 = vmatpush1.msra.mxu0 0.0
    %1816 = vmatprep.mubr.f32.mxu0 0.0
    %1817 = vmatmul.mubr.f32.gmra.mrb[0].mxu0 %v1674
    %v1818 = vpop.f32.mrb[0].mxu0
    %v1819 = vadd.f32 0.0, %v1818
    %v1820 = vpop.f32.mrb[0].mxu0
    %v1821 = vadd.f32 0.0, %v1820
    %1822 = vdwg.mxu0
    %v1823 = vadd.f32 %v1677, %v1748
    %v1824 = vadd.f32 %v1678, %v1750
    %v1825 = vadd.f32 %v1679, %v1819
    %v1826 = vadd.f32 %v1680, %v1821
    %v1827 = vmul.f32 %v1823, 0.5
    %v1828 = vtanh.pop %v1827
    %v1829 = vmul.f32 %v1828, 0.5
    %v1830 = vadd.f32 %v1829, 0.5
    %v1831 = vmul.f32 %v1824, 0.5
    %v1832 = vtanh.pop %v1831
    %v1833 = vmul.f32 %v1832, 0.5
    %v1834 = vadd.f32 %v1833, 0.5
    %v1835 = vtanh.pop %v1825
    %v1836 = vmul.f32 %v1826, 0.5
    %v1837 = vtanh.pop %v1836
    %v1838 = vmul.f32 %v1837, 0.5
    %v1839 = vadd.f32 %v1838, 0.5
    %v1840 = vmul.f32 %v1834, %v1672
    %v1841 = vmul.f32 %v1830, %v1835
    %v1842 = vadd.f32 %v1840, %v1841
    %v1843 = vtanh.pop %v1842
    %v1844 = vmul.f32 %v1839, %v1843
    %s1845 = scalar_lea.vmem [#allocation4], 56
    %1846 = vst [vmem:[%s1845] sm:$0xff] %v1844
    %1847 = vst [vmem:[#allocation2] sm:$0xff] %v1844
    %1848 = vst [vmem:[#allocation3] sm:$0xff] %v1842
    %1849 = vst [vmem:[#allocation12] sm:$0xff] %v1844
    %1850 = vst [vmem:[#allocation13] sm:$0xff] %v1842
    %v1851 = vld [vmem:[#allocation4] sm:$0xff]
    %v1852 = vld [vmem:[#allocation4 + $0x8] sm:$0xff]
    %v1853 = vld [vmem:[#allocation4 + $0x10] sm:$0xff]
    %v1854 = vld [vmem:[#allocation4 + $0x18] sm:$0xff]
    %v1855 = vld [vmem:[#allocation4 + $0x20] sm:$0xff]
    %v1856 = vld [vmem:[#allocation4 + $0x28] sm:$0xff]
    %v1857 = vld [vmem:[#allocation4 + $0x30] sm:$0xff]
    %v1858 = vld [vmem:[#allocation4 + $0x38] sm:$0xff]
    %s1859 = scalar_lea.vmem [#allocation9], 512
    %v1860 = vld [vmem:[%s1859] sm:$0xff]
    %v1861 = vld [vmem:[%s1859 + $0x8] sm:$0xff]
    %v1862 = vld [vmem:[%s1859 + $0x10] sm:$0xff]
    %v1863 = vld [vmem:[%s1859 + $0x18] sm:$0xff]
    %v1864 = vld [vmem:[%s1859 + $0x20] sm:$0xff]
    %v1865 = vld [vmem:[%s1859 + $0x28] sm:$0xff]
    %v1866 = vld [vmem:[%s1859 + $0x30] sm:$0xff]
    %v1867 = vld [vmem:[%s1859 + $0x38] sm:$0xff]
    %v1868 = vld [vmem:[%s1859 + $0x40] sm:$0xff]
    %v1869 = vld [vmem:[%s1859 + $0x48] sm:$0xff]
    %v1870 = vld [vmem:[%s1859 + $0x50] sm:$0xff]
    %v1871 = vld [vmem:[%s1859 + $0x58] sm:$0xff]
    %v1872 = vld [vmem:[%s1859 + $0x60] sm:$0xff]
    %v1873 = vld [vmem:[%s1859 + $0x68] sm:$0xff]
    %v1874 = vld [vmem:[%s1859 + $0x70] sm:$0xff]
    %v1875 = vld [vmem:[%s1859 + $0x78] sm:$0xff]
    %v1876 = vld [vmem:[%s1859 + $0x80] sm:$0xff]
    %v1877 = vld [vmem:[%s1859 + $0x88] sm:$0xff]
    %v1878 = vld [vmem:[%s1859 + $0x90] sm:$0xff]
    %v1879 = vld [vmem:[%s1859 + $0x98] sm:$0xff]
    %v1880 = vld [vmem:[%s1859 + $0xa0] sm:$0xff]
    %v1881 = vld [vmem:[%s1859 + $0xa8] sm:$0xff]
    %v1882 = vld [vmem:[%s1859 + $0xb0] sm:$0xff]
    %v1883 = vld [vmem:[%s1859 + $0xb8] sm:$0xff]
    %v1884 = vld [vmem:[%s1859 + $0xc0] sm:$0xff]
    %v1885 = vld [vmem:[%s1859 + $0xc8] sm:$0xff]
    %v1886 = vld [vmem:[%s1859 + $0xd0] sm:$0xff]
    %v1887 = vld [vmem:[%s1859 + $0xd8] sm:$0xff]
    %v1888 = vld [vmem:[%s1859 + $0xe0] sm:$0xff]
    %v1889 = vld [vmem:[%s1859 + $0xe8] sm:$0xff]
    %v1890 = vld [vmem:[%s1859 + $0xf0] sm:$0xff]
    %v1891 = vld [vmem:[%s1859 + $0xf8] sm:$0xff]
    %v1892 = vld [vmem:[%s1859 + $0x100] sm:$0xff]
    %v1893 = vld [vmem:[%s1859 + $0x108] sm:$0xff]
    %v1894 = vld [vmem:[%s1859 + $0x110] sm:$0xff]
    %v1895 = vld [vmem:[%s1859 + $0x118] sm:$0xff]
    %v1896 = vld [vmem:[%s1859 + $0x120] sm:$0xff]
    %v1897 = vld [vmem:[%s1859 + $0x128] sm:$0xff]
    %v1898 = vld [vmem:[%s1859 + $0x130] sm:$0xff]
    %v1899 = vld [vmem:[%s1859 + $0x138] sm:$0xff]
    %v1900 = vld [vmem:[%s1859 + $0x140] sm:$0xff]
    %v1901 = vld [vmem:[%s1859 + $0x148] sm:$0xff]
    %v1902 = vld [vmem:[%s1859 + $0x150] sm:$0xff]
    %v1903 = vld [vmem:[%s1859 + $0x158] sm:$0xff]
    %v1904 = vld [vmem:[%s1859 + $0x160] sm:$0xff]
    %v1905 = vld [vmem:[%s1859 + $0x168] sm:$0xff]
    %v1906 = vld [vmem:[%s1859 + $0x170] sm:$0xff]
    %v1907 = vld [vmem:[%s1859 + $0x178] sm:$0xff]
    %v1908 = vld [vmem:[%s1859 + $0x180] sm:$0xff]
    %v1909 = vld [vmem:[%s1859 + $0x188] sm:$0xff]
    %v1910 = vld [vmem:[%s1859 + $0x190] sm:$0xff]
    %v1911 = vld [vmem:[%s1859 + $0x198] sm:$0xff]
    %v1912 = vld [vmem:[%s1859 + $0x1a0] sm:$0xff]
    %v1913 = vld [vmem:[%s1859 + $0x1a8] sm:$0xff]
    %v1914 = vld [vmem:[%s1859 + $0x1b0] sm:$0xff]
    %v1915 = vld [vmem:[%s1859 + $0x1b8] sm:$0xff]
    %v1916 = vld [vmem:[%s1859 + $0x1c0] sm:$0xff]
    %v1917 = vld [vmem:[%s1859 + $0x1c8] sm:$0xff]
    %v1918 = vld [vmem:[%s1859 + $0x1d0] sm:$0xff]
    %v1919 = vld [vmem:[%s1859 + $0x1d8] sm:$0xff]
    %v1920 = vld [vmem:[%s1859 + $0x1e0] sm:$0xff]
    %v1921 = vld [vmem:[%s1859 + $0x1e8] sm:$0xff]
    %v1922 = vld [vmem:[%s1859 + $0x1f0] sm:$0xff]
    %v1923 = vld [vmem:[%s1859 + $0x1f8] sm:$0xff]
    %s1924 = scalar_lea.vmem [#allocation11], 512
    %v1925 = vld [vmem:[%s1924] sm:$0xff]
    %v1926 = vld [vmem:[%s1924 + $0x8] sm:$0xff]
    %v1927 = vld [vmem:[%s1924 + $0x10] sm:$0xff]
    %v1928 = vld [vmem:[%s1924 + $0x18] sm:$0xff]
    %v1929 = vld [vmem:[%s1924 + $0x20] sm:$0xff]
    %v1930 = vld [vmem:[%s1924 + $0x28] sm:$0xff]
    %v1931 = vld [vmem:[%s1924 + $0x30] sm:$0xff]
    %v1932 = vld [vmem:[%s1924 + $0x38] sm:$0xff]
    %v1933 = vld [vmem:[%s1924 + $0x40] sm:$0xff]
    %v1934 = vld [vmem:[%s1924 + $0x48] sm:$0xff]
    %v1935 = vld [vmem:[%s1924 + $0x50] sm:$0xff]
    %v1936 = vld [vmem:[%s1924 + $0x58] sm:$0xff]
    %v1937 = vld [vmem:[%s1924 + $0x60] sm:$0xff]
    %v1938 = vld [vmem:[%s1924 + $0x68] sm:$0xff]
    %v1939 = vld [vmem:[%s1924 + $0x70] sm:$0xff]
    %v1940 = vld [vmem:[%s1924 + $0x78] sm:$0xff]
    %v1941 = vld [vmem:[%s1924 + $0x80] sm:$0xff]
    %v1942 = vld [vmem:[%s1924 + $0x88] sm:$0xff]
    %v1943 = vld [vmem:[%s1924 + $0x90] sm:$0xff]
    %v1944 = vld [vmem:[%s1924 + $0x98] sm:$0xff]
    %v1945 = vld [vmem:[%s1924 + $0xa0] sm:$0xff]
    %v1946 = vld [vmem:[%s1924 + $0xa8] sm:$0xff]
    %v1947 = vld [vmem:[%s1924 + $0xb0] sm:$0xff]
    %v1948 = vld [vmem:[%s1924 + $0xb8] sm:$0xff]
    %v1949 = vld [vmem:[%s1924 + $0xc0] sm:$0xff]
    %v1950 = vld [vmem:[%s1924 + $0xc8] sm:$0xff]
    %v1951 = vld [vmem:[%s1924 + $0xd0] sm:$0xff]
    %v1952 = vld [vmem:[%s1924 + $0xd8] sm:$0xff]
    %v1953 = vld [vmem:[%s1924 + $0xe0] sm:$0xff]
    %v1954 = vld [vmem:[%s1924 + $0xe8] sm:$0xff]
    %v1955 = vld [vmem:[%s1924 + $0xf0] sm:$0xff]
    %v1956 = vld [vmem:[%s1924 + $0xf8] sm:$0xff]
    %v1957 = vld [vmem:[%s1924 + $0x100] sm:$0xff]
    %v1958 = vld [vmem:[%s1924 + $0x108] sm:$0xff]
    %v1959 = vld [vmem:[%s1924 + $0x110] sm:$0xff]
    %v1960 = vld [vmem:[%s1924 + $0x118] sm:$0xff]
    %v1961 = vld [vmem:[%s1924 + $0x120] sm:$0xff]
    %v1962 = vld [vmem:[%s1924 + $0x128] sm:$0xff]
    %v1963 = vld [vmem:[%s1924 + $0x130] sm:$0xff]
    %v1964 = vld [vmem:[%s1924 + $0x138] sm:$0xff]
    %v1965 = vld [vmem:[%s1924 + $0x140] sm:$0xff]
    %v1966 = vld [vmem:[%s1924 + $0x148] sm:$0xff]
    %v1967 = vld [vmem:[%s1924 + $0x150] sm:$0xff]
    %v1968 = vld [vmem:[%s1924 + $0x158] sm:$0xff]
    %v1969 = vld [vmem:[%s1924 + $0x160] sm:$0xff]
    %v1970 = vld [vmem:[%s1924 + $0x168] sm:$0xff]
    %v1971 = vld [vmem:[%s1924 + $0x170] sm:$0xff]
    %v1972 = vld [vmem:[%s1924 + $0x178] sm:$0xff]
    %v1973 = vld [vmem:[%s1924 + $0x180] sm:$0xff]
    %v1974 = vld [vmem:[%s1924 + $0x188] sm:$0xff]
    %v1975 = vld [vmem:[%s1924 + $0x190] sm:$0xff]
    %v1976 = vld [vmem:[%s1924 + $0x198] sm:$0xff]
    %v1977 = vld [vmem:[%s1924 + $0x1a0] sm:$0xff]
    %v1978 = vld [vmem:[%s1924 + $0x1a8] sm:$0xff]
    %v1979 = vld [vmem:[%s1924 + $0x1b0] sm:$0xff]
    %v1980 = vld [vmem:[%s1924 + $0x1b8] sm:$0xff]
    %v1981 = vld [vmem:[%s1924 + $0x1c0] sm:$0xff]
    %v1982 = vld [vmem:[%s1924 + $0x1c8] sm:$0xff]
    %v1983 = vld [vmem:[%s1924 + $0x1d0] sm:$0xff]
    %v1984 = vld [vmem:[%s1924 + $0x1d8] sm:$0xff]
    %v1985 = vld [vmem:[%s1924 + $0x1e0] sm:$0xff]
    %v1986 = vld [vmem:[%s1924 + $0x1e8] sm:$0xff]
    %v1987 = vld [vmem:[%s1924 + $0x1f0] sm:$0xff]
    %v1988 = vld [vmem:[%s1924 + $0x1f8] sm:$0xff]
    %s1989 = scalar_lea.vmem %s3, 4
    %v1990 = vld [vmem:[%s1989] sm:$0xf]
    %v1992 = vlaneseq
    %v1993 = vshrl.u32 %v1992, 7
    %v1994 = vsub.s32 0, %v1993
    %v1995 = vrot.slane %v1990, %v1994
    %v1996 = vlaneseq
    %v1997 = vshrl.u32 %v1996, 7
    %v1998 = vsub.s32 1, %v1997
    %v1999 = vrot.slane %v1990, %v1998
    %v2000 = vlaneseq
    %v2001 = vshrl.u32 %v2000, 7
    %v2002 = vsub.s32 2, %v2001
    %v2003 = vrot.slane %v1990, %v2002
    %v2004 = vlaneseq
    %v2005 = vshrl.u32 %v2004, 7
    %v2006 = vsub.s32 3, %v2005
    %v2007 = vrot.slane %v1990, %v2006
    %2012 = vmatprep.subr.mxu0 %v1861
    %2013 = vmatpush1.msra.mxu0 %v1860
    %2014 = vmatprep.subr.mxu0 %v1865
    %2015 = vmatpush1.msra.mxu0 %v1864
    %2016 = vmatprep.subr.mxu0 %v1869
    %2017 = vmatpush1.msra.mxu0 %v1868
    %2018 = vmatprep.subr.mxu0 %v1873
    %2019 = vmatpush1.msra.mxu0 %v1872
    %2020 = vmatprep.subr.mxu0 %v1877
    %2021 = vmatpush1.msra.mxu0 %v1876
    %2022 = vmatprep.subr.mxu0 %v1881
    %2023 = vmatpush1.msra.mxu0 %v1880
    %2024 = vmatprep.subr.mxu0 %v1885
    %2025 = vmatpush1.msra.mxu0 %v1884
    %2026 = vmatprep.subr.mxu0 %v1889
    %2027 = vmatpush1.msra.mxu0 %v1888
    %2028 = vmatprep.subr.mxu0 %v1893
    %2029 = vmatpush1.msra.mxu0 %v1892
    %2030 = vmatprep.subr.mxu0 %v1897
    %2031 = vmatpush1.msra.mxu0 %v1896
    %2032 = vmatprep.subr.mxu0 %v1901
    %2033 = vmatpush1.msra.mxu0 %v1900
    %2034 = vmatprep.subr.mxu0 %v1905
    %2035 = vmatpush1.msra.mxu0 %v1904
    %2036 = vmatprep.subr.mxu0 %v1909
    %2037 = vmatpush1.msra.mxu0 %v1908
    %2038 = vmatprep.subr.mxu0 %v1913
    %2039 = vmatpush1.msra.mxu0 %v1912
    %2040 = vmatprep.subr.mxu0 %v1917
    %2041 = vmatpush1.msra.mxu0 %v1916
    %2042 = vmatprep.subr.mxu0 %v1921
    %2043 = vmatpush1.msra.mxu0 %v1920
    %2044 = vmatprep.subr.mxu0 0.0
    %2045 = vmatpush1.msra.mxu0 0.0
    %2046 = vmatprep.subr.mxu0 0.0
    %2047 = vmatpush1.msra.mxu0 0.0
    %2048 = vmatprep.subr.mxu0 0.0
    %2049 = vmatpush1.msra.mxu0 0.0
    %2050 = vmatprep.subr.mxu0 0.0
    %2051 = vmatpush1.msra.mxu0 0.0
    %2052 = vmatprep.subr.mxu0 0.0
    %2053 = vmatpush1.msra.mxu0 0.0
    %2054 = vmatprep.subr.mxu0 0.0
    %2055 = vmatpush1.msra.mxu0 0.0
    %2056 = vmatprep.subr.mxu0 0.0
    %2057 = vmatpush1.msra.mxu0 0.0
    %2058 = vmatprep.subr.mxu0 0.0
    %2059 = vmatpush1.msra.mxu0 0.0
    %2060 = vmatprep.subr.mxu0 0.0
    %2061 = vmatpush1.msra.mxu0 0.0
    %2062 = vmatprep.subr.mxu0 0.0
    %2063 = vmatpush1.msra.mxu0 0.0
    %2064 = vmatprep.subr.mxu0 0.0
    %2065 = vmatpush1.msra.mxu0 0.0
    %2066 = vmatprep.subr.mxu0 0.0
    %2067 = vmatpush1.msra.mxu0 0.0
    %2068 = vmatprep.subr.mxu0 0.0
    %2069 = vmatpush1.msra.mxu0 0.0
    %2070 = vmatprep.subr.mxu0 0.0
    %2071 = vmatpush1.msra.mxu0 0.0
    %2072 = vmatprep.subr.mxu0 0.0
    %2073 = vmatpush1.msra.mxu0 0.0
    %2074 = vmatprep.subr.mxu0 0.0
    %2075 = vmatpush1.msra.mxu0 0.0
    %2076 = vmatprep.mubr.f32.mxu0 0.0
    %2077 = vmatmul.mubr.f32.gmra.mrb[0].mxu0 %v1851
    %v2078 = vpop.f32.mrb[0].mxu0
    %v2079 = vadd.f32 %v1995, %v2078
    %v2080 = vpop.f32.mrb[0].mxu0
    %v2081 = vadd.f32 %v1999, %v2080
    %2082 = vmatprep.mubr.f32.mxu0 0.0
    %2083 = vmatmul.mubr.f32.gmra.mrb[0].mxu0 %v1852
    %v2084 = vpop.f32.mrb[0].mxu0
    %v2085 = vadd.f32 %v1995, %v2084
    %v2086 = vpop.f32.mrb[0].mxu0
    %v2087 = vadd.f32 %v1999, %v2086
    %2088 = vmatprep.mubr.f32.mxu0 0.0
    %2089 = vmatmul.mubr.f32.gmra.mrb[0].mxu0 %v1853
    %v2090 = vpop.f32.mrb[0].mxu0
    %v2091 = vadd.f32 %v1995, %v2090
    %v2092 = vpop.f32.mrb[0].mxu0
    %v2093 = vadd.f32 %v1999, %v2092
    %2094 = vmatprep.mubr.f32.mxu0 0.0
    %2095 = vmatmul.mubr.f32.gmra.mrb[0].mxu0 %v1854
    %v2096 = vpop.f32.mrb[0].mxu0
    %v2097 = vadd.f32 %v1995, %v2096
    %v2098 = vpop.f32.mrb[0].mxu0
    %v2099 = vadd.f32 %v1999, %v2098
    %2100 = vmatprep.mubr.f32.mxu0 0.0
    %2101 = vmatmul.mubr.f32.gmra.mrb[0].mxu0 %v1855
    %v2102 = vpop.f32.mrb[0].mxu0
    %v2103 = vadd.f32 %v1995, %v2102
    %v2104 = vpop.f32.mrb[0].mxu0
    %v2105 = vadd.f32 %v1999, %v2104
    %2106 = vmatprep.mubr.f32.mxu0 0.0
    %2107 = vmatmul.mubr.f32.gmra.mrb[0].mxu0 %v1856
    %v2108 = vpop.f32.mrb[0].mxu0
    %v2109 = vadd.f32 %v1995, %v2108
    %v2110 = vpop.f32.mrb[0].mxu0
    %v2111 = vadd.f32 %v1999, %v2110
    %2112 = vmatprep.mubr.f32.mxu0 0.0
    %2113 = vmatmul.mubr.f32.gmra.mrb[0].mxu0 %v1857
    %v2114 = vpop.f32.mrb[0].mxu0
    %v2115 = vadd.f32 %v1995, %v2114
    %v2116 = vpop.f32.mrb[0].mxu0
    %v2117 = vadd.f32 %v1999, %v2116
    %2118 = vmatprep.mubr.f32.mxu0 0.0
    %2119 = vmatmul.mubr.f32.gmra.mrb[0].mxu0 %v1858
    %v2120 = vpop.f32.mrb[0].mxu0
    %v2121 = vadd.f32 %v1995, %v2120
    %v2122 = vpop.f32.mrb[0].mxu0
    %v2123 = vadd.f32 %v1999, %v2122
    %2124 = vdwg.mxu0
    %2125 = vmatprep.subr.mxu0 %v1863
    %2126 = vmatpush1.msra.mxu0 %v1862
    %2127 = vmatprep.subr.mxu0 %v1867
    %2128 = vmatpush1.msra.mxu0 %v1866
    %2129 = vmatprep.subr.mxu0 %v1871
    %2130 = vmatpush1.msra.mxu0 %v1870
    %2131 = vmatprep.subr.mxu0 %v1875
    %2132 = vmatpush1.msra.mxu0 %v1874
    %2133 = vmatprep.subr.mxu0 %v1879
    %2134 = vmatpush1.msra.mxu0 %v1878
    %2135 = vmatprep.subr.mxu0 %v1883
    %2136 = vmatpush1.msra.mxu0 %v1882
    %2137 = vmatprep.subr.mxu0 %v1887
    %2138 = vmatpush1.msra.mxu0 %v1886
    %2139 = vmatprep.subr.mxu0 %v1891
    %2140 = vmatpush1.msra.mxu0 %v1890
    %2141 = vmatprep.subr.mxu0 %v1895
    %2142 = vmatpush1.msra.mxu0 %v1894
    %2143 = vmatprep.subr.mxu0 %v1899
    %2144 = vmatpush1.msra.mxu0 %v1898
    %2145 = vmatprep.subr.mxu0 %v1903
    %2146 = vmatpush1.msra.mxu0 %v1902
    %2147 = vmatprep.subr.mxu0 %v1907
    %2148 = vmatpush1.msra.mxu0 %v1906
    %2149 = vmatprep.subr.mxu0 %v1911
    %2150 = vmatpush1.msra.mxu0 %v1910
    %2151 = vmatprep.subr.mxu0 %v1915
    %2152 = vmatpush1.msra.mxu0 %v1914
    %2153 = vmatprep.subr.mxu0 %v1919
    %2154 = vmatpush1.msra.mxu0 %v1918
    %2155 = vmatprep.subr.mxu0 %v1923
    %2156 = vmatpush1.msra.mxu0 %v1922
    %2157 = vmatprep.subr.mxu0 0.0
    %2158 = vmatpush1.msra.mxu0 0.0
    %2159 = vmatprep.subr.mxu0 0.0
    %2160 = vmatpush1.msra.mxu0 0.0
    %2161 = vmatprep.subr.mxu0 0.0
    %2162 = vmatpush1.msra.mxu0 0.0
    %2163 = vmatprep.subr.mxu0 0.0
    %2164 = vmatpush1.msra.mxu0 0.0
    %2165 = vmatprep.subr.mxu0 0.0
    %2166 = vmatpush1.msra.mxu0 0.0
    %2167 = vmatprep.subr.mxu0 0.0
    %2168 = vmatpush1.msra.mxu0 0.0
    %2169 = vmatprep.subr.mxu0 0.0
    %2170 = vmatpush1.msra.mxu0 0.0
    %2171 = vmatprep.subr.mxu0 0.0
    %2172 = vmatpush1.msra.mxu0 0.0
    %2173 = vmatprep.subr.mxu0 0.0
    %2174 = vmatpush1.msra.mxu0 0.0
    %2175 = vmatprep.subr.mxu0 0.0
    %2176 = vmatpush1.msra.mxu0 0.0
    %2177 = vmatprep.subr.mxu0 0.0
    %2178 = vmatpush1.msra.mxu0 0.0
    %2179 = vmatprep.subr.mxu0 0.0
    %2180 = vmatpush1.msra.mxu0 0.0
    %2181 = vmatprep.subr.mxu0 0.0
    %2182 = vmatpush1.msra.mxu0 0.0
    %2183 = vmatprep.subr.mxu0 0.0
    %2184 = vmatpush1.msra.mxu0 0.0
    %2185 = vmatprep.subr.mxu0 0.0
    %2186 = vmatpush1.msra.mxu0 0.0
    %2187 = vmatprep.subr.mxu0 0.0
    %2188 = vmatpush1.msra.mxu0 0.0
    %2189 = vmatprep.mubr.f32.mxu0 0.0
    %2190 = vmatmul.mubr.f32.gmra.mrb[0].mxu0 %v1851
    %v2191 = vpop.f32.mrb[0].mxu0
    %v2192 = vadd.f32 %v2003, %v2191
    %v2193 = vpop.f32.mrb[0].mxu0
    %v2194 = vadd.f32 %v2007, %v2193
    %2195 = vmatprep.mubr.f32.mxu0 0.0
    %2196 = vmatmul.mubr.f32.gmra.mrb[0].mxu0 %v1852
    %v2197 = vpop.f32.mrb[0].mxu0
    %v2198 = vadd.f32 %v2003, %v2197
    %v2199 = vpop.f32.mrb[0].mxu0
    %v2200 = vadd.f32 %v2007, %v2199
    %2201 = vmatprep.mubr.f32.mxu0 0.0
    %2202 = vmatmul.mubr.f32.gmra.mrb[0].mxu0 %v1853
    %v2203 = vpop.f32.mrb[0].mxu0
    %v2204 = vadd.f32 %v2003, %v2203
    %v2205 = vpop.f32.mrb[0].mxu0
    %v2206 = vadd.f32 %v2007, %v2205
    %2207 = vmatprep.mubr.f32.mxu0 0.0
    %2208 = vmatmul.mubr.f32.gmra.mrb[0].mxu0 %v1854
    %v2209 = vpop.f32.mrb[0].mxu0
    %v2210 = vadd.f32 %v2003, %v2209
    %v2211 = vpop.f32.mrb[0].mxu0
    %v2212 = vadd.f32 %v2007, %v2211
    %2213 = vmatprep.mubr.f32.mxu0 0.0
    %2214 = vmatmul.mubr.f32.gmra.mrb[0].mxu0 %v1855
    %v2215 = vpop.f32.mrb[0].mxu0
    %v2216 = vadd.f32 %v2003, %v2215
    %v2217 = vpop.f32.mrb[0].mxu0
    %v2218 = vadd.f32 %v2007, %v2217
    %2219 = vmatprep.mubr.f32.mxu0 0.0
    %2220 = vmatmul.mubr.f32.gmra.mrb[0].mxu0 %v1856
    %v2221 = vpop.f32.mrb[0].mxu0
    %v2222 = vadd.f32 %v2003, %v2221
    %v2223 = vpop.f32.mrb[0].mxu0
    %v2224 = vadd.f32 %v2007, %v2223
    %2225 = vmatprep.mubr.f32.mxu0 0.0
    %2226 = vmatmul.mubr.f32.gmra.mrb[0].mxu0 %v1857
    %v2227 = vpop.f32.mrb[0].mxu0
    %v2228 = vadd.f32 %v2003, %v2227
    %v2229 = vpop.f32.mrb[0].mxu0
    %v2230 = vadd.f32 %v2007, %v2229
    %2231 = vmatprep.mubr.f32.mxu0 0.0
    %2232 = vmatmul.mubr.f32.gmra.mrb[0].mxu0 %v1858
    %v2233 = vpop.f32.mrb[0].mxu0
    %v2234 = vadd.f32 %v2003, %v2233
    %v2235 = vpop.f32.mrb[0].mxu0
    %v2236 = vadd.f32 %v2007, %v2235
    %2237 = vdwg.mxu0
    %2238 = vst [vmem:[#allocation5] sm:$0xff] %v2079
    %2239 = vst [vmem:[#allocation5 + $0x8] sm:$0xff] %v2081
    %2240 = vst [vmem:[#allocation5 + $0x10] sm:$0xff] %v2192
    %2241 = vst [vmem:[#allocation5 + $0x18] sm:$0xff] %v2194
    %2242 = vst [vmem:[#allocation5 + $0x20] sm:$0xff] %v2085
    %2243 = vst [vmem:[#allocation5 + $0x28] sm:$0xff] %v2087
    %2244 = vst [vmem:[#allocation5 + $0x30] sm:$0xff] %v2198
    %2245 = vst [vmem:[#allocation5 + $0x38] sm:$0xff] %v2200
    %2246 = vst [vmem:[#allocation5 + $0x40] sm:$0xff] %v2091
    %2247 = vst [vmem:[#allocation5 + $0x48] sm:$0xff] %v2093
    %2248 = vst [vmem:[#allocation5 + $0x50] sm:$0xff] %v2204
    %2249 = vst [vmem:[#allocation5 + $0x58] sm:$0xff] %v2206
    %2250 = vst [vmem:[#allocation5 + $0x60] sm:$0xff] %v2097
    %2251 = vst [vmem:[#allocation5 + $0x68] sm:$0xff] %v2099
    %2252 = vst [vmem:[#allocation5 + $0x70] sm:$0xff] %v2210
    %2253 = vst [vmem:[#allocation5 + $0x78] sm:$0xff] %v2212
    %2254 = vst [vmem:[#allocation5 + $0x80] sm:$0xff] %v2103
    %2255 = vst [vmem:[#allocation5 + $0x88] sm:$0xff] %v2105
    %2256 = vst [vmem:[#allocation5 + $0x90] sm:$0xff] %v2216
    %2257 = vst [vmem:[#allocation5 + $0x98] sm:$0xff] %v2218
    %2258 = vst [vmem:[#allocation5 + $0xa0] sm:$0xff] %v2109
    %2259 = vst [vmem:[#allocation5 + $0xa8] sm:$0xff] %v2111
    %2260 = vst [vmem:[#allocation5 + $0xb0] sm:$0xff] %v2222
    %2261 = vst [vmem:[#allocation5 + $0xb8] sm:$0xff] %v2224
    %2262 = vst [vmem:[#allocation5 + $0xc0] sm:$0xff] %v2115
    %2263 = vst [vmem:[#allocation5 + $0xc8] sm:$0xff] %v2117
    %2264 = vst [vmem:[#allocation5 + $0xd0] sm:$0xff] %v2228
    %2265 = vst [vmem:[#allocation5 + $0xd8] sm:$0xff] %v2230
    %2266 = vst [vmem:[#allocation5 + $0xe0] sm:$0xff] %v2121
    %2267 = vst [vmem:[#allocation5 + $0xe8] sm:$0xff] %v2123
    %2268 = vst [vmem:[#allocation5 + $0xf0] sm:$0xff] %v2234
    %2269 = vst [vmem:[#allocation5 + $0xf8] sm:$0xff] %v2236
    %s2270 = scalar_lea.vmem [#allocation2], 8
    %v2271 = vld [vmem:[%s2270] sm:$0xff]
    %s2272 = scalar_lea.vmem [#allocation3], 8
    %v2273 = vld [vmem:[%s2272] sm:$0xff]
    %v2274 = vld [vmem:[#allocation5] sm:$0xff]
    %v2275 = vld [vmem:[#allocation5 + $0x8] sm:$0xff]
    %v2276 = vld [vmem:[#allocation5 + $0x10] sm:$0xff]
    %v2277 = vld [vmem:[#allocation5 + $0x18] sm:$0xff]
    %2278 = vmatprep.subr.mxu0 %v1926
    %2279 = vmatpush1.msra.mxu0 %v1925
    %2280 = vmatprep.subr.mxu0 %v1930
    %2281 = vmatpush1.msra.mxu0 %v1929
    %2282 = vmatprep.subr.mxu0 %v1934
    %2283 = vmatpush1.msra.mxu0 %v1933
    %2284 = vmatprep.subr.mxu0 %v1938
    %2285 = vmatpush1.msra.mxu0 %v1937
    %2286 = vmatprep.subr.mxu0 %v1942
    %2287 = vmatpush1.msra.mxu0 %v1941
    %2288 = vmatprep.subr.mxu0 %v1946
    %2289 = vmatpush1.msra.mxu0 %v1945
    %2290 = vmatprep.subr.mxu0 %v1950
    %2291 = vmatpush1.msra.mxu0 %v1949
    %2292 = vmatprep.subr.mxu0 %v1954
    %2293 = vmatpush1.msra.mxu0 %v1953
    %2294 = vmatprep.subr.mxu0 %v1958
    %2295 = vmatpush1.msra.mxu0 %v1957
    %2296 = vmatprep.subr.mxu0 %v1962
    %2297 = vmatpush1.msra.mxu0 %v1961
    %2298 = vmatprep.subr.mxu0 %v1966
    %2299 = vmatpush1.msra.mxu0 %v1965
    %2300 = vmatprep.subr.mxu0 %v1970
    %2301 = vmatpush1.msra.mxu0 %v1969
    %2302 = vmatprep.subr.mxu0 %v1974
    %2303 = vmatpush1.msra.mxu0 %v1973
    %2304 = vmatprep.subr.mxu0 %v1978
    %2305 = vmatpush1.msra.mxu0 %v1977
    %2306 = vmatprep.subr.mxu0 %v1982
    %2307 = vmatpush1.msra.mxu0 %v1981
    %2308 = vmatprep.subr.mxu0 %v1986
    %2309 = vmatpush1.msra.mxu0 %v1985
    %2310 = vmatprep.subr.mxu0 0.0
    %2311 = vmatpush1.msra.mxu0 0.0
    %2312 = vmatprep.subr.mxu0 0.0
    %2313 = vmatpush1.msra.mxu0 0.0
    %2314 = vmatprep.subr.mxu0 0.0
    %2315 = vmatpush1.msra.mxu0 0.0
    %2316 = vmatprep.subr.mxu0 0.0
    %2317 = vmatpush1.msra.mxu0 0.0
    %2318 = vmatprep.subr.mxu0 0.0
    %2319 = vmatpush1.msra.mxu0 0.0
    %2320 = vmatprep.subr.mxu0 0.0
    %2321 = vmatpush1.msra.mxu0 0.0
    %2322 = vmatprep.subr.mxu0 0.0
    %2323 = vmatpush1.msra.mxu0 0.0
    %2324 = vmatprep.subr.mxu0 0.0
    %2325 = vmatpush1.msra.mxu0 0.0
    %2326 = vmatprep.subr.mxu0 0.0
    %2327 = vmatpush1.msra.mxu0 0.0
    %2328 = vmatprep.subr.mxu0 0.0
    %2329 = vmatpush1.msra.mxu0 0.0
    %2330 = vmatprep.subr.mxu0 0.0
    %2331 = vmatpush1.msra.mxu0 0.0
    %2332 = vmatprep.subr.mxu0 0.0
    %2333 = vmatpush1.msra.mxu0 0.0
    %2334 = vmatprep.subr.mxu0 0.0
    %2335 = vmatpush1.msra.mxu0 0.0
    %2336 = vmatprep.subr.mxu0 0.0
    %2337 = vmatpush1.msra.mxu0 0.0
    %2338 = vmatprep.subr.mxu0 0.0
    %2339 = vmatpush1.msra.mxu0 0.0
    %2340 = vmatprep.subr.mxu0 0.0
    %2341 = vmatpush1.msra.mxu0 0.0
    %2342 = vmatprep.mubr.f32.mxu0 0.0
    %2343 = vmatmul.mubr.f32.gmra.mrb[0].mxu0 %v2271
    %v2344 = vpop.f32.mrb[0].mxu0
    %v2345 = vadd.f32 0.0, %v2344
    %v2346 = vpop.f32.mrb[0].mxu0
    %v2347 = vadd.f32 0.0, %v2346
    %2348 = vdwg.mxu0
    %2349 = vmatprep.subr.mxu0 %v1928
    %2350 = vmatpush1.msra.mxu0 %v1927
    %2351 = vmatprep.subr.mxu0 %v1932
    %2352 = vmatpush1.msra.mxu0 %v1931
    %2353 = vmatprep.subr.mxu0 %v1936
    %2354 = vmatpush1.msra.mxu0 %v1935
    %2355 = vmatprep.subr.mxu0 %v1940
    %2356 = vmatpush1.msra.mxu0 %v1939
    %2357 = vmatprep.subr.mxu0 %v1944
    %2358 = vmatpush1.msra.mxu0 %v1943
    %2359 = vmatprep.subr.mxu0 %v1948
    %2360 = vmatpush1.msra.mxu0 %v1947
    %2361 = vmatprep.subr.mxu0 %v1952
    %2362 = vmatpush1.msra.mxu0 %v1951
    %2363 = vmatprep.subr.mxu0 %v1956
    %2364 = vmatpush1.msra.mxu0 %v1955
    %2365 = vmatprep.subr.mxu0 %v1960
    %2366 = vmatpush1.msra.mxu0 %v1959
    %2367 = vmatprep.subr.mxu0 %v1964
    %2368 = vmatpush1.msra.mxu0 %v1963
    %2369 = vmatprep.subr.mxu0 %v1968
    %2370 = vmatpush1.msra.mxu0 %v1967
    %2371 = vmatprep.subr.mxu0 %v1972
    %2372 = vmatpush1.msra.mxu0 %v1971
    %2373 = vmatprep.subr.mxu0 %v1976
    %2374 = vmatpush1.msra.mxu0 %v1975
    %2375 = vmatprep.subr.mxu0 %v1980
    %2376 = vmatpush1.msra.mxu0 %v1979
    %2377 = vmatprep.subr.mxu0 %v1984
    %2378 = vmatpush1.msra.mxu0 %v1983
    %2379 = vmatprep.subr.mxu0 %v1988
    %2380 = vmatpush1.msra.mxu0 %v1987
    %2381 = vmatprep.subr.mxu0 0.0
    %2382 = vmatpush1.msra.mxu0 0.0
    %2383 = vmatprep.subr.mxu0 0.0
    %2384 = vmatpush1.msra.mxu0 0.0
    %2385 = vmatprep.subr.mxu0 0.0
    %2386 = vmatpush1.msra.mxu0 0.0
    %2387 = vmatprep.subr.mxu0 0.0
    %2388 = vmatpush1.msra.mxu0 0.0
    %2389 = vmatprep.subr.mxu0 0.0
    %2390 = vmatpush1.msra.mxu0 0.0
    %2391 = vmatprep.subr.mxu0 0.0
    %2392 = vmatpush1.msra.mxu0 0.0
    %2393 = vmatprep.subr.mxu0 0.0
    %2394 = vmatpush1.msra.mxu0 0.0
    %2395 = vmatprep.subr.mxu0 0.0
    %2396 = vmatpush1.msra.mxu0 0.0
    %2397 = vmatprep.subr.mxu0 0.0
    %2398 = vmatpush1.msra.mxu0 0.0
    %2399 = vmatprep.subr.mxu0 0.0
    %2400 = vmatpush1.msra.mxu0 0.0
    %2401 = vmatprep.subr.mxu0 0.0
    %2402 = vmatpush1.msra.mxu0 0.0
    %2403 = vmatprep.subr.mxu0 0.0
    %2404 = vmatpush1.msra.mxu0 0.0
    %2405 = vmatprep.subr.mxu0 0.0
    %2406 = vmatpush1.msra.mxu0 0.0
    %2407 = vmatprep.subr.mxu0 0.0
    %2408 = vmatpush1.msra.mxu0 0.0
    %2409 = vmatprep.subr.mxu0 0.0
    %2410 = vmatpush1.msra.mxu0 0.0
    %2411 = vmatprep.subr.mxu0 0.0
    %2412 = vmatpush1.msra.mxu0 0.0
    %2413 = vmatprep.mubr.f32.mxu0 0.0
    %2414 = vmatmul.mubr.f32.gmra.mrb[0].mxu0 %v2271
    %v2415 = vpop.f32.mrb[0].mxu0
    %v2416 = vadd.f32 0.0, %v2415
    %v2417 = vpop.f32.mrb[0].mxu0
    %v2418 = vadd.f32 0.0, %v2417
    %2419 = vdwg.mxu0
    %v2420 = vadd.f32 %v2274, %v2345
    %v2421 = vadd.f32 %v2275, %v2347
    %v2422 = vadd.f32 %v2276, %v2416
    %v2423 = vadd.f32 %v2277, %v2418
    %v2424 = vmul.f32 %v2420, 0.5
    %v2425 = vtanh.pop %v2424
    %v2426 = vmul.f32 %v2425, 0.5
    %v2427 = vadd.f32 %v2426, 0.5
    %v2428 = vmul.f32 %v2421, 0.5
    %v2429 = vtanh.pop %v2428
    %v2430 = vmul.f32 %v2429, 0.5
    %v2431 = vadd.f32 %v2430, 0.5
    %v2432 = vtanh.pop %v2422
    %v2433 = vmul.f32 %v2423, 0.5
    %v2434 = vtanh.pop %v2433
    %v2435 = vmul.f32 %v2434, 0.5
    %v2436 = vadd.f32 %v2435, 0.5
    %v2437 = vmul.f32 %v2431, %v2273
    %v2438 = vmul.f32 %v2427, %v2432
    %v2439 = vadd.f32 %v2437, %v2438
    %v2440 = vtanh.pop %v2439
    %v2441 = vmul.f32 %v2436, %v2440
    %v2442 = vld [vmem:[#allocation5 + $0x20] sm:$0xff]
    %v2443 = vld [vmem:[#allocation5 + $0x28] sm:$0xff]
    %v2444 = vld [vmem:[#allocation5 + $0x30] sm:$0xff]
    %v2445 = vld [vmem:[#allocation5 + $0x38] sm:$0xff]
    %2446 = vmatprep.subr.mxu0 %v1926
    %2447 = vmatpush1.msra.mxu0 %v1925
    %2448 = vmatprep.subr.mxu0 %v1930
    %2449 = vmatpush1.msra.mxu0 %v1929
    %2450 = vmatprep.subr.mxu0 %v1934
    %2451 = vmatpush1.msra.mxu0 %v1933
    %2452 = vmatprep.subr.mxu0 %v1938
    %2453 = vmatpush1.msra.mxu0 %v1937
    %2454 = vmatprep.subr.mxu0 %v1942
    %2455 = vmatpush1.msra.mxu0 %v1941
    %2456 = vmatprep.subr.mxu0 %v1946
    %2457 = vmatpush1.msra.mxu0 %v1945
    %2458 = vmatprep.subr.mxu0 %v1950
    %2459 = vmatpush1.msra.mxu0 %v1949
    %2460 = vmatprep.subr.mxu0 %v1954
    %2461 = vmatpush1.msra.mxu0 %v1953
    %2462 = vmatprep.subr.mxu0 %v1958
    %2463 = vmatpush1.msra.mxu0 %v1957
    %2464 = vmatprep.subr.mxu0 %v1962
    %2465 = vmatpush1.msra.mxu0 %v1961
    %2466 = vmatprep.subr.mxu0 %v1966
    %2467 = vmatpush1.msra.mxu0 %v1965
    %2468 = vmatprep.subr.mxu0 %v1970
    %2469 = vmatpush1.msra.mxu0 %v1969
    %2470 = vmatprep.subr.mxu0 %v1974
    %2471 = vmatpush1.msra.mxu0 %v1973
    %2472 = vmatprep.subr.mxu0 %v1978
    %2473 = vmatpush1.msra.mxu0 %v1977
    %2474 = vmatprep.subr.mxu0 %v1982
    %2475 = vmatpush1.msra.mxu0 %v1981
    %2476 = vmatprep.subr.mxu0 %v1986
    %2477 = vmatpush1.msra.mxu0 %v1985
    %2478 = vmatprep.subr.mxu0 0.0
    %2479 = vmatpush1.msra.mxu0 0.0
    %2480 = vmatprep.subr.mxu0 0.0
    %2481 = vmatpush1.msra.mxu0 0.0
    %2482 = vmatprep.subr.mxu0 0.0
    %2483 = vmatpush1.msra.mxu0 0.0
    %2484 = vmatprep.subr.mxu0 0.0
    %2485 = vmatpush1.msra.mxu0 0.0
    %2486 = vmatprep.subr.mxu0 0.0
    %2487 = vmatpush1.msra.mxu0 0.0
    %2488 = vmatprep.subr.mxu0 0.0
    %2489 = vmatpush1.msra.mxu0 0.0
    %2490 = vmatprep.subr.mxu0 0.0
    %2491 = vmatpush1.msra.mxu0 0.0
    %2492 = vmatprep.subr.mxu0 0.0
    %2493 = vmatpush1.msra.mxu0 0.0
    %2494 = vmatprep.subr.mxu0 0.0
    %2495 = vmatpush1.msra.mxu0 0.0
    %2496 = vmatprep.subr.mxu0 0.0
    %2497 = vmatpush1.msra.mxu0 0.0
    %2498 = vmatprep.subr.mxu0 0.0
    %2499 = vmatpush1.msra.mxu0 0.0
    %2500 = vmatprep.subr.mxu0 0.0
    %2501 = vmatpush1.msra.mxu0 0.0
    %2502 = vmatprep.subr.mxu0 0.0
    %2503 = vmatpush1.msra.mxu0 0.0
    %2504 = vmatprep.subr.mxu0 0.0
    %2505 = vmatpush1.msra.mxu0 0.0
    %2506 = vmatprep.subr.mxu0 0.0
    %2507 = vmatpush1.msra.mxu0 0.0
    %2508 = vmatprep.subr.mxu0 0.0
    %2509 = vmatpush1.msra.mxu0 0.0
    %2510 = vmatprep.mubr.f32.mxu0 0.0
    %2511 = vmatmul.mubr.f32.gmra.mrb[0].mxu0 %v2441
    %v2512 = vpop.f32.mrb[0].mxu0
    %v2513 = vadd.f32 0.0, %v2512
    %v2514 = vpop.f32.mrb[0].mxu0
    %v2515 = vadd.f32 0.0, %v2514
    %2516 = vdwg.mxu0
    %2517 = vmatprep.subr.mxu0 %v1928
    %2518 = vmatpush1.msra.mxu0 %v1927
    %2519 = vmatprep.subr.mxu0 %v1932
    %2520 = vmatpush1.msra.mxu0 %v1931
    %2521 = vmatprep.subr.mxu0 %v1936
    %2522 = vmatpush1.msra.mxu0 %v1935
    %2523 = vmatprep.subr.mxu0 %v1940
    %2524 = vmatpush1.msra.mxu0 %v1939
    %2525 = vmatprep.subr.mxu0 %v1944
    %2526 = vmatpush1.msra.mxu0 %v1943
    %2527 = vmatprep.subr.mxu0 %v1948
    %2528 = vmatpush1.msra.mxu0 %v1947
    %2529 = vmatprep.subr.mxu0 %v1952
    %2530 = vmatpush1.msra.mxu0 %v1951
    %2531 = vmatprep.subr.mxu0 %v1956
    %2532 = vmatpush1.msra.mxu0 %v1955
    %2533 = vmatprep.subr.mxu0 %v1960
    %2534 = vmatpush1.msra.mxu0 %v1959
    %2535 = vmatprep.subr.mxu0 %v1964
    %2536 = vmatpush1.msra.mxu0 %v1963
    %2537 = vmatprep.subr.mxu0 %v1968
    %2538 = vmatpush1.msra.mxu0 %v1967
    %2539 = vmatprep.subr.mxu0 %v1972
    %2540 = vmatpush1.msra.mxu0 %v1971
    %2541 = vmatprep.subr.mxu0 %v1976
    %2542 = vmatpush1.msra.mxu0 %v1975
    %2543 = vmatprep.subr.mxu0 %v1980
    %2544 = vmatpush1.msra.mxu0 %v1979
    %2545 = vmatprep.subr.mxu0 %v1984
    %2546 = vmatpush1.msra.mxu0 %v1983
    %2547 = vmatprep.subr.mxu0 %v1988
    %2548 = vmatpush1.msra.mxu0 %v1987
    %2549 = vmatprep.subr.mxu0 0.0
    %2550 = vmatpush1.msra.mxu0 0.0
    %2551 = vmatprep.subr.mxu0 0.0
    %2552 = vmatpush1.msra.mxu0 0.0
    %2553 = vmatprep.subr.mxu0 0.0
    %2554 = vmatpush1.msra.mxu0 0.0
    %2555 = vmatprep.subr.mxu0 0.0
    %2556 = vmatpush1.msra.mxu0 0.0
    %2557 = vmatprep.subr.mxu0 0.0
    %2558 = vmatpush1.msra.mxu0 0.0
    %2559 = vmatprep.subr.mxu0 0.0
    %2560 = vmatpush1.msra.mxu0 0.0
    %2561 = vmatprep.subr.mxu0 0.0
    %2562 = vmatpush1.msra.mxu0 0.0
    %2563 = vmatprep.subr.mxu0 0.0
    %2564 = vmatpush1.msra.mxu0 0.0
    %2565 = vmatprep.subr.mxu0 0.0
    %2566 = vmatpush1.msra.mxu0 0.0
    %2567 = vmatprep.subr.mxu0 0.0
    %2568 = vmatpush1.msra.mxu0 0.0
    %2569 = vmatprep.subr.mxu0 0.0
    %2570 = vmatpush1.msra.mxu0 0.0
    %2571 = vmatprep.subr.mxu0 0.0
    %2572 = vmatpush1.msra.mxu0 0.0
    %2573 = vmatprep.subr.mxu0 0.0
    %2574 = vmatpush1.msra.mxu0 0.0
    %2575 = vmatprep.subr.mxu0 0.0
    %2576 = vmatpush1.msra.mxu0 0.0
    %2577 = vmatprep.subr.mxu0 0.0
    %2578 = vmatpush1.msra.mxu0 0.0
    %2579 = vmatprep.subr.mxu0 0.0
    %2580 = vmatpush1.msra.mxu0 0.0
    %2581 = vmatprep.mubr.f32.mxu0 0.0
    %2582 = vmatmul.mubr.f32.gmra.mrb[0].mxu0 %v2441
    %v2583 = vpop.f32.mrb[0].mxu0
    %v2584 = vadd.f32 0.0, %v2583
    %v2585 = vpop.f32.mrb[0].mxu0
    %v2586 = vadd.f32 0.0, %v2585
    %2587 = vdwg.mxu0
    %v2588 = vadd.f32 %v2442, %v2513
    %v2589 = vadd.f32 %v2443, %v2515
    %v2590 = vadd.f32 %v2444, %v2584
    %v2591 = vadd.f32 %v2445, %v2586
    %v2592 = vmul.f32 %v2588, 0.5
    %v2593 = vtanh.pop %v2592
    %v2594 = vmul.f32 %v2593, 0.5
    %v2595 = vadd.f32 %v2594, 0.5
    %v2596 = vmul.f32 %v2589, 0.5
    %v2597 = vtanh.pop %v2596
    %v2598 = vmul.f32 %v2597, 0.5
    %v2599 = vadd.f32 %v2598, 0.5
    %v2600 = vtanh.pop %v2590
    %v2601 = vmul.f32 %v2591, 0.5
    %v2602 = vtanh.pop %v2601
    %v2603 = vmul.f32 %v2602, 0.5
    %v2604 = vadd.f32 %v2603, 0.5
    %v2605 = vmul.f32 %v2599, %v2439
    %v2606 = vmul.f32 %v2595, %v2600
    %v2607 = vadd.f32 %v2605, %v2606
    %v2608 = vtanh.pop %v2607
    %v2609 = vmul.f32 %v2604, %v2608
    %v2610 = vld [vmem:[#allocation5 + $0x40] sm:$0xff]
    %v2611 = vld [vmem:[#allocation5 + $0x48] sm:$0xff]
    %v2612 = vld [vmem:[#allocation5 + $0x50] sm:$0xff]
    %v2613 = vld [vmem:[#allocation5 + $0x58] sm:$0xff]
    %2614 = vmatprep.subr.mxu0 %v1926
    %2615 = vmatpush1.msra.mxu0 %v1925
    %2616 = vmatprep.subr.mxu0 %v1930
    %2617 = vmatpush1.msra.mxu0 %v1929
    %2618 = vmatprep.subr.mxu0 %v1934
    %2619 = vmatpush1.msra.mxu0 %v1933
    %2620 = vmatprep.subr.mxu0 %v1938
    %2621 = vmatpush1.msra.mxu0 %v1937
    %2622 = vmatprep.subr.mxu0 %v1942
    %2623 = vmatpush1.msra.mxu0 %v1941
    %2624 = vmatprep.subr.mxu0 %v1946
    %2625 = vmatpush1.msra.mxu0 %v1945
    %2626 = vmatprep.subr.mxu0 %v1950
    %2627 = vmatpush1.msra.mxu0 %v1949
    %2628 = vmatprep.subr.mxu0 %v1954
    %2629 = vmatpush1.msra.mxu0 %v1953
    %2630 = vmatprep.subr.mxu0 %v1958
    %2631 = vmatpush1.msra.mxu0 %v1957
    %2632 = vmatprep.subr.mxu0 %v1962
    %2633 = vmatpush1.msra.mxu0 %v1961
    %2634 = vmatprep.subr.mxu0 %v1966
    %2635 = vmatpush1.msra.mxu0 %v1965
    %2636 = vmatprep.subr.mxu0 %v1970
    %2637 = vmatpush1.msra.mxu0 %v1969
    %2638 = vmatprep.subr.mxu0 %v1974
    %2639 = vmatpush1.msra.mxu0 %v1973
    %2640 = vmatprep.subr.mxu0 %v1978
    %2641 = vmatpush1.msra.mxu0 %v1977
    %2642 = vmatprep.subr.mxu0 %v1982
    %2643 = vmatpush1.msra.mxu0 %v1981
    %2644 = vmatprep.subr.mxu0 %v1986
    %2645 = vmatpush1.msra.mxu0 %v1985
    %2646 = vmatprep.subr.mxu0 0.0
    %2647 = vmatpush1.msra.mxu0 0.0
    %2648 = vmatprep.subr.mxu0 0.0
    %2649 = vmatpush1.msra.mxu0 0.0
    %2650 = vmatprep.subr.mxu0 0.0
    %2651 = vmatpush1.msra.mxu0 0.0
    %2652 = vmatprep.subr.mxu0 0.0
    %2653 = vmatpush1.msra.mxu0 0.0
    %2654 = vmatprep.subr.mxu0 0.0
    %2655 = vmatpush1.msra.mxu0 0.0
    %2656 = vmatprep.subr.mxu0 0.0
    %2657 = vmatpush1.msra.mxu0 0.0
    %2658 = vmatprep.subr.mxu0 0.0
    %2659 = vmatpush1.msra.mxu0 0.0
    %2660 = vmatprep.subr.mxu0 0.0
    %2661 = vmatpush1.msra.mxu0 0.0
    %2662 = vmatprep.subr.mxu0 0.0
    %2663 = vmatpush1.msra.mxu0 0.0
    %2664 = vmatprep.subr.mxu0 0.0
    %2665 = vmatpush1.msra.mxu0 0.0
    %2666 = vmatprep.subr.mxu0 0.0
    %2667 = vmatpush1.msra.mxu0 0.0
    %2668 = vmatprep.subr.mxu0 0.0
    %2669 = vmatpush1.msra.mxu0 0.0
    %2670 = vmatprep.subr.mxu0 0.0
    %2671 = vmatpush1.msra.mxu0 0.0
    %2672 = vmatprep.subr.mxu0 0.0
    %2673 = vmatpush1.msra.mxu0 0.0
    %2674 = vmatprep.subr.mxu0 0.0
    %2675 = vmatpush1.msra.mxu0 0.0
    %2676 = vmatprep.subr.mxu0 0.0
    %2677 = vmatpush1.msra.mxu0 0.0
    %2678 = vmatprep.mubr.f32.mxu0 0.0
    %2679 = vmatmul.mubr.f32.gmra.mrb[0].mxu0 %v2609
    %v2680 = vpop.f32.mrb[0].mxu0
    %v2681 = vadd.f32 0.0, %v2680
    %v2682 = vpop.f32.mrb[0].mxu0
    %v2683 = vadd.f32 0.0, %v2682
    %2684 = vdwg.mxu0
    %2685 = vmatprep.subr.mxu0 %v1928
    %2686 = vmatpush1.msra.mxu0 %v1927
    %2687 = vmatprep.subr.mxu0 %v1932
    %2688 = vmatpush1.msra.mxu0 %v1931
    %2689 = vmatprep.subr.mxu0 %v1936
    %2690 = vmatpush1.msra.mxu0 %v1935
    %2691 = vmatprep.subr.mxu0 %v1940
    %2692 = vmatpush1.msra.mxu0 %v1939
    %2693 = vmatprep.subr.mxu0 %v1944
    %2694 = vmatpush1.msra.mxu0 %v1943
    %2695 = vmatprep.subr.mxu0 %v1948
    %2696 = vmatpush1.msra.mxu0 %v1947
    %2697 = vmatprep.subr.mxu0 %v1952
    %2698 = vmatpush1.msra.mxu0 %v1951
    %2699 = vmatprep.subr.mxu0 %v1956
    %2700 = vmatpush1.msra.mxu0 %v1955
    %2701 = vmatprep.subr.mxu0 %v1960
    %2702 = vmatpush1.msra.mxu0 %v1959
    %2703 = vmatprep.subr.mxu0 %v1964
    %2704 = vmatpush1.msra.mxu0 %v1963
    %2705 = vmatprep.subr.mxu0 %v1968
    %2706 = vmatpush1.msra.mxu0 %v1967
    %2707 = vmatprep.subr.mxu0 %v1972
    %2708 = vmatpush1.msra.mxu0 %v1971
    %2709 = vmatprep.subr.mxu0 %v1976
    %2710 = vmatpush1.msra.mxu0 %v1975
    %2711 = vmatprep.subr.mxu0 %v1980
    %2712 = vmatpush1.msra.mxu0 %v1979
    %2713 = vmatprep.subr.mxu0 %v1984
    %2714 = vmatpush1.msra.mxu0 %v1983
    %2715 = vmatprep.subr.mxu0 %v1988
    %2716 = vmatpush1.msra.mxu0 %v1987
    %2717 = vmatprep.subr.mxu0 0.0
    %2718 = vmatpush1.msra.mxu0 0.0
    %2719 = vmatprep.subr.mxu0 0.0
    %2720 = vmatpush1.msra.mxu0 0.0
    %2721 = vmatprep.subr.mxu0 0.0
    %2722 = vmatpush1.msra.mxu0 0.0
    %2723 = vmatprep.subr.mxu0 0.0
    %2724 = vmatpush1.msra.mxu0 0.0
    %2725 = vmatprep.subr.mxu0 0.0
    %2726 = vmatpush1.msra.mxu0 0.0
    %2727 = vmatprep.subr.mxu0 0.0
    %2728 = vmatpush1.msra.mxu0 0.0
    %2729 = vmatprep.subr.mxu0 0.0
    %2730 = vmatpush1.msra.mxu0 0.0
    %2731 = vmatprep.subr.mxu0 0.0
    %2732 = vmatpush1.msra.mxu0 0.0
    %2733 = vmatprep.subr.mxu0 0.0
    %2734 = vmatpush1.msra.mxu0 0.0
    %2735 = vmatprep.subr.mxu0 0.0
    %2736 = vmatpush1.msra.mxu0 0.0
    %2737 = vmatprep.subr.mxu0 0.0
    %2738 = vmatpush1.msra.mxu0 0.0
    %2739 = vmatprep.subr.mxu0 0.0
    %2740 = vmatpush1.msra.mxu0 0.0
    %2741 = vmatprep.subr.mxu0 0.0
    %2742 = vmatpush1.msra.mxu0 0.0
    %2743 = vmatprep.subr.mxu0 0.0
    %2744 = vmatpush1.msra.mxu0 0.0
    %2745 = vmatprep.subr.mxu0 0.0
    %2746 = vmatpush1.msra.mxu0 0.0
    %2747 = vmatprep.subr.mxu0 0.0
    %2748 = vmatpush1.msra.mxu0 0.0
    %2749 = vmatprep.mubr.f32.mxu0 0.0
    %2750 = vmatmul.mubr.f32.gmra.mrb[0].mxu0 %v2609
    %v2751 = vpop.f32.mrb[0].mxu0
    %v2752 = vadd.f32 0.0, %v2751
    %v2753 = vpop.f32.mrb[0].mxu0
    %v2754 = vadd.f32 0.0, %v2753
    %2755 = vdwg.mxu0
    %v2756 = vadd.f32 %v2610, %v2681
    %v2757 = vadd.f32 %v2611, %v2683
    %v2758 = vadd.f32 %v2612, %v2752
    %v2759 = vadd.f32 %v2613, %v2754
    %v2760 = vmul.f32 %v2756, 0.5
    %v2761 = vtanh.pop %v2760
    %v2762 = vmul.f32 %v2761, 0.5
    %v2763 = vadd.f32 %v2762, 0.5
    %v2764 = vmul.f32 %v2757, 0.5
    %v2765 = vtanh.pop %v2764
    %v2766 = vmul.f32 %v2765, 0.5
    %v2767 = vadd.f32 %v2766, 0.5
    %v2768 = vtanh.pop %v2758
    %v2769 = vmul.f32 %v2759, 0.5
    %v2770 = vtanh.pop %v2769
    %v2771 = vmul.f32 %v2770, 0.5
    %v2772 = vadd.f32 %v2771, 0.5
    %v2773 = vmul.f32 %v2767, %v2607
    %v2774 = vmul.f32 %v2763, %v2768
    %v2775 = vadd.f32 %v2773, %v2774
    %v2776 = vtanh.pop %v2775
    %v2777 = vmul.f32 %v2772, %v2776
    %v2778 = vld [vmem:[#allocation5 + $0x60] sm:$0xff]
    %v2779 = vld [vmem:[#allocation5 + $0x68] sm:$0xff]
    %v2780 = vld [vmem:[#allocation5 + $0x70] sm:$0xff]
    %v2781 = vld [vmem:[#allocation5 + $0x78] sm:$0xff]
    %2782 = vmatprep.subr.mxu0 %v1926
    %2783 = vmatpush1.msra.mxu0 %v1925
    %2784 = vmatprep.subr.mxu0 %v1930
    %2785 = vmatpush1.msra.mxu0 %v1929
    %2786 = vmatprep.subr.mxu0 %v1934
    %2787 = vmatpush1.msra.mxu0 %v1933
    %2788 = vmatprep.subr.mxu0 %v1938
    %2789 = vmatpush1.msra.mxu0 %v1937
    %2790 = vmatprep.subr.mxu0 %v1942
    %2791 = vmatpush1.msra.mxu0 %v1941
    %2792 = vmatprep.subr.mxu0 %v1946
    %2793 = vmatpush1.msra.mxu0 %v1945
    %2794 = vmatprep.subr.mxu0 %v1950
    %2795 = vmatpush1.msra.mxu0 %v1949
    %2796 = vmatprep.subr.mxu0 %v1954
    %2797 = vmatpush1.msra.mxu0 %v1953
    %2798 = vmatprep.subr.mxu0 %v1958
    %2799 = vmatpush1.msra.mxu0 %v1957
    %2800 = vmatprep.subr.mxu0 %v1962
    %2801 = vmatpush1.msra.mxu0 %v1961
    %2802 = vmatprep.subr.mxu0 %v1966
    %2803 = vmatpush1.msra.mxu0 %v1965
    %2804 = vmatprep.subr.mxu0 %v1970
    %2805 = vmatpush1.msra.mxu0 %v1969
    %2806 = vmatprep.subr.mxu0 %v1974
    %2807 = vmatpush1.msra.mxu0 %v1973
    %2808 = vmatprep.subr.mxu0 %v1978
    %2809 = vmatpush1.msra.mxu0 %v1977
    %2810 = vmatprep.subr.mxu0 %v1982
    %2811 = vmatpush1.msra.mxu0 %v1981
    %2812 = vmatprep.subr.mxu0 %v1986
    %2813 = vmatpush1.msra.mxu0 %v1985
    %2814 = vmatprep.subr.mxu0 0.0
    %2815 = vmatpush1.msra.mxu0 0.0
    %2816 = vmatprep.subr.mxu0 0.0
    %2817 = vmatpush1.msra.mxu0 0.0
    %2818 = vmatprep.subr.mxu0 0.0
    %2819 = vmatpush1.msra.mxu0 0.0
    %2820 = vmatprep.subr.mxu0 0.0
    %2821 = vmatpush1.msra.mxu0 0.0
    %2822 = vmatprep.subr.mxu0 0.0
    %2823 = vmatpush1.msra.mxu0 0.0
    %2824 = vmatprep.subr.mxu0 0.0
    %2825 = vmatpush1.msra.mxu0 0.0
    %2826 = vmatprep.subr.mxu0 0.0
    %2827 = vmatpush1.msra.mxu0 0.0
    %2828 = vmatprep.subr.mxu0 0.0
    %2829 = vmatpush1.msra.mxu0 0.0
    %2830 = vmatprep.subr.mxu0 0.0
    %2831 = vmatpush1.msra.mxu0 0.0
    %2832 = vmatprep.subr.mxu0 0.0
    %2833 = vmatpush1.msra.mxu0 0.0
    %2834 = vmatprep.subr.mxu0 0.0
    %2835 = vmatpush1.msra.mxu0 0.0
    %2836 = vmatprep.subr.mxu0 0.0
    %2837 = vmatpush1.msra.mxu0 0.0
    %2838 = vmatprep.subr.mxu0 0.0
    %2839 = vmatpush1.msra.mxu0 0.0
    %2840 = vmatprep.subr.mxu0 0.0
    %2841 = vmatpush1.msra.mxu0 0.0
    %2842 = vmatprep.subr.mxu0 0.0
    %2843 = vmatpush1.msra.mxu0 0.0
    %2844 = vmatprep.subr.mxu0 0.0
    %2845 = vmatpush1.msra.mxu0 0.0
    %2846 = vmatprep.mubr.f32.mxu0 0.0
    %2847 = vmatmul.mubr.f32.gmra.mrb[0].mxu0 %v2777
    %v2848 = vpop.f32.mrb[0].mxu0
    %v2849 = vadd.f32 0.0, %v2848
    %v2850 = vpop.f32.mrb[0].mxu0
    %v2851 = vadd.f32 0.0, %v2850
    %2852 = vdwg.mxu0
    %2853 = vmatprep.subr.mxu0 %v1928
    %2854 = vmatpush1.msra.mxu0 %v1927
    %2855 = vmatprep.subr.mxu0 %v1932
    %2856 = vmatpush1.msra.mxu0 %v1931
    %2857 = vmatprep.subr.mxu0 %v1936
    %2858 = vmatpush1.msra.mxu0 %v1935
    %2859 = vmatprep.subr.mxu0 %v1940
    %2860 = vmatpush1.msra.mxu0 %v1939
    %2861 = vmatprep.subr.mxu0 %v1944
    %2862 = vmatpush1.msra.mxu0 %v1943
    %2863 = vmatprep.subr.mxu0 %v1948
    %2864 = vmatpush1.msra.mxu0 %v1947
    %2865 = vmatprep.subr.mxu0 %v1952
    %2866 = vmatpush1.msra.mxu0 %v1951
    %2867 = vmatprep.subr.mxu0 %v1956
    %2868 = vmatpush1.msra.mxu0 %v1955
    %2869 = vmatprep.subr.mxu0 %v1960
    %2870 = vmatpush1.msra.mxu0 %v1959
    %2871 = vmatprep.subr.mxu0 %v1964
    %2872 = vmatpush1.msra.mxu0 %v1963
    %2873 = vmatprep.subr.mxu0 %v1968
    %2874 = vmatpush1.msra.mxu0 %v1967
    %2875 = vmatprep.subr.mxu0 %v1972
    %2876 = vmatpush1.msra.mxu0 %v1971
    %2877 = vmatprep.subr.mxu0 %v1976
    %2878 = vmatpush1.msra.mxu0 %v1975
    %2879 = vmatprep.subr.mxu0 %v1980
    %2880 = vmatpush1.msra.mxu0 %v1979
    %2881 = vmatprep.subr.mxu0 %v1984
    %2882 = vmatpush1.msra.mxu0 %v1983
    %2883 = vmatprep.subr.mxu0 %v1988
    %2884 = vmatpush1.msra.mxu0 %v1987
    %2885 = vmatprep.subr.mxu0 0.0
    %2886 = vmatpush1.msra.mxu0 0.0
    %2887 = vmatprep.subr.mxu0 0.0
    %2888 = vmatpush1.msra.mxu0 0.0
    %2889 = vmatprep.subr.mxu0 0.0
    %2890 = vmatpush1.msra.mxu0 0.0
    %2891 = vmatprep.subr.mxu0 0.0
    %2892 = vmatpush1.msra.mxu0 0.0
    %2893 = vmatprep.subr.mxu0 0.0
    %2894 = vmatpush1.msra.mxu0 0.0
    %2895 = vmatprep.subr.mxu0 0.0
    %2896 = vmatpush1.msra.mxu0 0.0
    %2897 = vmatprep.subr.mxu0 0.0
    %2898 = vmatpush1.msra.mxu0 0.0
    %2899 = vmatprep.subr.mxu0 0.0
    %2900 = vmatpush1.msra.mxu0 0.0
    %2901 = vmatprep.subr.mxu0 0.0
    %2902 = vmatpush1.msra.mxu0 0.0
    %2903 = vmatprep.subr.mxu0 0.0
    %2904 = vmatpush1.msra.mxu0 0.0
    %2905 = vmatprep.subr.mxu0 0.0
    %2906 = vmatpush1.msra.mxu0 0.0
    %2907 = vmatprep.subr.mxu0 0.0
    %2908 = vmatpush1.msra.mxu0 0.0
    %2909 = vmatprep.subr.mxu0 0.0
    %2910 = vmatpush1.msra.mxu0 0.0
    %2911 = vmatprep.subr.mxu0 0.0
    %2912 = vmatpush1.msra.mxu0 0.0
    %2913 = vmatprep.subr.mxu0 0.0
    %2914 = vmatpush1.msra.mxu0 0.0
    %2915 = vmatprep.subr.mxu0 0.0
    %2916 = vmatpush1.msra.mxu0 0.0
    %2917 = vmatprep.mubr.f32.mxu0 0.0
    %2918 = vmatmul.mubr.f32.gmra.mrb[0].mxu0 %v2777
    %v2919 = vpop.f32.mrb[0].mxu0
    %v2920 = vadd.f32 0.0, %v2919
    %v2921 = vpop.f32.mrb[0].mxu0
    %v2922 = vadd.f32 0.0, %v2921
    %2923 = vdwg.mxu0
    %v2924 = vadd.f32 %v2778, %v2849
    %v2925 = vadd.f32 %v2779, %v2851
    %v2926 = vadd.f32 %v2780, %v2920
    %v2927 = vadd.f32 %v2781, %v2922
    %v2928 = vmul.f32 %v2924, 0.5
    %v2929 = vtanh.pop %v2928
    %v2930 = vmul.f32 %v2929, 0.5
    %v2931 = vadd.f32 %v2930, 0.5
    %v2932 = vmul.f32 %v2925, 0.5
    %v2933 = vtanh.pop %v2932
    %v2934 = vmul.f32 %v2933, 0.5
    %v2935 = vadd.f32 %v2934, 0.5
    %v2936 = vtanh.pop %v2926
    %v2937 = vmul.f32 %v2927, 0.5
    %v2938 = vtanh.pop %v2937
    %v2939 = vmul.f32 %v2938, 0.5
    %v2940 = vadd.f32 %v2939, 0.5
    %v2941 = vmul.f32 %v2935, %v2775
    %v2942 = vmul.f32 %v2931, %v2936
    %v2943 = vadd.f32 %v2941, %v2942
    %v2944 = vtanh.pop %v2943
    %v2945 = vmul.f32 %v2940, %v2944
    %v2946 = vld [vmem:[#allocation5 + $0x80] sm:$0xff]
    %v2947 = vld [vmem:[#allocation5 + $0x88] sm:$0xff]
    %v2948 = vld [vmem:[#allocation5 + $0x90] sm:$0xff]
    %v2949 = vld [vmem:[#allocation5 + $0x98] sm:$0xff]
    %2950 = vmatprep.subr.mxu0 %v1926
    %2951 = vmatpush1.msra.mxu0 %v1925
    %2952 = vmatprep.subr.mxu0 %v1930
    %2953 = vmatpush1.msra.mxu0 %v1929
    %2954 = vmatprep.subr.mxu0 %v1934
    %2955 = vmatpush1.msra.mxu0 %v1933
    %2956 = vmatprep.subr.mxu0 %v1938
    %2957 = vmatpush1.msra.mxu0 %v1937
    %2958 = vmatprep.subr.mxu0 %v1942
    %2959 = vmatpush1.msra.mxu0 %v1941
    %2960 = vmatprep.subr.mxu0 %v1946
    %2961 = vmatpush1.msra.mxu0 %v1945
    %2962 = vmatprep.subr.mxu0 %v1950
    %2963 = vmatpush1.msra.mxu0 %v1949
    %2964 = vmatprep.subr.mxu0 %v1954
    %2965 = vmatpush1.msra.mxu0 %v1953
    %2966 = vmatprep.subr.mxu0 %v1958
    %2967 = vmatpush1.msra.mxu0 %v1957
    %2968 = vmatprep.subr.mxu0 %v1962
    %2969 = vmatpush1.msra.mxu0 %v1961
    %2970 = vmatprep.subr.mxu0 %v1966
    %2971 = vmatpush1.msra.mxu0 %v1965
    %2972 = vmatprep.subr.mxu0 %v1970
    %2973 = vmatpush1.msra.mxu0 %v1969
    %2974 = vmatprep.subr.mxu0 %v1974
    %2975 = vmatpush1.msra.mxu0 %v1973
    %2976 = vmatprep.subr.mxu0 %v1978
    %2977 = vmatpush1.msra.mxu0 %v1977
    %2978 = vmatprep.subr.mxu0 %v1982
    %2979 = vmatpush1.msra.mxu0 %v1981
    %2980 = vmatprep.subr.mxu0 %v1986
    %2981 = vmatpush1.msra.mxu0 %v1985
    %2982 = vmatprep.subr.mxu0 0.0
    %2983 = vmatpush1.msra.mxu0 0.0
    %2984 = vmatprep.subr.mxu0 0.0
    %2985 = vmatpush1.msra.mxu0 0.0
    %2986 = vmatprep.subr.mxu0 0.0
    %2987 = vmatpush1.msra.mxu0 0.0
    %2988 = vmatprep.subr.mxu0 0.0
    %2989 = vmatpush1.msra.mxu0 0.0
    %2990 = vmatprep.subr.mxu0 0.0
    %2991 = vmatpush1.msra.mxu0 0.0
    %2992 = vmatprep.subr.mxu0 0.0
    %2993 = vmatpush1.msra.mxu0 0.0
    %2994 = vmatprep.subr.mxu0 0.0
    %2995 = vmatpush1.msra.mxu0 0.0
    %2996 = vmatprep.subr.mxu0 0.0
    %2997 = vmatpush1.msra.mxu0 0.0
    %2998 = vmatprep.subr.mxu0 0.0
    %2999 = vmatpush1.msra.mxu0 0.0
    %3000 = vmatprep.subr.mxu0 0.0
    %3001 = vmatpush1.msra.mxu0 0.0
    %3002 = vmatprep.subr.mxu0 0.0
    %3003 = vmatpush1.msra.mxu0 0.0
    %3004 = vmatprep.subr.mxu0 0.0
    %3005 = vmatpush1.msra.mxu0 0.0
    %3006 = vmatprep.subr.mxu0 0.0
    %3007 = vmatpush1.msra.mxu0 0.0
    %3008 = vmatprep.subr.mxu0 0.0
    %3009 = vmatpush1.msra.mxu0 0.0
    %3010 = vmatprep.subr.mxu0 0.0
    %3011 = vmatpush1.msra.mxu0 0.0
    %3012 = vmatprep.subr.mxu0 0.0
    %3013 = vmatpush1.msra.mxu0 0.0
    %3014 = vmatprep.mubr.f32.mxu0 0.0
    %3015 = vmatmul.mubr.f32.gmra.mrb[0].mxu0 %v2945
    %v3016 = vpop.f32.mrb[0].mxu0
    %v3017 = vadd.f32 0.0, %v3016
    %v3018 = vpop.f32.mrb[0].mxu0
    %v3019 = vadd.f32 0.0, %v3018
    %3020 = vdwg.mxu0
    %3021 = vmatprep.subr.mxu0 %v1928
    %3022 = vmatpush1.msra.mxu0 %v1927
    %3023 = vmatprep.subr.mxu0 %v1932
    %3024 = vmatpush1.msra.mxu0 %v1931
    %3025 = vmatprep.subr.mxu0 %v1936
    %3026 = vmatpush1.msra.mxu0 %v1935
    %3027 = vmatprep.subr.mxu0 %v1940
    %3028 = vmatpush1.msra.mxu0 %v1939
    %3029 = vmatprep.subr.mxu0 %v1944
    %3030 = vmatpush1.msra.mxu0 %v1943
    %3031 = vmatprep.subr.mxu0 %v1948
    %3032 = vmatpush1.msra.mxu0 %v1947
    %3033 = vmatprep.subr.mxu0 %v1952
    %3034 = vmatpush1.msra.mxu0 %v1951
    %3035 = vmatprep.subr.mxu0 %v1956
    %3036 = vmatpush1.msra.mxu0 %v1955
    %3037 = vmatprep.subr.mxu0 %v1960
    %3038 = vmatpush1.msra.mxu0 %v1959
    %3039 = vmatprep.subr.mxu0 %v1964
    %3040 = vmatpush1.msra.mxu0 %v1963
    %3041 = vmatprep.subr.mxu0 %v1968
    %3042 = vmatpush1.msra.mxu0 %v1967
    %3043 = vmatprep.subr.mxu0 %v1972
    %3044 = vmatpush1.msra.mxu0 %v1971
    %3045 = vmatprep.subr.mxu0 %v1976
    %3046 = vmatpush1.msra.mxu0 %v1975
    %3047 = vmatprep.subr.mxu0 %v1980
    %3048 = vmatpush1.msra.mxu0 %v1979
    %3049 = vmatprep.subr.mxu0 %v1984
    %3050 = vmatpush1.msra.mxu0 %v1983
    %3051 = vmatprep.subr.mxu0 %v1988
    %3052 = vmatpush1.msra.mxu0 %v1987
    %3053 = vmatprep.subr.mxu0 0.0
    %3054 = vmatpush1.msra.mxu0 0.0
    %3055 = vmatprep.subr.mxu0 0.0
    %3056 = vmatpush1.msra.mxu0 0.0
    %3057 = vmatprep.subr.mxu0 0.0
    %3058 = vmatpush1.msra.mxu0 0.0
    %3059 = vmatprep.subr.mxu0 0.0
    %3060 = vmatpush1.msra.mxu0 0.0
    %3061 = vmatprep.subr.mxu0 0.0
    %3062 = vmatpush1.msra.mxu0 0.0
    %3063 = vmatprep.subr.mxu0 0.0
    %3064 = vmatpush1.msra.mxu0 0.0
    %3065 = vmatprep.subr.mxu0 0.0
    %3066 = vmatpush1.msra.mxu0 0.0
    %3067 = vmatprep.subr.mxu0 0.0
    %3068 = vmatpush1.msra.mxu0 0.0
    %3069 = vmatprep.subr.mxu0 0.0
    %3070 = vmatpush1.msra.mxu0 0.0
    %3071 = vmatprep.subr.mxu0 0.0
    %3072 = vmatpush1.msra.mxu0 0.0
    %3073 = vmatprep.subr.mxu0 0.0
    %3074 = vmatpush1.msra.mxu0 0.0
    %3075 = vmatprep.subr.mxu0 0.0
    %3076 = vmatpush1.msra.mxu0 0.0
    %3077 = vmatprep.subr.mxu0 0.0
    %3078 = vmatpush1.msra.mxu0 0.0
    %3079 = vmatprep.subr.mxu0 0.0
    %3080 = vmatpush1.msra.mxu0 0.0
    %3081 = vmatprep.subr.mxu0 0.0
    %3082 = vmatpush1.msra.mxu0 0.0
    %3083 = vmatprep.subr.mxu0 0.0
    %3084 = vmatpush1.msra.mxu0 0.0
    %3085 = vmatprep.mubr.f32.mxu0 0.0
    %3086 = vmatmul.mubr.f32.gmra.mrb[0].mxu0 %v2945
    %v3087 = vpop.f32.mrb[0].mxu0
    %v3088 = vadd.f32 0.0, %v3087
    %v3089 = vpop.f32.mrb[0].mxu0
    %v3090 = vadd.f32 0.0, %v3089
    %3091 = vdwg.mxu0
    %v3092 = vadd.f32 %v2946, %v3017
    %v3093 = vadd.f32 %v2947, %v3019
    %v3094 = vadd.f32 %v2948, %v3088
    %v3095 = vadd.f32 %v2949, %v3090
    %v3096 = vmul.f32 %v3092, 0.5
    %v3097 = vtanh.pop %v3096
    %v3098 = vmul.f32 %v3097, 0.5
    %v3099 = vadd.f32 %v3098, 0.5
    %v3100 = vmul.f32 %v3093, 0.5
    %v3101 = vtanh.pop %v3100
    %v3102 = vmul.f32 %v3101, 0.5
    %v3103 = vadd.f32 %v3102, 0.5
    %v3104 = vtanh.pop %v3094
    %v3105 = vmul.f32 %v3095, 0.5
    %v3106 = vtanh.pop %v3105
    %v3107 = vmul.f32 %v3106, 0.5
    %v3108 = vadd.f32 %v3107, 0.5
    %v3109 = vmul.f32 %v3103, %v2943
    %v3110 = vmul.f32 %v3099, %v3104
    %v3111 = vadd.f32 %v3109, %v3110
    %v3112 = vtanh.pop %v3111
    %v3113 = vmul.f32 %v3108, %v3112
    %v3114 = vld [vmem:[#allocation5 + $0xa0] sm:$0xff]
    %v3115 = vld [vmem:[#allocation5 + $0xa8] sm:$0xff]
    %v3116 = vld [vmem:[#allocation5 + $0xb0] sm:$0xff]
    %v3117 = vld [vmem:[#allocation5 + $0xb8] sm:$0xff]
    %3118 = vmatprep.subr.mxu0 %v1926
    %3119 = vmatpush1.msra.mxu0 %v1925
    %3120 = vmatprep.subr.mxu0 %v1930
    %3121 = vmatpush1.msra.mxu0 %v1929
    %3122 = vmatprep.subr.mxu0 %v1934
    %3123 = vmatpush1.msra.mxu0 %v1933
    %3124 = vmatprep.subr.mxu0 %v1938
    %3125 = vmatpush1.msra.mxu0 %v1937
    %3126 = vmatprep.subr.mxu0 %v1942
    %3127 = vmatpush1.msra.mxu0 %v1941
    %3128 = vmatprep.subr.mxu0 %v1946
    %3129 = vmatpush1.msra.mxu0 %v1945
    %3130 = vmatprep.subr.mxu0 %v1950
    %3131 = vmatpush1.msra.mxu0 %v1949
    %3132 = vmatprep.subr.mxu0 %v1954
    %3133 = vmatpush1.msra.mxu0 %v1953
    %3134 = vmatprep.subr.mxu0 %v1958
    %3135 = vmatpush1.msra.mxu0 %v1957
    %3136 = vmatprep.subr.mxu0 %v1962
    %3137 = vmatpush1.msra.mxu0 %v1961
    %3138 = vmatprep.subr.mxu0 %v1966
    %3139 = vmatpush1.msra.mxu0 %v1965
    %3140 = vmatprep.subr.mxu0 %v1970
    %3141 = vmatpush1.msra.mxu0 %v1969
    %3142 = vmatprep.subr.mxu0 %v1974
    %3143 = vmatpush1.msra.mxu0 %v1973
    %3144 = vmatprep.subr.mxu0 %v1978
    %3145 = vmatpush1.msra.mxu0 %v1977
    %3146 = vmatprep.subr.mxu0 %v1982
    %3147 = vmatpush1.msra.mxu0 %v1981
    %3148 = vmatprep.subr.mxu0 %v1986
    %3149 = vmatpush1.msra.mxu0 %v1985
    %3150 = vmatprep.subr.mxu0 0.0
    %3151 = vmatpush1.msra.mxu0 0.0
    %3152 = vmatprep.subr.mxu0 0.0
    %3153 = vmatpush1.msra.mxu0 0.0
    %3154 = vmatprep.subr.mxu0 0.0
    %3155 = vmatpush1.msra.mxu0 0.0
    %3156 = vmatprep.subr.mxu0 0.0
    %3157 = vmatpush1.msra.mxu0 0.0
    %3158 = vmatprep.subr.mxu0 0.0
    %3159 = vmatpush1.msra.mxu0 0.0
    %3160 = vmatprep.subr.mxu0 0.0
    %3161 = vmatpush1.msra.mxu0 0.0
    %3162 = vmatprep.subr.mxu0 0.0
    %3163 = vmatpush1.msra.mxu0 0.0
    %3164 = vmatprep.subr.mxu0 0.0
    %3165 = vmatpush1.msra.mxu0 0.0
    %3166 = vmatprep.subr.mxu0 0.0
    %3167 = vmatpush1.msra.mxu0 0.0
    %3168 = vmatprep.subr.mxu0 0.0
    %3169 = vmatpush1.msra.mxu0 0.0
    %3170 = vmatprep.subr.mxu0 0.0
    %3171 = vmatpush1.msra.mxu0 0.0
    %3172 = vmatprep.subr.mxu0 0.0
    %3173 = vmatpush1.msra.mxu0 0.0
    %3174 = vmatprep.subr.mxu0 0.0
    %3175 = vmatpush1.msra.mxu0 0.0
    %3176 = vmatprep.subr.mxu0 0.0
    %3177 = vmatpush1.msra.mxu0 0.0
    %3178 = vmatprep.subr.mxu0 0.0
    %3179 = vmatpush1.msra.mxu0 0.0
    %3180 = vmatprep.subr.mxu0 0.0
    %3181 = vmatpush1.msra.mxu0 0.0
    %3182 = vmatprep.mubr.f32.mxu0 0.0
    %3183 = vmatmul.mubr.f32.gmra.mrb[0].mxu0 %v3113
    %v3184 = vpop.f32.mrb[0].mxu0
    %v3185 = vadd.f32 0.0, %v3184
    %v3186 = vpop.f32.mrb[0].mxu0
    %v3187 = vadd.f32 0.0, %v3186
    %3188 = vdwg.mxu0
    %3189 = vmatprep.subr.mxu0 %v1928
    %3190 = vmatpush1.msra.mxu0 %v1927
    %3191 = vmatprep.subr.mxu0 %v1932
    %3192 = vmatpush1.msra.mxu0 %v1931
    %3193 = vmatprep.subr.mxu0 %v1936
    %3194 = vmatpush1.msra.mxu0 %v1935
    %3195 = vmatprep.subr.mxu0 %v1940
    %3196 = vmatpush1.msra.mxu0 %v1939
    %3197 = vmatprep.subr.mxu0 %v1944
    %3198 = vmatpush1.msra.mxu0 %v1943
    %3199 = vmatprep.subr.mxu0 %v1948
    %3200 = vmatpush1.msra.mxu0 %v1947
    %3201 = vmatprep.subr.mxu0 %v1952
    %3202 = vmatpush1.msra.mxu0 %v1951
    %3203 = vmatprep.subr.mxu0 %v1956
    %3204 = vmatpush1.msra.mxu0 %v1955
    %3205 = vmatprep.subr.mxu0 %v1960
    %3206 = vmatpush1.msra.mxu0 %v1959
    %3207 = vmatprep.subr.mxu0 %v1964
    %3208 = vmatpush1.msra.mxu0 %v1963
    %3209 = vmatprep.subr.mxu0 %v1968
    %3210 = vmatpush1.msra.mxu0 %v1967
    %3211 = vmatprep.subr.mxu0 %v1972
    %3212 = vmatpush1.msra.mxu0 %v1971
    %3213 = vmatprep.subr.mxu0 %v1976
    %3214 = vmatpush1.msra.mxu0 %v1975
    %3215 = vmatprep.subr.mxu0 %v1980
    %3216 = vmatpush1.msra.mxu0 %v1979
    %3217 = vmatprep.subr.mxu0 %v1984
    %3218 = vmatpush1.msra.mxu0 %v1983
    %3219 = vmatprep.subr.mxu0 %v1988
    %3220 = vmatpush1.msra.mxu0 %v1987
    %3221 = vmatprep.subr.mxu0 0.0
    %3222 = vmatpush1.msra.mxu0 0.0
    %3223 = vmatprep.subr.mxu0 0.0
    %3224 = vmatpush1.msra.mxu0 0.0
    %3225 = vmatprep.subr.mxu0 0.0
    %3226 = vmatpush1.msra.mxu0 0.0
    %3227 = vmatprep.subr.mxu0 0.0
    %3228 = vmatpush1.msra.mxu0 0.0
    %3229 = vmatprep.subr.mxu0 0.0
    %3230 = vmatpush1.msra.mxu0 0.0
    %3231 = vmatprep.subr.mxu0 0.0
    %3232 = vmatpush1.msra.mxu0 0.0
    %3233 = vmatprep.subr.mxu0 0.0
    %3234 = vmatpush1.msra.mxu0 0.0
    %3235 = vmatprep.subr.mxu0 0.0
    %3236 = vmatpush1.msra.mxu0 0.0
    %3237 = vmatprep.subr.mxu0 0.0
    %3238 = vmatpush1.msra.mxu0 0.0
    %3239 = vmatprep.subr.mxu0 0.0
    %3240 = vmatpush1.msra.mxu0 0.0
    %3241 = vmatprep.subr.mxu0 0.0
    %3242 = vmatpush1.msra.mxu0 0.0
    %3243 = vmatprep.subr.mxu0 0.0
    %3244 = vmatpush1.msra.mxu0 0.0
    %3245 = vmatprep.subr.mxu0 0.0
    %3246 = vmatpush1.msra.mxu0 0.0
    %3247 = vmatprep.subr.mxu0 0.0
    %3248 = vmatpush1.msra.mxu0 0.0
    %3249 = vmatprep.subr.mxu0 0.0
    %3250 = vmatpush1.msra.mxu0 0.0
    %3251 = vmatprep.subr.mxu0 0.0
    %3252 = vmatpush1.msra.mxu0 0.0
    %3253 = vmatprep.mubr.f32.mxu0 0.0
    %3254 = vmatmul.mubr.f32.gmra.mrb[0].mxu0 %v3113
    %v3255 = vpop.f32.mrb[0].mxu0
    %v3256 = vadd.f32 0.0, %v3255
    %v3257 = vpop.f32.mrb[0].mxu0
    %v3258 = vadd.f32 0.0, %v3257
    %3259 = vdwg.mxu0
    %v3260 = vadd.f32 %v3114, %v3185
    %v3261 = vadd.f32 %v3115, %v3187
    %v3262 = vadd.f32 %v3116, %v3256
    %v3263 = vadd.f32 %v3117, %v3258
    %v3264 = vmul.f32 %v3260, 0.5
    %v3265 = vtanh.pop %v3264
    %v3266 = vmul.f32 %v3265, 0.5
    %v3267 = vadd.f32 %v3266, 0.5
    %v3268 = vmul.f32 %v3261, 0.5
    %v3269 = vtanh.pop %v3268
    %v3270 = vmul.f32 %v3269, 0.5
    %v3271 = vadd.f32 %v3270, 0.5
    %v3272 = vtanh.pop %v3262
    %v3273 = vmul.f32 %v3263, 0.5
    %v3274 = vtanh.pop %v3273
    %v3275 = vmul.f32 %v3274, 0.5
    %v3276 = vadd.f32 %v3275, 0.5
    %v3277 = vmul.f32 %v3271, %v3111
    %v3278 = vmul.f32 %v3267, %v3272
    %v3279 = vadd.f32 %v3277, %v3278
    %v3280 = vtanh.pop %v3279
    %v3281 = vmul.f32 %v3276, %v3280
    %v3282 = vld [vmem:[#allocation5 + $0xc0] sm:$0xff]
    %v3283 = vld [vmem:[#allocation5 + $0xc8] sm:$0xff]
    %v3284 = vld [vmem:[#allocation5 + $0xd0] sm:$0xff]
    %v3285 = vld [vmem:[#allocation5 + $0xd8] sm:$0xff]
    %3286 = vmatprep.subr.mxu0 %v1926
    %3287 = vmatpush1.msra.mxu0 %v1925
    %3288 = vmatprep.subr.mxu0 %v1930
    %3289 = vmatpush1.msra.mxu0 %v1929
    %3290 = vmatprep.subr.mxu0 %v1934
    %3291 = vmatpush1.msra.mxu0 %v1933
    %3292 = vmatprep.subr.mxu0 %v1938
    %3293 = vmatpush1.msra.mxu0 %v1937
    %3294 = vmatprep.subr.mxu0 %v1942
    %3295 = vmatpush1.msra.mxu0 %v1941
    %3296 = vmatprep.subr.mxu0 %v1946
    %3297 = vmatpush1.msra.mxu0 %v1945
    %3298 = vmatprep.subr.mxu0 %v1950
    %3299 = vmatpush1.msra.mxu0 %v1949
    %3300 = vmatprep.subr.mxu0 %v1954
    %3301 = vmatpush1.msra.mxu0 %v1953
    %3302 = vmatprep.subr.mxu0 %v1958
    %3303 = vmatpush1.msra.mxu0 %v1957
    %3304 = vmatprep.subr.mxu0 %v1962
    %3305 = vmatpush1.msra.mxu0 %v1961
    %3306 = vmatprep.subr.mxu0 %v1966
    %3307 = vmatpush1.msra.mxu0 %v1965
    %3308 = vmatprep.subr.mxu0 %v1970
    %3309 = vmatpush1.msra.mxu0 %v1969
    %3310 = vmatprep.subr.mxu0 %v1974
    %3311 = vmatpush1.msra.mxu0 %v1973
    %3312 = vmatprep.subr.mxu0 %v1978
    %3313 = vmatpush1.msra.mxu0 %v1977
    %3314 = vmatprep.subr.mxu0 %v1982
    %3315 = vmatpush1.msra.mxu0 %v1981
    %3316 = vmatprep.subr.mxu0 %v1986
    %3317 = vmatpush1.msra.mxu0 %v1985
    %3318 = vmatprep.subr.mxu0 0.0
    %3319 = vmatpush1.msra.mxu0 0.0
    %3320 = vmatprep.subr.mxu0 0.0
    %3321 = vmatpush1.msra.mxu0 0.0
    %3322 = vmatprep.subr.mxu0 0.0
    %3323 = vmatpush1.msra.mxu0 0.0
    %3324 = vmatprep.subr.mxu0 0.0
    %3325 = vmatpush1.msra.mxu0 0.0
    %3326 = vmatprep.subr.mxu0 0.0
    %3327 = vmatpush1.msra.mxu0 0.0
    %3328 = vmatprep.subr.mxu0 0.0
    %3329 = vmatpush1.msra.mxu0 0.0
    %3330 = vmatprep.subr.mxu0 0.0
    %3331 = vmatpush1.msra.mxu0 0.0
    %3332 = vmatprep.subr.mxu0 0.0
    %3333 = vmatpush1.msra.mxu0 0.0
    %3334 = vmatprep.subr.mxu0 0.0
    %3335 = vmatpush1.msra.mxu0 0.0
    %3336 = vmatprep.subr.mxu0 0.0
    %3337 = vmatpush1.msra.mxu0 0.0
    %3338 = vmatprep.subr.mxu0 0.0
    %3339 = vmatpush1.msra.mxu0 0.0
    %3340 = vmatprep.subr.mxu0 0.0
    %3341 = vmatpush1.msra.mxu0 0.0
    %3342 = vmatprep.subr.mxu0 0.0
    %3343 = vmatpush1.msra.mxu0 0.0
    %3344 = vmatprep.subr.mxu0 0.0
    %3345 = vmatpush1.msra.mxu0 0.0
    %3346 = vmatprep.subr.mxu0 0.0
    %3347 = vmatpush1.msra.mxu0 0.0
    %3348 = vmatprep.subr.mxu0 0.0
    %3349 = vmatpush1.msra.mxu0 0.0
    %3350 = vmatprep.mubr.f32.mxu0 0.0
    %3351 = vmatmul.mubr.f32.gmra.mrb[0].mxu0 %v3281
    %v3352 = vpop.f32.mrb[0].mxu0
    %v3353 = vadd.f32 0.0, %v3352
    %v3354 = vpop.f32.mrb[0].mxu0
    %v3355 = vadd.f32 0.0, %v3354
    %3356 = vdwg.mxu0
    %3357 = vmatprep.subr.mxu0 %v1928
    %3358 = vmatpush1.msra.mxu0 %v1927
    %3359 = vmatprep.subr.mxu0 %v1932
    %3360 = vmatpush1.msra.mxu0 %v1931
    %3361 = vmatprep.subr.mxu0 %v1936
    %3362 = vmatpush1.msra.mxu0 %v1935
    %3363 = vmatprep.subr.mxu0 %v1940
    %3364 = vmatpush1.msra.mxu0 %v1939
    %3365 = vmatprep.subr.mxu0 %v1944
    %3366 = vmatpush1.msra.mxu0 %v1943
    %3367 = vmatprep.subr.mxu0 %v1948
    %3368 = vmatpush1.msra.mxu0 %v1947
    %3369 = vmatprep.subr.mxu0 %v1952
    %3370 = vmatpush1.msra.mxu0 %v1951
    %3371 = vmatprep.subr.mxu0 %v1956
    %3372 = vmatpush1.msra.mxu0 %v1955
    %3373 = vmatprep.subr.mxu0 %v1960
    %3374 = vmatpush1.msra.mxu0 %v1959
    %3375 = vmatprep.subr.mxu0 %v1964
    %3376 = vmatpush1.msra.mxu0 %v1963
    %3377 = vmatprep.subr.mxu0 %v1968
    %3378 = vmatpush1.msra.mxu0 %v1967
    %3379 = vmatprep.subr.mxu0 %v1972
    %3380 = vmatpush1.msra.mxu0 %v1971
    %3381 = vmatprep.subr.mxu0 %v1976
    %3382 = vmatpush1.msra.mxu0 %v1975
    %3383 = vmatprep.subr.mxu0 %v1980
    %3384 = vmatpush1.msra.mxu0 %v1979
    %3385 = vmatprep.subr.mxu0 %v1984
    %3386 = vmatpush1.msra.mxu0 %v1983
    %3387 = vmatprep.subr.mxu0 %v1988
    %3388 = vmatpush1.msra.mxu0 %v1987
    %3389 = vmatprep.subr.mxu0 0.0
    %3390 = vmatpush1.msra.mxu0 0.0
    %3391 = vmatprep.subr.mxu0 0.0
    %3392 = vmatpush1.msra.mxu0 0.0
    %3393 = vmatprep.subr.mxu0 0.0
    %3394 = vmatpush1.msra.mxu0 0.0
    %3395 = vmatprep.subr.mxu0 0.0
    %3396 = vmatpush1.msra.mxu0 0.0
    %3397 = vmatprep.subr.mxu0 0.0
    %3398 = vmatpush1.msra.mxu0 0.0
    %3399 = vmatprep.subr.mxu0 0.0
    %3400 = vmatpush1.msra.mxu0 0.0
    %3401 = vmatprep.subr.mxu0 0.0
    %3402 = vmatpush1.msra.mxu0 0.0
    %3403 = vmatprep.subr.mxu0 0.0
    %3404 = vmatpush1.msra.mxu0 0.0
    %3405 = vmatprep.subr.mxu0 0.0
    %3406 = vmatpush1.msra.mxu0 0.0
    %3407 = vmatprep.subr.mxu0 0.0
    %3408 = vmatpush1.msra.mxu0 0.0
    %3409 = vmatprep.subr.mxu0 0.0
    %3410 = vmatpush1.msra.mxu0 0.0
    %3411 = vmatprep.subr.mxu0 0.0
    %3412 = vmatpush1.msra.mxu0 0.0
    %3413 = vmatprep.subr.mxu0 0.0
    %3414 = vmatpush1.msra.mxu0 0.0
    %3415 = vmatprep.subr.mxu0 0.0
    %3416 = vmatpush1.msra.mxu0 0.0
    %3417 = vmatprep.subr.mxu0 0.0
    %3418 = vmatpush1.msra.mxu0 0.0
    %3419 = vmatprep.subr.mxu0 0.0
    %3420 = vmatpush1.msra.mxu0 0.0
    %3421 = vmatprep.mubr.f32.mxu0 0.0
    %3422 = vmatmul.mubr.f32.gmra.mrb[0].mxu0 %v3281
    %v3423 = vpop.f32.mrb[0].mxu0
    %v3424 = vadd.f32 0.0, %v3423
    %v3425 = vpop.f32.mrb[0].mxu0
    %v3426 = vadd.f32 0.0, %v3425
    %3427 = vdwg.mxu0
    %v3428 = vadd.f32 %v3282, %v3353
    %v3429 = vadd.f32 %v3283, %v3355
    %v3430 = vadd.f32 %v3284, %v3424
    %v3431 = vadd.f32 %v3285, %v3426
    %v3432 = vmul.f32 %v3428, 0.5
    %v3433 = vtanh.pop %v3432
    %v3434 = vmul.f32 %v3433, 0.5
    %v3435 = vadd.f32 %v3434, 0.5
    %v3436 = vmul.f32 %v3429, 0.5
    %v3437 = vtanh.pop %v3436
    %v3438 = vmul.f32 %v3437, 0.5
    %v3439 = vadd.f32 %v3438, 0.5
    %v3440 = vtanh.pop %v3430
    %v3441 = vmul.f32 %v3431, 0.5
    %v3442 = vtanh.pop %v3441
    %v3443 = vmul.f32 %v3442, 0.5
    %v3444 = vadd.f32 %v3443, 0.5
    %v3445 = vmul.f32 %v3439, %v3279
    %v3446 = vmul.f32 %v3435, %v3440
    %v3447 = vadd.f32 %v3445, %v3446
    %v3448 = vtanh.pop %v3447
    %v3449 = vmul.f32 %v3444, %v3448
    %v3450 = vld [vmem:[#allocation5 + $0xe0] sm:$0xff]
    %v3451 = vld [vmem:[#allocation5 + $0xe8] sm:$0xff]
    %v3452 = vld [vmem:[#allocation5 + $0xf0] sm:$0xff]
    %v3453 = vld [vmem:[#allocation5 + $0xf8] sm:$0xff]
    %3454 = vmatprep.subr.mxu0 %v1926
    %3455 = vmatpush1.msra.mxu0 %v1925
    %3456 = vmatprep.subr.mxu0 %v1930
    %3457 = vmatpush1.msra.mxu0 %v1929
    %3458 = vmatprep.subr.mxu0 %v1934
    %3459 = vmatpush1.msra.mxu0 %v1933
    %3460 = vmatprep.subr.mxu0 %v1938
    %3461 = vmatpush1.msra.mxu0 %v1937
    %3462 = vmatprep.subr.mxu0 %v1942
    %3463 = vmatpush1.msra.mxu0 %v1941
    %3464 = vmatprep.subr.mxu0 %v1946
    %3465 = vmatpush1.msra.mxu0 %v1945
    %3466 = vmatprep.subr.mxu0 %v1950
    %3467 = vmatpush1.msra.mxu0 %v1949
    %3468 = vmatprep.subr.mxu0 %v1954
    %3469 = vmatpush1.msra.mxu0 %v1953
    %3470 = vmatprep.subr.mxu0 %v1958
    %3471 = vmatpush1.msra.mxu0 %v1957
    %3472 = vmatprep.subr.mxu0 %v1962
    %3473 = vmatpush1.msra.mxu0 %v1961
    %3474 = vmatprep.subr.mxu0 %v1966
    %3475 = vmatpush1.msra.mxu0 %v1965
    %3476 = vmatprep.subr.mxu0 %v1970
    %3477 = vmatpush1.msra.mxu0 %v1969
    %3478 = vmatprep.subr.mxu0 %v1974
    %3479 = vmatpush1.msra.mxu0 %v1973
    %3480 = vmatprep.subr.mxu0 %v1978
    %3481 = vmatpush1.msra.mxu0 %v1977
    %3482 = vmatprep.subr.mxu0 %v1982
    %3483 = vmatpush1.msra.mxu0 %v1981
    %3484 = vmatprep.subr.mxu0 %v1986
    %3485 = vmatpush1.msra.mxu0 %v1985
    %3486 = vmatprep.subr.mxu0 0.0
    %3487 = vmatpush1.msra.mxu0 0.0
    %3488 = vmatprep.subr.mxu0 0.0
    %3489 = vmatpush1.msra.mxu0 0.0
    %3490 = vmatprep.subr.mxu0 0.0
    %3491 = vmatpush1.msra.mxu0 0.0
    %3492 = vmatprep.subr.mxu0 0.0
    %3493 = vmatpush1.msra.mxu0 0.0
    %3494 = vmatprep.subr.mxu0 0.0
    %3495 = vmatpush1.msra.mxu0 0.0
    %3496 = vmatprep.subr.mxu0 0.0
    %3497 = vmatpush1.msra.mxu0 0.0
    %3498 = vmatprep.subr.mxu0 0.0
    %3499 = vmatpush1.msra.mxu0 0.0
    %3500 = vmatprep.subr.mxu0 0.0
    %3501 = vmatpush1.msra.mxu0 0.0
    %3502 = vmatprep.subr.mxu0 0.0
    %3503 = vmatpush1.msra.mxu0 0.0
    %3504 = vmatprep.subr.mxu0 0.0
    %3505 = vmatpush1.msra.mxu0 0.0
    %3506 = vmatprep.subr.mxu0 0.0
    %3507 = vmatpush1.msra.mxu0 0.0
    %3508 = vmatprep.subr.mxu0 0.0
    %3509 = vmatpush1.msra.mxu0 0.0
    %3510 = vmatprep.subr.mxu0 0.0
    %3511 = vmatpush1.msra.mxu0 0.0
    %3512 = vmatprep.subr.mxu0 0.0
    %3513 = vmatpush1.msra.mxu0 0.0
    %3514 = vmatprep.subr.mxu0 0.0
    %3515 = vmatpush1.msra.mxu0 0.0
    %3516 = vmatprep.subr.mxu0 0.0
    %3517 = vmatpush1.msra.mxu0 0.0
    %3518 = vmatprep.mubr.f32.mxu0 0.0
    %3519 = vmatmul.mubr.f32.gmra.mrb[0].mxu0 %v3449
    %v3520 = vpop.f32.mrb[0].mxu0
    %v3521 = vadd.f32 0.0, %v3520
    %v3522 = vpop.f32.mrb[0].mxu0
    %v3523 = vadd.f32 0.0, %v3522
    %3524 = vdwg.mxu0
    %3525 = vmatprep.subr.mxu0 %v1928
    %3526 = vmatpush1.msra.mxu0 %v1927
    %3527 = vmatprep.subr.mxu0 %v1932
    %3528 = vmatpush1.msra.mxu0 %v1931
    %3529 = vmatprep.subr.mxu0 %v1936
    %3530 = vmatpush1.msra.mxu0 %v1935
    %3531 = vmatprep.subr.mxu0 %v1940
    %3532 = vmatpush1.msra.mxu0 %v1939
    %3533 = vmatprep.subr.mxu0 %v1944
    %3534 = vmatpush1.msra.mxu0 %v1943
    %3535 = vmatprep.subr.mxu0 %v1948
    %3536 = vmatpush1.msra.mxu0 %v1947
    %3537 = vmatprep.subr.mxu0 %v1952
    %3538 = vmatpush1.msra.mxu0 %v1951
    %3539 = vmatprep.subr.mxu0 %v1956
    %3540 = vmatpush1.msra.mxu0 %v1955
    %3541 = vmatprep.subr.mxu0 %v1960
    %3542 = vmatpush1.msra.mxu0 %v1959
    %3543 = vmatprep.subr.mxu0 %v1964
    %3544 = vmatpush1.msra.mxu0 %v1963
    %3545 = vmatprep.subr.mxu0 %v1968
    %3546 = vmatpush1.msra.mxu0 %v1967
    %3547 = vmatprep.subr.mxu0 %v1972
    %3548 = vmatpush1.msra.mxu0 %v1971
    %3549 = vmatprep.subr.mxu0 %v1976
    %3550 = vmatpush1.msra.mxu0 %v1975
    %3551 = vmatprep.subr.mxu0 %v1980
    %3552 = vmatpush1.msra.mxu0 %v1979
    %3553 = vmatprep.subr.mxu0 %v1984
    %3554 = vmatpush1.msra.mxu0 %v1983
    %3555 = vmatprep.subr.mxu0 %v1988
    %3556 = vmatpush1.msra.mxu0 %v1987
    %3557 = vmatprep.subr.mxu0 0.0
    %3558 = vmatpush1.msra.mxu0 0.0
    %3559 = vmatprep.subr.mxu0 0.0
    %3560 = vmatpush1.msra.mxu0 0.0
    %3561 = vmatprep.subr.mxu0 0.0
    %3562 = vmatpush1.msra.mxu0 0.0
    %3563 = vmatprep.subr.mxu0 0.0
    %3564 = vmatpush1.msra.mxu0 0.0
    %3565 = vmatprep.subr.mxu0 0.0
    %3566 = vmatpush1.msra.mxu0 0.0
    %3567 = vmatprep.subr.mxu0 0.0
    %3568 = vmatpush1.msra.mxu0 0.0
    %3569 = vmatprep.subr.mxu0 0.0
    %3570 = vmatpush1.msra.mxu0 0.0
    %3571 = vmatprep.subr.mxu0 0.0
    %3572 = vmatpush1.msra.mxu0 0.0
    %3573 = vmatprep.subr.mxu0 0.0
    %3574 = vmatpush1.msra.mxu0 0.0
    %3575 = vmatprep.subr.mxu0 0.0
    %3576 = vmatpush1.msra.mxu0 0.0
    %3577 = vmatprep.subr.mxu0 0.0
    %3578 = vmatpush1.msra.mxu0 0.0
    %3579 = vmatprep.subr.mxu0 0.0
    %3580 = vmatpush1.msra.mxu0 0.0
    %3581 = vmatprep.subr.mxu0 0.0
    %3582 = vmatpush1.msra.mxu0 0.0
    %3583 = vmatprep.subr.mxu0 0.0
    %3584 = vmatpush1.msra.mxu0 0.0
    %3585 = vmatprep.subr.mxu0 0.0
    %3586 = vmatpush1.msra.mxu0 0.0
    %3587 = vmatprep.subr.mxu0 0.0
    %3588 = vmatpush1.msra.mxu0 0.0
    %3589 = vmatprep.mubr.f32.mxu0 0.0
    %3590 = vmatmul.mubr.f32.gmra.mrb[0].mxu0 %v3449
    %v3591 = vpop.f32.mrb[0].mxu0
    %v3592 = vadd.f32 0.0, %v3591
    %v3593 = vpop.f32.mrb[0].mxu0
    %v3594 = vadd.f32 0.0, %v3593
    %3595 = vdwg.mxu0
    %v3596 = vadd.f32 %v3450, %v3521
    %v3597 = vadd.f32 %v3451, %v3523
    %v3598 = vadd.f32 %v3452, %v3592
    %v3599 = vadd.f32 %v3453, %v3594
    %v3600 = vmul.f32 %v3596, 0.5
    %v3601 = vtanh.pop %v3600
    %v3602 = vmul.f32 %v3601, 0.5
    %v3603 = vadd.f32 %v3602, 0.5
    %v3604 = vmul.f32 %v3597, 0.5
    %v3605 = vtanh.pop %v3604
    %v3606 = vmul.f32 %v3605, 0.5
    %v3607 = vadd.f32 %v3606, 0.5
    %v3608 = vtanh.pop %v3598
    %v3609 = vmul.f32 %v3599, 0.5
    %v3610 = vtanh.pop %v3609
    %v3611 = vmul.f32 %v3610, 0.5
    %v3612 = vadd.f32 %v3611, 0.5
    %v3613 = vmul.f32 %v3607, %v3447
    %v3614 = vmul.f32 %v3603, %v3608
    %v3615 = vadd.f32 %v3613, %v3614
    %v3616 = vtanh.pop %v3615
    %v3617 = vmul.f32 %v3612, %v3616
    %3618 = vst [vmem:[%s2270] sm:$0xff] %v3617
    %3619 = vst [vmem:[%s2272] sm:$0xff] %v3615
    %s3620 = scalar_lea.vmem [#allocation12], 8
    %3621 = vst [vmem:[%s3620] sm:$0xff] %v3617
    %s3622 = scalar_lea.vmem [#allocation13], 8
    %3623 = vst [vmem:[%s3622] sm:$0xff] %v3615
    // Predicated region
    $region34: #{tpu_custom_call.1} parent=1 // pred_check
      _
    $region35: #{tpu_custom_call.1} parent=1 // pred_check_branch
      %3625 = sbr.rel (0) target = $region37
    $region36: #{tpu_custom_call.1} parent=1 // pred_region
      %s3627 = ssub.s32 256, 256
      %3628 = vsyncadd [#allocation8], %s3627
      %s3629 = sshll.u32 [#allocation12], 4
      %s3630 = int_to_ptr.vmem [resolvable:$true] %s3629
      %3635 = dma.vmem_to_hbm [thread:$0]  %s3630, 256, %s4, [#allocation8], 128, 128, 8
    $region37: #{tpu_custom_call.1} parent=1 // pred_fallthru
      _
    // Predicated region
    $region38: #{tpu_custom_call.1} parent=1 // pred_check
      _
    $region39: #{tpu_custom_call.1} parent=1 // pred_check_branch
      %3637 = sbr.rel (0) target = $region41
    $region40: #{tpu_custom_call.1} parent=1 // pred_region
      %s3639 = ssub.s32 256, 256
      %3640 = vsyncadd [#allocation14], %s3639
      %s3641 = sshll.u32 [#allocation13], 4
      %s3642 = int_to_ptr.vmem [resolvable:$true] %s3641
      %3647 = dma.vmem_to_hbm [thread:$0]  %s3642, 256, %s5, [#allocation14], 128, 128, 8
    $region41: #{tpu_custom_call.1} parent=1 // pred_fallthru
      _
    // Predicated region
    $region42: #{tpu_custom_call.1} parent=1 // pred_check
      _
    $region43: #{tpu_custom_call.1} parent=1 // pred_check_branch
      %3649 = sbr.rel (0) target = $region45
    $region44: #{tpu_custom_call.1} parent=1 // pred_region
      %3650 = dma.done [#allocation8], 256
    $region45: #{tpu_custom_call.1} parent=1 // pred_fallthru
      _
    // Predicated region
    $region46: #{tpu_custom_call.1} parent=1 // pred_check
      _
    $region47: #{tpu_custom_call.1} parent=1 // pred_check_branch
      %3652 = sbr.rel (0) target = $region49
    $region48: #{tpu_custom_call.1} parent=1 // pred_region
      %3653 = dma.done [#allocation14], 256
    $region49: #{tpu_custom_call.1} parent=1 // pred_fallthru
      _
    %3654 = vsyncpa [#allocation7], 1
    %3655 = vsyncpa [#allocation10], 1
    %3656 = vsyncpa [#allocation8], 1
    %3657 = vsyncpa [#allocation14], 1

</llo_original>
